<compile_context>
chip_gen: v5e
topology: v5e:2x2
jax: 0.10.0
libtpu: 0.0.40
codegen_flags: <defaults>
</compile_context>

<pallas_src>
import functools

import jax
import jax.numpy as jnp
from jax.experimental import pallas as pl
from jax.experimental.pallas import tpu as pltpu

LANE = 128  # channel padding granularity (TPU lane width)


# ----------------------------------------------------------------------------
# small helpers
# ----------------------------------------------------------------------------
def _pad_last(x, mult):
    pad = (-x.shape[-1]) % mult
    if pad == 0:
        return x
    widths = [(0, 0)] * (x.ndim - 1) + [(0, pad)]
    return jnp.pad(x, widths)


def _pick_tile(dim, candidates):
    for c in candidates:
        if c <= dim and dim % c == 0:
            return c
    return dim


def _pick_th(H, W, cap=128):
    """Rows-per-block for the 3x3 conv kernel: th | H, th*W lane/sublane friendly."""
    divs = [d for d in range(1, H + 1) if H % d == 0]
    good = [d for d in divs if (d * W) % 8 == 0 and d * W <= cap]
    if good:
        return max(good)
    good = [d for d in divs if (d * W) % 8 == 0]
    if good:
        return min(good)
    return H


# ----------------------------------------------------------------------------
# Tiled GEMM kernels: o = act((x @ w) + bias [+ res]),  BN scale pre-folded into w
# ----------------------------------------------------------------------------
def _gemm_bn_act_kernel(x_ref, w_ref, b_ref, o_ref, acc_ref, *, relu):
    @pl.when(pl.program_id(2) == 0)
    def _init():
        acc_ref[...] = jnp.zeros_like(acc_ref)

    acc_ref[...] += jnp.dot(x_ref[...], w_ref[...],
                            preferred_element_type=jnp.float32)

    @pl.when(pl.program_id(2) == pl.num_programs(2) - 1)
    def _finalize():
        y = acc_ref[...] + b_ref[...]
        if relu:
            y = jnp.maximum(y, 0.0)
        o_ref[...] = y.astype(o_ref.dtype)


def _gemm_bn_res_relu_kernel(x_ref, w_ref, b_ref, r_ref, o_ref, acc_ref):
    @pl.when(pl.program_id(2) == 0)
    def _init():
        acc_ref[...] = jnp.zeros_like(acc_ref)

    acc_ref[...] += jnp.dot(x_ref[...], w_ref[...],
                            preferred_element_type=jnp.float32)

    @pl.when(pl.program_id(2) == pl.num_programs(2) - 1)
    def _finalize():
        y = acc_ref[...] + b_ref[...] + r_ref[...]
        o_ref[...] = jnp.maximum(y, 0.0).astype(o_ref.dtype)


def fused_gemm(x2d, w, bias, res=None, *, relu=True, out_dtype=jnp.bfloat16):
    """Tiled, pipelined GEMM with K-reduction accumulator and fused BN/res/ReLU epilogue."""
    M, K = x2d.shape
    Kw, N = w.shape
    assert K == Kw
    tm = _pick_tile(M, (256, 128, 64, 32, 16, 8))
    tn = _pick_tile(N, (256, 128))
    tk = _pick_tile(K, (512, 256, 128))
    grid = (M // tm, N // tn, K // tk)

    in_specs = [
        pl.BlockSpec((tm, tk), lambda i, j, k: (i, k)),
        pl.BlockSpec((tk, tn), lambda i, j, k: (k, j)),
        pl.BlockSpec((1, tn), lambda i, j, k: (0, j)),
    ]
    args = [x2d, w, bias]
    if res is not None:
        in_specs.append(pl.BlockSpec((tm, tn), lambda i, j, k: (i, j)))
        args.append(res)
        kernel = _gemm_bn_res_relu_kernel
    else:
        kernel = functools.partial(_gemm_bn_act_kernel, relu=relu)

    bytes_accessed = (x2d.size * x2d.dtype.itemsize + w.size * w.dtype.itemsize
                      + bias.size * bias.dtype.itemsize
                      + M * N * jnp.dtype(out_dtype).itemsize
                      + (res.size * res.dtype.itemsize if res is not None else 0))
    return pl.pallas_call(
        kernel,
        out_shape=jax.ShapeDtypeStruct((M, N), out_dtype),
        grid=grid,
        in_specs=in_specs,
        out_specs=pl.BlockSpec((tm, tn), lambda i, j, k: (i, j)),
        scratch_shapes=[pltpu.VMEM((tm, tn), jnp.float32)],
        compiler_params=pltpu.CompilerParams(
            dimension_semantics=("parallel", "parallel", "arbitrary")),
        cost_estimate=pl.CostEstimate(flops=2 * M * N * K, transcendentals=0,
                                      bytes_accessed=int(bytes_accessed)),
    )(*args)


# ----------------------------------------------------------------------------
# 3x3 conv (stride 1, pad 1) + folded BN + ReLU: 9 shifted-window GEMMs in-kernel
# ----------------------------------------------------------------------------
def _conv3x3_bn_relu_kernel(xp_ref, w_ref, b_ref, o_ref, acc_ref, *, th, W):
    n = pl.program_id(0)
    h0 = pl.program_id(1) * th
    acc_ref[...] = jnp.zeros_like(acc_ref)
    for kh in range(3):
        for kw in range(3):
            # shifted halo window of the padded activation, (th, W, C)
            win = xp_ref[n, pl.ds(h0 + kh, th), pl.ds(kw, W), :]
            win2d = win.reshape(th * W, win.shape[-1]).astype(jnp.bfloat16)
            acc_ref[...] += jnp.dot(win2d, w_ref[kh * 3 + kw],
                                    preferred_element_type=jnp.float32)
    o_ref[...] = jnp.maximum(acc_ref[...] + b_ref[...], 0.0).astype(o_ref.dtype)


def conv3x3_bn_relu(x_nhwc, w9, bias, *, out_dtype=jnp.bfloat16):
    """3x3/stride1/pad1 conv + BN(folded) + ReLU without any im2col HBM intermediate."""
    N, H, W, C = x_nhwc.shape
    O = w9.shape[-1]
    th = _pick_th(H, W)
    hb = H // th
    M = N * H * W
    # spatial halo only; kept f32 in VMEM (windows cast to bf16 in-kernel for the MXU)
    xp = jnp.pad(x_nhwc.astype(jnp.float32), ((0, 0), (1, 1), (1, 1), (0, 0)))
    kernel = functools.partial(_conv3x3_bn_relu_kernel, th=th, W=W)
    return pl.pallas_call(
        kernel,
        out_shape=jax.ShapeDtypeStruct((M, O), out_dtype),
        grid=(N, hb),
        in_specs=[
            # padded activation + weights resident in VMEM (constant index_map)
            pl.BlockSpec(xp.shape, lambda n, h: (0, 0, 0, 0)),
            pl.BlockSpec(w9.shape, lambda n, h: (0, 0, 0)),
            pl.BlockSpec((1, O), lambda n, h: (0, 0)),
        ],
        out_specs=pl.BlockSpec((th * W, O), lambda n, h: (n * hb + h, 0)),
        scratch_shapes=[pltpu.VMEM((th * W, O), jnp.float32)],
        compiler_params=pltpu.CompilerParams(
            dimension_semantics=("parallel", "parallel")),
        cost_estimate=pl.CostEstimate(
            flops=2 * M * C * O * 9, transcendentals=0,
            bytes_accessed=int(xp.size * 4 + w9.size * w9.dtype.itemsize
                               + M * O * jnp.dtype(out_dtype).itemsize)),
    )(xp, w9, bias)


# ----------------------------------------------------------------------------
# Parameters: PyTorch-layout params -> BN-folded, lane-padded bf16 GEMM weights
# ----------------------------------------------------------------------------
def make_params(key, inplanes, planes):
    expansion = 4
    assert inplanes == planes * expansion, \
        "no-downsample Bottleneck path requires inplanes == 4 * planes"
    k1, k2, k3 = jax.random.split(key, 3)

    def bn(c, salt):
        gamma = 1.0 + 0.05 * jnp.arange(c, dtype=jnp.float32)
        beta = 0.01 * (jnp.arange(c, dtype=jnp.float32) - c / 2.0)
        mean = 0.02 * salt * jnp.arange(c, dtype=jnp.float32)
        var = 1.0 + 0.1 * jnp.arange(c, dtype=jnp.float32)
        return dict(gamma=gamma, beta=beta, mean=mean, var=var)

    return {
        # PyTorch OIHW conv weights (bias=False, as in PAConv2d usage)
        "conv1_w": 0.2 * jax.random.normal(k1, (planes, inplanes, 1, 1), jnp.float32),
        "conv2_w": 0.2 * jax.random.normal(k2, (planes, planes, 3, 3), jnp.float32),
        "conv3_w": 0.2 * jax.random.normal(k3, (planes * expansion, planes, 1, 1), jnp.float32),
        "bn1": bn(planes, 1.0),
        "bn2": bn(planes, -1.0),
        "bn3": bn(planes * expansion, 0.5),
    }


def _fold_bn(bn, eps=1e-5):
    scale = bn["gamma"] / jnp.sqrt(bn["var"] + eps)
    shift = bn["beta"] - bn["mean"] * scale
    return scale, shift


def fold_params(p):
    """Eval-mode BN folded into conv weights (unpadded, f32)."""
    s1, b1 = _fold_bn(p["bn1"])
    s2, b2 = _fold_bn(p["bn2"])
    s3, b3 = _fold_bn(p["bn3"])
    w1 = jnp.transpose(p["conv1_w"][:, :, 0, 0], (1, 0)) * s1[None, :]   # (Cin, p)
    w3 = jnp.transpose(p["conv3_w"][:, :, 0, 0], (1, 0)) * s3[None, :]   # (p, 4p)
    o_ch, i_ch = p["conv2_w"].shape[0], p["conv2_w"].shape[1]
    w2 = jnp.transpose(p["conv2_w"], (2, 3, 1, 0)).reshape(9, i_ch, o_ch) * s2[None, None, :]
    return dict(w1=w1, b1=b1, w2=w2, b2=b2, w3=w3, b3=b3)


def prepare_kernel_params(p):
    """Pad folded weights to lane-dense (multiple-of-128) channels, cast to bf16."""
    f = fold_params(p)

    def pad2(w):
        k, n = w.shape
        return jnp.pad(w, ((0, (-k) % LANE), (0, (-n) % LANE)))

    def padb(b):
        return jnp.pad(b, (0, (-b.shape[0]) % LANE)).reshape(1, -1)

    w2 = f["w2"]
    w2p = jnp.pad(w2, ((0, 0), (0, (-w2.shape[1]) % LANE), (0, (-w2.shape[2]) % LANE)))
    return dict(
        w1=pad2(f["w1"]).astype(jnp.bfloat16), b1=padb(f["b1"]),
        w2=w2p.astype(jnp.bfloat16),           b2=padb(f["b2"]),
        w3=pad2(f["w3"]).astype(jnp.bfloat16), b3=padb(f["b3"]),
    )


# ----------------------------------------------------------------------------
# Bottleneck forward (stride=1, downsample=None)
# ----------------------------------------------------------------------------
def bottleneck_forward(x_nchw, kp):
    # NOTE: a full network would stay NHWC end-to-end; transposes only adapt NCHW I/O.
    x = jnp.transpose(x_nchw, (0, 2, 3, 1)).astype(jnp.float32)      # NCHW -> NHWC
    N, H, W, Cin = x.shape
    Kp = kp["w1"].shape[0]    # padded input channels
    Cp = kp["w1"].shape[1]    # padded `planes`
    Ep = kp["w3"].shape[1]    # padded `planes * 4`
    assert Ep == Kp

    M = N * H * W
    x_pad = _pad_last(x, LANE)                       # zero-padded channels
    x2d_f32 = x_pad.reshape(M, Kp)                   # residual kept in f32
    x2d_bf = x2d_f32.astype(jnp.bfloat16)            # GEMM operand in bf16

    # conv1 (1x1) + bn1 + relu
    o1 = fused_gemm(x2d_bf, kp["w1"], kp["b1"], relu=True, out_dtype=jnp.bfloat16)

    # conv2 (3x3, pad=1, stride=1) + bn2 + relu -- 9-tap accumulation in-kernel
    o2 = conv3x3_bn_relu(o1.reshape(N, H, W, Cp), kp["w2"], kp["b2"],
                         out_dtype=jnp.bfloat16)

    # conv3 (1x1) + bn3 + residual add + relu (all fused in one kernel)
    o3 = fused_gemm(o2, kp["w3"], kp["b3"], res=x2d_f32, relu=True,
                    out_dtype=jnp.float32)

    out = o3[:, :Cin].reshape(N, H, W, Cin)
    return jnp.transpose(out, (0, 3, 1, 2))          # NHWC -> NCHW


# ----------------------------------------------------------------------------
# Pure-JAX reference (mirrors the kernel's bf16-matmul / f32-epilogue math)
# ----------------------------------------------------------------------------
def reference_forward(x_nchw, p):
    f = fold_params(p)
    x = jnp.transpose(x_nchw, (0, 2, 3, 1)).astype(jnp.float32)
    N, H, W, Cin = x.shape
    bf = jnp.bfloat16

    o1 = jnp.einsum("nhwc,cp->nhwp", x.astype(bf), f["w1"].astype(bf),
                    preferred_element_type=jnp.float32) + f["b1"]
    o1 = jnp.maximum(o1, 0.0).astype(bf)

    xp = jnp.pad(o1, ((0, 0), (1, 1), (1, 1), (0, 0)))
    planes = f["w1"].shape[1]
    acc = jnp.zeros((N, H, W, planes), jnp.float32)
    for kh in range(3):
        for kw in range(3):
            acc = acc + jnp.einsum("nhwc,co->nhwo",
                                   xp[:, kh:kh + H, kw:kw + W, :],
                                   f["w2"][kh * 3 + kw].astype(bf),
                                   preferred_element_type=jnp.float32)
    o2 = jnp.maximum(acc + f["b2"], 0.0).astype(bf)

    o3 = jnp.einsum("nhwc,co->nhwo", o2, f["w3"].astype(bf),
                    preferred_element_type=jnp.float32) + f["b3"] + x
    o3 = jnp.maximum(o3, 0.0)
    return jnp.transpose(o3, (0, 3, 1, 2))


if __name__ == "__main__":
    key = jax.random.PRNGKey(0)
    kx, kparam = jax.random.split(key)

    N, planes, H, W = 2, 4, 16, 16
    inplanes = planes * 4                       # Bottleneck no-downsample path
    x = jax.random.normal(kx, (N, inplanes, H, W), jnp.float32)   # PyTorch NCHW input

    params = make_params(kparam, inplanes, planes)
    kparams = prepare_kernel_params(params)

    fwd = jax.jit(lambda a: bottleneck_forward(a, kparams))
    out = jax.block_until_ready(fwd(x))

    ref = jax.block_until_ready(reference_forward(x, params))
    assert out.shape == (N, inplanes, H, W)
    max_err = float(jnp.max(jnp.abs(out - ref)))
    assert jnp.allclose(out, ref, atol=1e-2, rtol=1e-2), \
        f"mismatch vs JAX reference (max |diff| = {max_err})"

    print("KERNEL_OK")
</pallas_src>

<mosaic_0001>
module attributes {stable_mosaic.version = 11 : i64} {
  func.func @_gemm_bn_act_kernel(%arg0: i32, %arg1: i32, %arg2: i32, %arg3: memref<256x128xbf16, #tpu.memory_space<vmem>>, %arg4: memref<128x128xbf16, #tpu.memory_space<vmem>>, %arg5: memref<1x128xf32, #tpu.memory_space<vmem>>, %arg6: memref<256x128xbf16, #tpu.memory_space<vmem>>, %arg7: memref<256x128xf32, #tpu.memory_space<vmem>>) attributes {dimension_semantics = [#tpu.dimension_semantics<parallel>, #tpu.dimension_semantics<parallel>, #tpu.dimension_semantics<arbitrary>], iteration_bounds = array<i64: 2, 1, 1>, scalar_prefetch = 0 : i64, scratch_operands = 1 : i64, tpu.core_type = #tpu.core_type<tc>, window_params = [{transform_indices = @transform_0, window_bounds = array<i64: 256, 128>}, {transform_indices = @transform_1, window_bounds = array<i64: 128, 128>}, {transform_indices = @transform_2, window_bounds = array<i64: 1, 128>}, {transform_indices = @transform_3, window_bounds = array<i64: 256, 128>}]} {
    %c0_i32 = arith.constant 0 : i32
    %0 = arith.cmpi eq, %arg2, %c0_i32 : i32
    %1 = arith.extui %0 : i1 to i32
    %c0_i32_0 = arith.constant 0 : i32
    %2 = arith.cmpi ne, %1, %c0_i32_0 : i32
    scf.if %2 {
      %cst_10 = arith.constant 0.000000e+00 : f32
      %12 = vector.broadcast %cst_10 : f32 to vector<256x128xf32>
      %c0_11 = arith.constant 0 : index
      %c0_12 = arith.constant 0 : index
      %13 = vector.load %arg7[%c0_11, %c0_12] : memref<256x128xf32, #tpu.memory_space<vmem>>, vector<256x128xf32>
      tpu.vector_store %arg7[%c0_11, %c0_12], %12 {strides = array<i32>} : memref<256x128xf32, #tpu.memory_space<vmem>>, vector<256x128xf32>,
    } else {
    }
    %c0 = arith.constant 0 : index
    %c0_1 = arith.constant 0 : index
    %3 = vector.load %arg7[%c0, %c0_1] : memref<256x128xf32, #tpu.memory_space<vmem>>, vector<256x128xf32>
    %c0_2 = arith.constant 0 : index
    %c0_3 = arith.constant 0 : index
    %4 = vector.load %arg3[%c0_2, %c0_3] : memref<256x128xbf16, #tpu.memory_space<vmem>>, vector<256x128xbf16>
    %c0_4 = arith.constant 0 : index
    %c0_5 = arith.constant 0 : index
    %5 = vector.load %arg4[%c0_4, %c0_5] : memref<128x128xbf16, #tpu.memory_space<vmem>>, vector<128x128xbf16>
    %cst = arith.constant dense<0.000000e+00> : vector<256x128xf32>
    %6 = tpu.matmul %4, %5, %cst {dimension_numbers = #tpu.dot_dimension_numbers<[1], [0], [0], [1], [0, 0, 1, 1], [], []>} : vector<256x128xbf16>, vector<128x128xbf16>, vector<256x128xf32> -> vector<256x128xf32>
    %7 = arith.addf %3, %6 : vector<256x128xf32>
    %c0_6 = arith.constant 0 : index
    %c0_7 = arith.constant 0 : index
    %8 = vector.load %arg7[%c0_6, %c0_7] : memref<256x128xf32, #tpu.memory_space<vmem>>, vector<256x128xf32>
    tpu.vector_store %arg7[%c0_6, %c0_7], %7 {strides = array<i32>} : memref<256x128xf32, #tpu.memory_space<vmem>>, vector<256x128xf32>,
    %c0_i32_8 = arith.constant 0 : i32
    %9 = arith.cmpi eq, %arg2, %c0_i32_8 : i32
    %10 = arith.extui %9 : i1 to i32
    %c0_i32_9 = arith.constant 0 : i32
    %11 = arith.cmpi ne, %10, %c0_i32_9 : i32
    scf.if %11 {
      %c0_10 = arith.constant 0 : index
      %c0_11 = arith.constant 0 : index
      %12 = vector.load %arg7[%c0_10, %c0_11] : memref<256x128xf32, #tpu.memory_space<vmem>>, vector<256x128xf32>
      %c0_12 = arith.constant 0 : index
      %c0_13 = arith.constant 0 : index
      %13 = vector.load %arg5[%c0_12, %c0_13] : memref<1x128xf32, #tpu.memory_space<vmem>>, vector<1x128xf32>
      %14 = vector.broadcast %13 : vector<1x128xf32> to vector<256x128xf32>
      %15 = arith.addf %12, %14 : vector<256x128xf32>
      %cst_14 = arith.constant 0.000000e+00 : f32
      %16 = vector.broadcast %cst_14 : f32 to vector<256x128xf32>
      %17 = arith.maximumf %15, %16 : vector<256x128xf32>
      %18 = arith.truncf %17 : vector<256x128xf32> to vector<256x128xbf16>
      %c0_15 = arith.constant 0 : index
      %c0_16 = arith.constant 0 : index
      %19 = vector.load %arg6[%c0_15, %c0_16] : memref<256x128xbf16, #tpu.memory_space<vmem>>, vector<256x128xbf16>
      tpu.vector_store %arg6[%c0_15, %c0_16], %18 {strides = array<i32>} : memref<256x128xbf16, #tpu.memory_space<vmem>>, vector<256x128xbf16>,
    } else {
    }
    return
  }
  func.func @transform_0(%arg0: i32, %arg1: i32, %arg2: i32) -> (i32, i32) {
    %c0_i32 = arith.constant 0 : i32
    return %arg0, %arg2 : i32, i32
  }
  func.func @transform_1(%arg0: i32, %arg1: i32, %arg2: i32) -> (i32, i32) {
    %c0_i32 = arith.constant 0 : i32
    return %arg2, %arg1 : i32, i32
  }
  func.func @transform_2(%arg0: i32, %arg1: i32, %arg2: i32) -> (i32, i32) {
    %c0_i32 = arith.constant 0 : i32
    %c0_i32_0 = arith.constant 0 : i32
    return %c0_i32, %arg1 : i32, i32
  }
  func.func @transform_3(%arg0: i32, %arg1: i32, %arg2: i32) -> (i32, i32) {
    %c0_i32 = arith.constant 0 : i32
    return %arg0, %arg1 : i32, i32
  }
}

module attributes {stable_mosaic.version = 11 : i64} {
  func.func @_gemm_bn_res_relu_kernel(%arg0: i32, %arg1: i32, %arg2: i32, %arg3: memref<256x128xbf16, #tpu.memory_space<vmem>>, %arg4: memref<128x128xbf16, #tpu.memory_space<vmem>>, %arg5: memref<1x128xf32, #tpu.memory_space<vmem>>, %arg6: memref<256x128xf32, #tpu.memory_space<vmem>>, %arg7: memref<256x128xf32, #tpu.memory_space<vmem>>, %arg8: memref<256x128xf32, #tpu.memory_space<vmem>>) attributes {dimension_semantics = [#tpu.dimension_semantics<parallel>, #tpu.dimension_semantics<parallel>, #tpu.dimension_semantics<arbitrary>], iteration_bounds = array<i64: 2, 1, 1>, scalar_prefetch = 0 : i64, scratch_operands = 1 : i64, tpu.core_type = #tpu.core_type<tc>, window_params = [{transform_indices = @transform_0, window_bounds = array<i64: 256, 128>}, {transform_indices = @transform_1, window_bounds = array<i64: 128, 128>}, {transform_indices = @transform_2, window_bounds = array<i64: 1, 128>}, {transform_indices = @transform_3, window_bounds = array<i64: 256, 128>}, {transform_indices = @transform_4, window_bounds = array<i64: 256, 128>}]} {
    %c0_i32 = arith.constant 0 : i32
    %0 = arith.cmpi eq, %arg2, %c0_i32 : i32
    %1 = arith.extui %0 : i1 to i32
    %c0_i32_0 = arith.constant 0 : i32
    %2 = arith.cmpi ne, %1, %c0_i32_0 : i32
    scf.if %2 {
      %cst_10 = arith.constant 0.000000e+00 : f32
      %12 = vector.broadcast %cst_10 : f32 to vector<256x128xf32>
      %c0_11 = arith.constant 0 : index
      %c0_12 = arith.constant 0 : index
      %13 = vector.load %arg8[%c0_11, %c0_12] : memref<256x128xf32, #tpu.memory_space<vmem>>, vector<256x128xf32>
      tpu.vector_store %arg8[%c0_11, %c0_12], %12 {strides = array<i32>} : memref<256x128xf32, #tpu.memory_space<vmem>>, vector<256x128xf32>,
    } else {
    }
    %c0 = arith.constant 0 : index
    %c0_1 = arith.constant 0 : index
    %3 = vector.load %arg8[%c0, %c0_1] : memref<256x128xf32, #tpu.memory_space<vmem>>, vector<256x128xf32>
    %c0_2 = arith.constant 0 : index
    %c0_3 = arith.constant 0 : index
    %4 = vector.load %arg3[%c0_2, %c0_3] : memref<256x128xbf16, #tpu.memory_space<vmem>>, vector<256x128xbf16>
    %c0_4 = arith.constant 0 : index
    %c0_5 = arith.constant 0 : index
    %5 = vector.load %arg4[%c0_4, %c0_5] : memref<128x128xbf16, #tpu.memory_space<vmem>>, vector<128x128xbf16>
    %cst = arith.constant dense<0.000000e+00> : vector<256x128xf32>
    %6 = tpu.matmul %4, %5, %cst {dimension_numbers = #tpu.dot_dimension_numbers<[1], [0], [0], [1], [0, 0, 1, 1], [], []>} : vector<256x128xbf16>, vector<128x128xbf16>, vector<256x128xf32> -> vector<256x128xf32>
    %7 = arith.addf %3, %6 : vector<256x128xf32>
    %c0_6 = arith.constant 0 : index
    %c0_7 = arith.constant 0 : index
    %8 = vector.load %arg8[%c0_6, %c0_7] : memref<256x128xf32, #tpu.memory_space<vmem>>, vector<256x128xf32>
    tpu.vector_store %arg8[%c0_6, %c0_7], %7 {strides = array<i32>} : memref<256x128xf32, #tpu.memory_space<vmem>>, vector<256x128xf32>,
    %c0_i32_8 = arith.constant 0 : i32
    %9 = arith.cmpi eq, %arg2, %c0_i32_8 : i32
    %10 = arith.extui %9 : i1 to i32
    %c0_i32_9 = arith.constant 0 : i32
    %11 = arith.cmpi ne, %10, %c0_i32_9 : i32
    scf.if %11 {
      %c0_10 = arith.constant 0 : index
      %c0_11 = arith.constant 0 : index
      %12 = vector.load %arg8[%c0_10, %c0_11] : memref<256x128xf32, #tpu.memory_space<vmem>>, vector<256x128xf32>
      %c0_12 = arith.constant 0 : index
      %c0_13 = arith.constant 0 : index
      %13 = vector.load %arg5[%c0_12, %c0_13] : memref<1x128xf32, #tpu.memory_space<vmem>>, vector<1x128xf32>
      %14 = vector.broadcast %13 : vector<1x128xf32> to vector<256x128xf32>
      %15 = arith.addf %12, %14 : vector<256x128xf32>
      %c0_14 = arith.constant 0 : index
      %c0_15 = arith.constant 0 : index
      %16 = vector.load %arg6[%c0_14, %c0_15] : memref<256x128xf32, #tpu.memory_space<vmem>>, vector<256x128xf32>
      %17 = arith.addf %15, %16 : vector<256x128xf32>
      %cst_16 = arith.constant 0.000000e+00 : f32
      %18 = vector.broadcast %cst_16 : f32 to vector<256x128xf32>
      %19 = arith.maximumf %17, %18 : vector<256x128xf32>
      %c0_17 = arith.constant 0 : index
      %c0_18 = arith.constant 0 : index
      %20 = vector.load %arg7[%c0_17, %c0_18] : memref<256x128xf32, #tpu.memory_space<vmem>>, vector<256x128xf32>
      tpu.vector_store %arg7[%c0_17, %c0_18], %19 {strides = array<i32>} : memref<256x128xf32, #tpu.memory_space<vmem>>, vector<256x128xf32>,
    } else {
    }
    return
  }
  func.func @transform_0(%arg0: i32, %arg1: i32, %arg2: i32) -> (i32, i32) {
    %c0_i32 = arith.constant 0 : i32
    return %arg0, %arg2 : i32, i32
  }
  func.func @transform_1(%arg0: i32, %arg1: i32, %arg2: i32) -> (i32, i32) {
    %c0_i32 = arith.constant 0 : i32
    return %arg2, %arg1 : i32, i32
  }
  func.func @transform_2(%arg0: i32, %arg1: i32, %arg2: i32) -> (i32, i32) {
    %c0_i32 = arith.constant 0 : i32
    %c0_i32_0 = arith.constant 0 : i32
    return %c0_i32, %arg1 : i32, i32
  }
  func.func @transform_3(%arg0: i32, %arg1: i32, %arg2: i32) -> (i32, i32) {
    %c0_i32 = arith.constant 0 : i32
    return %arg0, %arg1 : i32, i32
  }
  func.func @transform_4(%arg0: i32, %arg1: i32, %arg2: i32) -> (i32, i32) {
    %c0_i32 = arith.constant 0 : i32
    return %arg0, %arg1 : i32, i32
  }
}

module attributes {stable_mosaic.version = 11 : i64} {
  func.func @_conv3x3_bn_relu_kernel(%arg0: i32, %arg1: i32, %arg2: memref<2x18x18x128xf32, #tpu.memory_space<vmem>>, %arg3: memref<9x128x128xbf16, #tpu.memory_space<vmem>>, %arg4: memref<1x128xf32, #tpu.memory_space<vmem>>, %arg5: memref<128x128xbf16, #tpu.memory_space<vmem>>, %arg6: memref<128x128xf32, #tpu.memory_space<vmem>>) attributes {dimension_semantics = [#tpu.dimension_semantics<parallel>, #tpu.dimension_semantics<parallel>], iteration_bounds = array<i64: 2, 2>, scalar_prefetch = 0 : i64, scratch_operands = 1 : i64, tpu.core_type = #tpu.core_type<tc>, window_params = [{pipeline_mode = #tpu.pipeline_mode<synchronous>, transform_indices = @transform_0, window_bounds = array<i64: 2, 18, 18, 128>}, {pipeline_mode = #tpu.pipeline_mode<synchronous>, transform_indices = @transform_1, window_bounds = array<i64: 9, 128, 128>}, {pipeline_mode = #tpu.pipeline_mode<synchronous>, transform_indices = @transform_2, window_bounds = array<i64: 1, 128>}, {transform_indices = @transform_3, window_bounds = array<i64: 128, 128>}]} {
    %c8_i32 = arith.constant 8 : i32
    %0 = arith.muli %arg1, %c8_i32 : i32
    %cst = arith.constant 0.000000e+00 : f32
    %1 = vector.broadcast %cst : f32 to vector<128x128xf32>
    %c0 = arith.constant 0 : index
    %c0_0 = arith.constant 0 : index
    %2 = vector.load %arg6[%c0, %c0_0] : memref<128x128xf32, #tpu.memory_space<vmem>>, vector<128x128xf32>
    tpu.vector_store %arg6[%c0, %c0_0], %1 {strides = array<i32>} : memref<128x128xf32, #tpu.memory_space<vmem>>, vector<128x128xf32>,
    %c0_i32 = arith.constant 0 : i32
    %3 = arith.addi %0, %c0_i32 : i32
    %4 = arith.index_cast %arg0 : i32 to index
    %5 = arith.index_cast %3 : i32 to index
    %c0_1 = arith.constant 0 : index
    %c0_2 = arith.constant 0 : index
    %6 = vector.load %arg2[%4, %5, %c0_1, %c0_2] : memref<2x18x18x128xf32, #tpu.memory_space<vmem>>, vector<1x8x16x128xf32>
    %7 = vector.shape_cast %6 : vector<1x8x16x128xf32> to vector<8x16x128xf32>
    %8 = vector.shape_cast %7 : vector<8x16x128xf32> to vector<128x128xf32>
    %9 = arith.truncf %8 : vector<128x128xf32> to vector<128x128xbf16>
    %c0_3 = arith.constant 0 : index
    %c0_4 = arith.constant 0 : index
    %10 = vector.load %arg6[%c0_3, %c0_4] : memref<128x128xf32, #tpu.memory_space<vmem>>, vector<128x128xf32>
    %c0_5 = arith.constant 0 : index
    %c0_6 = arith.constant 0 : index
    %c0_7 = arith.constant 0 : index
    %11 = vector.load %arg3[%c0_5, %c0_6, %c0_7] : memref<9x128x128xbf16, #tpu.memory_space<vmem>>, vector<1x128x128xbf16>
    %12 = vector.shape_cast %11 : vector<1x128x128xbf16> to vector<128x128xbf16>
    %cst_8 = arith.constant dense<0.000000e+00> : vector<128x128xf32>
    %13 = tpu.matmul %9, %12, %cst_8 {dimension_numbers = #tpu.dot_dimension_numbers<[1], [0], [0], [1], [0, 0, 1, 1], [], []>} : vector<128x128xbf16>, vector<128x128xbf16>, vector<128x128xf32> -> vector<128x128xf32>
    %14 = arith.addf %10, %13 : vector<128x128xf32>
    %c0_9 = arith.constant 0 : index
    %c0_10 = arith.constant 0 : index
    %15 = vector.load %arg6[%c0_9, %c0_10] : memref<128x128xf32, #tpu.memory_space<vmem>>, vector<128x128xf32>
    tpu.vector_store %arg6[%c0_9, %c0_10], %14 {strides = array<i32>} : memref<128x128xf32, #tpu.memory_space<vmem>>, vector<128x128xf32>,
    %c0_i32_11 = arith.constant 0 : i32
    %16 = arith.addi %0, %c0_i32_11 : i32
    %17 = arith.index_cast %arg0 : i32 to index
    %18 = arith.index_cast %16 : i32 to index
    %c1 = arith.constant 1 : index
    %c0_12 = arith.constant 0 : index
    %19 = vector.load %arg2[%17, %18, %c1, %c0_12] : memref<2x18x18x128xf32, #tpu.memory_space<vmem>>, vector<1x8x16x128xf32>
    %20 = vector.shape_cast %19 : vector<1x8x16x128xf32> to vector<8x16x128xf32>
    %21 = vector.shape_cast %20 : vector<8x16x128xf32> to vector<128x128xf32>
    %22 = arith.truncf %21 : vector<128x128xf32> to vector<128x128xbf16>
    %c0_13 = arith.constant 0 : index
    %c0_14 = arith.constant 0 : index
    %23 = vector.load %arg6[%c0_13, %c0_14] : memref<128x128xf32, #tpu.memory_space<vmem>>, vector<128x128xf32>
    %c1_15 = arith.constant 1 : index
    %c0_16 = arith.constant 0 : index
    %c0_17 = arith.constant 0 : index
    %24 = vector.load %arg3[%c1_15, %c0_16, %c0_17] : memref<9x128x128xbf16, #tpu.memory_space<vmem>>, vector<1x128x128xbf16>
    %25 = vector.shape_cast %24 : vector<1x128x128xbf16> to vector<128x128xbf16>
    %cst_18 = arith.constant dense<0.000000e+00> : vector<128x128xf32>
    %26 = tpu.matmul %22, %25, %cst_18 {dimension_numbers = #tpu.dot_dimension_numbers<[1], [0], [0], [1], [0, 0, 1, 1], [], []>} : vector<128x128xbf16>, vector<128x128xbf16>, vector<128x128xf32> -> vector<128x128xf32>
    %27 = arith.addf %23, %26 : vector<128x128xf32>
    %c0_19 = arith.constant 0 : index
    %c0_20 = arith.constant 0 : index
    %28 = vector.load %arg6[%c0_19, %c0_20] : memref<128x128xf32, #tpu.memory_space<vmem>>, vector<128x128xf32>
    tpu.vector_store %arg6[%c0_19, %c0_20], %27 {strides = array<i32>} : memref<128x128xf32, #tpu.memory_space<vmem>>, vector<128x128xf32>,
    %c0_i32_21 = arith.constant 0 : i32
    %29 = arith.addi %0, %c0_i32_21 : i32
    %30 = arith.index_cast %arg0 : i32 to index
    %31 = arith.index_cast %29 : i32 to index
    %c2 = arith.constant 2 : index
    %c0_22 = arith.constant 0 : index
    %32 = vector.load %arg2[%30, %31, %c2, %c0_22] : memref<2x18x18x128xf32, #tpu.memory_space<vmem>>, vector<1x8x16x128xf32>
    %33 = vector.shape_cast %32 : vector<1x8x16x128xf32> to vector<8x16x128xf32>
    %34 = vector.shape_cast %33 : vector<8x16x128xf32> to vector<128x128xf32>
    %35 = arith.truncf %34 : vector<128x128xf32> to vector<128x128xbf16>
    %c0_23 = arith.constant 0 : index
    %c0_24 = arith.constant 0 : index
    %36 = vector.load %arg6[%c0_23, %c0_24] : memref<128x128xf32, #tpu.memory_space<vmem>>, vector<128x128xf32>
    %c2_25 = arith.constant 2 : index
    %c0_26 = arith.constant 0 : index
    %c0_27 = arith.constant 0 : index
    %37 = vector.load %arg3[%c2_25, %c0_26, %c0_27] : memref<9x128x128xbf16, #tpu.memory_space<vmem>>, vector<1x128x128xbf16>
    %38 = vector.shape_cast %37 : vector<1x128x128xbf16> to vector<128x128xbf16>
    %cst_28 = arith.constant dense<0.000000e+00> : vector<128x128xf32>
    %39 = tpu.matmul %35, %38, %cst_28 {dimension_numbers = #tpu.dot_dimension_numbers<[1], [0], [0], [1], [0, 0, 1, 1], [], []>} : vector<128x128xbf16>, vector<128x128xbf16>, vector<128x128xf32> -> vector<128x128xf32>
    %40 = arith.addf %36, %39 : vector<128x128xf32>
    %c0_29 = arith.constant 0 : index
    %c0_30 = arith.constant 0 : index
    %41 = vector.load %arg6[%c0_29, %c0_30] : memref<128x128xf32, #tpu.memory_space<vmem>>, vector<128x128xf32>
    tpu.vector_store %arg6[%c0_29, %c0_30], %40 {strides = array<i32>} : memref<128x128xf32, #tpu.memory_space<vmem>>, vector<128x128xf32>,
    %c1_i32 = arith.constant 1 : i32
    %42 = arith.addi %0, %c1_i32 : i32
    %43 = arith.index_cast %arg0 : i32 to index
    %44 = arith.index_cast %42 : i32 to index
    %c0_31 = arith.constant 0 : index
    %c0_32 = arith.constant 0 : index
    %45 = vector.load %arg2[%43, %44, %c0_31, %c0_32] : memref<2x18x18x128xf32, #tpu.memory_space<vmem>>, vector<1x8x16x128xf32>
    %46 = vector.shape_cast %45 : vector<1x8x16x128xf32> to vector<8x16x128xf32>
    %47 = vector.shape_cast %46 : vector<8x16x128xf32> to vector<128x128xf32>
    %48 = arith.truncf %47 : vector<128x128xf32> to vector<128x128xbf16>
    %c0_33 = arith.constant 0 : index
    %c0_34 = arith.constant 0 : index
    %49 = vector.load %arg6[%c0_33, %c0_34] : memref<128x128xf32, #tpu.memory_space<vmem>>, vector<128x128xf32>
    %c3 = arith.constant 3 : index
    %c0_35 = arith.constant 0 : index
    %c0_36 = arith.constant 0 : index
    %50 = vector.load %arg3[%c3, %c0_35, %c0_36] : memref<9x128x128xbf16, #tpu.memory_space<vmem>>, vector<1x128x128xbf16>
    %51 = vector.shape_cast %50 : vector<1x128x128xbf16> to vector<128x128xbf16>
    %cst_37 = arith.constant dense<0.000000e+00> : vector<128x128xf32>
    %52 = tpu.matmul %48, %51, %cst_37 {dimension_numbers = #tpu.dot_dimension_numbers<[1], [0], [0], [1], [0, 0, 1, 1], [], []>} : vector<128x128xbf16>, vector<128x128xbf16>, vector<128x128xf32> -> vector<128x128xf32>
    %53 = arith.addf %49, %52 : vector<128x128xf32>
    %c0_38 = arith.constant 0 : index
    %c0_39 = arith.constant 0 : index
    %54 = vector.load %arg6[%c0_38, %c0_39] : memref<128x128xf32, #tpu.memory_space<vmem>>, vector<128x128xf32>
    tpu.vector_store %arg6[%c0_38, %c0_39], %53 {strides = array<i32>} : memref<128x128xf32, #tpu.memory_space<vmem>>, vector<128x128xf32>,
    %c1_i32_40 = arith.constant 1 : i32
    %55 = arith.addi %0, %c1_i32_40 : i32
    %56 = arith.index_cast %arg0 : i32 to index
    %57 = arith.index_cast %55 : i32 to index
    %c1_41 = arith.constant 1 : index
    %c0_42 = arith.constant 0 : index
    %58 = vector.load %arg2[%56, %57, %c1_41, %c0_42] : memref<2x18x18x128xf32, #tpu.memory_space<vmem>>, vector<1x8x16x128xf32>
    %59 = vector.shape_cast %58 : vector<1x8x16x128xf32> to vector<8x16x128xf32>
    %60 = vector.shape_cast %59 : vector<8x16x128xf32> to vector<128x128xf32>
    %61 = arith.truncf %60 : vector<128x128xf32> to vector<128x128xbf16>
    %c0_43 = arith.constant 0 : index
    %c0_44 = arith.constant 0 : index
    %62 = vector.load %arg6[%c0_43, %c0_44] : memref<128x128xf32, #tpu.memory_space<vmem>>, vector<128x128xf32>
    %c4 = arith.constant 4 : index
    %c0_45 = arith.constant 0 : index
    %c0_46 = arith.constant 0 : index
    %63 = vector.load %arg3[%c4, %c0_45, %c0_46] : memref<9x128x128xbf16, #tpu.memory_space<vmem>>, vector<1x128x128xbf16>
    %64 = vector.shape_cast %63 : vector<1x128x128xbf16> to vector<128x128xbf16>
    %cst_47 = arith.constant dense<0.000000e+00> : vector<128x128xf32>
    %65 = tpu.matmul %61, %64, %cst_47 {dimension_numbers = #tpu.dot_dimension_numbers<[1], [0], [0], [1], [0, 0, 1, 1], [], []>} : vector<128x128xbf16>, vector<128x128xbf16>, vector<128x128xf32> -> vector<128x128xf32>
    %66 = arith.addf %62, %65 : vector<128x128xf32>
    %c0_48 = arith.constant 0 : index
    %c0_49 = arith.constant 0 : index
    %67 = vector.load %arg6[%c0_48, %c0_49] : memref<128x128xf32, #tpu.memory_space<vmem>>, vector<128x128xf32>
    tpu.vector_store %arg6[%c0_48, %c0_49], %66 {strides = array<i32>} : memref<128x128xf32, #tpu.memory_space<vmem>>, vector<128x128xf32>,
    %c1_i32_50 = arith.constant 1 : i32
    %68 = arith.addi %0, %c1_i32_50 : i32
    %69 = arith.index_cast %arg0 : i32 to index
    %70 = arith.index_cast %68 : i32 to index
    %c2_51 = arith.constant 2 : index
    %c0_52 = arith.constant 0 : index
    %71 = vector.load %arg2[%69, %70, %c2_51, %c0_52] : memref<2x18x18x128xf32, #tpu.memory_space<vmem>>, vector<1x8x16x128xf32>
    %72 = vector.shape_cast %71 : vector<1x8x16x128xf32> to vector<8x16x128xf32>
    %73 = vector.shape_cast %72 : vector<8x16x128xf32> to vector<128x128xf32>
    %74 = arith.truncf %73 : vector<128x128xf32> to vector<128x128xbf16>
    %c0_53 = arith.constant 0 : index
    %c0_54 = arith.constant 0 : index
    %75 = vector.load %arg6[%c0_53, %c0_54] : memref<128x128xf32, #tpu.memory_space<vmem>>, vector<128x128xf32>
    %c5 = arith.constant 5 : index
    %c0_55 = arith.constant 0 : index
    %c0_56 = arith.constant 0 : index
    %76 = vector.load %arg3[%c5, %c0_55, %c0_56] : memref<9x128x128xbf16, #tpu.memory_space<vmem>>, vector<1x128x128xbf16>
    %77 = vector.shape_cast %76 : vector<1x128x128xbf16> to vector<128x128xbf16>
    %cst_57 = arith.constant dense<0.000000e+00> : vector<128x128xf32>
    %78 = tpu.matmul %74, %77, %cst_57 {dimension_numbers = #tpu.dot_dimension_numbers<[1], [0], [0], [1], [0, 0, 1, 1], [], []>} : vector<128x128xbf16>, vector<128x128xbf16>, vector<128x128xf32> -> vector<128x128xf32>
    %79 = arith.addf %75, %78 : vector<128x128xf32>
    %c0_58 = arith.constant 0 : index
    %c0_59 = arith.constant 0 : index
    %80 = vector.load %arg6[%c0_58, %c0_59] : memref<128x128xf32, #tpu.memory_space<vmem>>, vector<128x128xf32>
    tpu.vector_store %arg6[%c0_58, %c0_59], %79 {strides = array<i32>} : memref<128x128xf32, #tpu.memory_space<vmem>>, vector<128x128xf32>,
    %c2_i32 = arith.constant 2 : i32
    %81 = arith.addi %0, %c2_i32 : i32
    %82 = arith.index_cast %arg0 : i32 to index
    %83 = arith.index_cast %81 : i32 to index
    %c0_60 = arith.constant 0 : index
    %c0_61 = arith.constant 0 : index
    %84 = vector.load %arg2[%82, %83, %c0_60, %c0_61] : memref<2x18x18x128xf32, #tpu.memory_space<vmem>>, vector<1x8x16x128xf32>
    %85 = vector.shape_cast %84 : vector<1x8x16x128xf32> to vector<8x16x128xf32>
    %86 = vector.shape_cast %85 : vector<8x16x128xf32> to vector<128x128xf32>
    %87 = arith.truncf %86 : vector<128x128xf32> to vector<128x128xbf16>
    %c0_62 = arith.constant 0 : index
    %c0_63 = arith.constant 0 : index
    %88 = vector.load %arg6[%c0_62, %c0_63] : memref<128x128xf32, #tpu.memory_space<vmem>>, vector<128x128xf32>
    %c6 = arith.constant 6 : index
    %c0_64 = arith.constant 0 : index
    %c0_65 = arith.constant 0 : index
    %89 = vector.load %arg3[%c6, %c0_64, %c0_65] : memref<9x128x128xbf16, #tpu.memory_space<vmem>>, vector<1x128x128xbf16>
    %90 = vector.shape_cast %89 : vector<1x128x128xbf16> to vector<128x128xbf16>
    %cst_66 = arith.constant dense<0.000000e+00> : vector<128x128xf32>
    %91 = tpu.matmul %87, %90, %cst_66 {dimension_numbers = #tpu.dot_dimension_numbers<[1], [0], [0], [1], [0, 0, 1, 1], [], []>} : vector<128x128xbf16>, vector<128x128xbf16>, vector<128x128xf32> -> vector<128x128xf32>
    %92 = arith.addf %88, %91 : vector<128x128xf32>
    %c0_67 = arith.constant 0 : index
    %c0_68 = arith.constant 0 : index
    %93 = vector.load %arg6[%c0_67, %c0_68] : memref<128x128xf32, #tpu.memory_space<vmem>>, vector<128x128xf32>
    tpu.vector_store %arg6[%c0_67, %c0_68], %92 {strides = array<i32>} : memref<128x128xf32, #tpu.memory_space<vmem>>, vector<128x128xf32>,
    %c2_i32_69 = arith.constant 2 : i32
    %94 = arith.addi %0, %c2_i32_69 : i32
    %95 = arith.index_cast %arg0 : i32 to index
    %96 = arith.index_cast %94 : i32 to index
    %c1_70 = arith.constant 1 : index
    %c0_71 = arith.constant 0 : index
    %97 = vector.load %arg2[%95, %96, %c1_70, %c0_71] : memref<2x18x18x128xf32, #tpu.memory_space<vmem>>, vector<1x8x16x128xf32>
    %98 = vector.shape_cast %97 : vector<1x8x16x128xf32> to vector<8x16x128xf32>
    %99 = vector.shape_cast %98 : vector<8x16x128xf32> to vector<128x128xf32>
    %100 = arith.truncf %99 : vector<128x128xf32> to vector<128x128xbf16>
    %c0_72 = arith.constant 0 : index
    %c0_73 = arith.constant 0 : index
    %101 = vector.load %arg6[%c0_72, %c0_73] : memref<128x128xf32, #tpu.memory_space<vmem>>, vector<128x128xf32>
    %c7 = arith.constant 7 : index
    %c0_74 = arith.constant 0 : index
    %c0_75 = arith.constant 0 : index
    %102 = vector.load %arg3[%c7, %c0_74, %c0_75] : memref<9x128x128xbf16, #tpu.memory_space<vmem>>, vector<1x128x128xbf16>
    %103 = vector.shape_cast %102 : vector<1x128x128xbf16> to vector<128x128xbf16>
    %cst_76 = arith.constant dense<0.000000e+00> : vector<128x128xf32>
    %104 = tpu.matmul %100, %103, %cst_76 {dimension_numbers = #tpu.dot_dimension_numbers<[1], [0], [0], [1], [0, 0, 1, 1], [], []>} : vector<128x128xbf16>, vector<128x128xbf16>, vector<128x128xf32> -> vector<128x128xf32>
    %105 = arith.addf %101, %104 : vector<128x128xf32>
    %c0_77 = arith.constant 0 : index
    %c0_78 = arith.constant 0 : index
    %106 = vector.load %arg6[%c0_77, %c0_78] : memref<128x128xf32, #tpu.memory_space<vmem>>, vector<128x128xf32>
    tpu.vector_store %arg6[%c0_77, %c0_78], %105 {strides = array<i32>} : memref<128x128xf32, #tpu.memory_space<vmem>>, vector<128x128xf32>,
    %c2_i32_79 = arith.constant 2 : i32
    %107 = arith.addi %0, %c2_i32_79 : i32
    %108 = arith.index_cast %arg0 : i32 to index
    %109 = arith.index_cast %107 : i32 to index
    %c2_80 = arith.constant 2 : index
    %c0_81 = arith.constant 0 : index
    %110 = vector.load %arg2[%108, %109, %c2_80, %c0_81] : memref<2x18x18x128xf32, #tpu.memory_space<vmem>>, vector<1x8x16x128xf32>
    %111 = vector.shape_cast %110 : vector<1x8x16x128xf32> to vector<8x16x128xf32>
    %112 = vector.shape_cast %111 : vector<8x16x128xf32> to vector<128x128xf32>
    %113 = arith.truncf %112 : vector<128x128xf32> to vector<128x128xbf16>
    %c0_82 = arith.constant 0 : index
    %c0_83 = arith.constant 0 : index
    %114 = vector.load %arg6[%c0_82, %c0_83] : memref<128x128xf32, #tpu.memory_space<vmem>>, vector<128x128xf32>
    %c8 = arith.constant 8 : index
    %c0_84 = arith.constant 0 : index
    %c0_85 = arith.constant 0 : index
    %115 = vector.load %arg3[%c8, %c0_84, %c0_85] : memref<9x128x128xbf16, #tpu.memory_space<vmem>>, vector<1x128x128xbf16>
    %116 = vector.shape_cast %115 : vector<1x128x128xbf16> to vector<128x128xbf16>
    %cst_86 = arith.constant dense<0.000000e+00> : vector<128x128xf32>
    %117 = tpu.matmul %113, %116, %cst_86 {dimension_numbers = #tpu.dot_dimension_numbers<[1], [0], [0], [1], [0, 0, 1, 1], [], []>} : vector<128x128xbf16>, vector<128x128xbf16>, vector<128x128xf32> -> vector<128x128xf32>
    %118 = arith.addf %114, %117 : vector<128x128xf32>
    %c0_87 = arith.constant 0 : index
    %c0_88 = arith.constant 0 : index
    %119 = vector.load %arg6[%c0_87, %c0_88] : memref<128x128xf32, #tpu.memory_space<vmem>>, vector<128x128xf32>
    tpu.vector_store %arg6[%c0_87, %c0_88], %118 {strides = array<i32>} : memref<128x128xf32, #tpu.memory_space<vmem>>, vector<128x128xf32>,
    %c0_89 = arith.constant 0 : index
    %c0_90 = arith.constant 0 : index
    %120 = vector.load %arg6[%c0_89, %c0_90] : memref<128x128xf32, #tpu.memory_space<vmem>>, vector<128x128xf32>
    %c0_91 = arith.constant 0 : index
    %c0_92 = arith.constant 0 : index
    %121 = vector.load %arg4[%c0_91, %c0_92] : memref<1x128xf32, #tpu.memory_space<vmem>>, vector<1x128xf32>
    %122 = vector.broadcast %121 : vector<1x128xf32> to vector<128x128xf32>
    %123 = arith.addf %120, %122 : vector<128x128xf32>
    %cst_93 = arith.constant 0.000000e+00 : f32
    %124 = vector.broadcast %cst_93 : f32 to vector<128x128xf32>
    %125 = arith.maximumf %123, %124 : vector<128x128xf32>
    %126 = arith.truncf %125 : vector<128x128xf32> to vector<128x128xbf16>
    %c0_94 = arith.constant 0 : index
    %c0_95 = arith.constant 0 : index
    %127 = vector.load %arg5[%c0_94, %c0_95] : memref<128x128xbf16, #tpu.memory_space<vmem>>, vector<128x128xbf16>
    tpu.vector_store %arg5[%c0_94, %c0_95], %126 {strides = array<i32>} : memref<128x128xbf16, #tpu.memory_space<vmem>>, vector<128x128xbf16>,
    return
  }
  func.func @transform_0(%arg0: i32, %arg1: i32) -> (i32, i32, i32, i32) {
    %c0_i32 = arith.constant 0 : i32
    %c0_i32_0 = arith.constant 0 : i32
    %c0_i32_1 = arith.constant 0 : i32
    %c0_i32_2 = arith.constant 0 : i32
    %c0_i32_3 = arith.constant 0 : i32
    return %c0_i32, %c0_i32_0, %c0_i32_1, %c0_i32_2 : i32, i32, i32, i32
  }
  func.func @transform_1(%arg0: i32, %arg1: i32) -> (i32, i32, i32) {
    %c0_i32 = arith.constant 0 : i32
    %c0_i32_0 = arith.constant 0 : i32
    %c0_i32_1 = arith.constant 0 : i32
    %c0_i32_2 = arith.constant 0 : i32
    return %c0_i32, %c0_i32_0, %c0_i32_1 : i32, i32, i32
  }
  func.func @transform_2(%arg0: i32, %arg1: i32) -> (i32, i32) {
    %c0_i32 = arith.constant 0 : i32
    %c0_i32_0 = arith.constant 0 : i32
    %c0_i32_1 = arith.constant 0 : i32
    return %c0_i32, %c0_i32_0 : i32, i32
  }
  func.func @transform_3(%arg0: i32, %arg1: i32) -> (i32, i32) {
    %c2_i32 = arith.constant 2 : i32
    %0 = arith.muli %arg0, %c2_i32 : i32
    %1 = arith.addi %0, %arg1 : i32
    %c0_i32 = arith.constant 0 : i32
    %c0_i32_0 = arith.constant 0 : i32
    return %1, %c0_i32 : i32, i32
  }
}

</mosaic_0001>

<llo_original>
// kernel: _lambda_.3
$region0: #{_lambda_.3}
  #allocation0 [shape = 'u32[]', space=smem, size = 0x4, offset = 0x4, fixed_abs, tag = 'smem constant byte address 0x4 - core index']
  #allocation1 [shape = 'u32[72,128]{1,0:T(1,128)}', space=vmem, size = 0x9000, scoped, tag = 'internal scratch']
  #allocation2 [shape = 'f32[256,128]{1,0:T(8,128)}', space=vmem, size = 0x20000, scoped, tag = 'scratch operand']
  %s0 = inlined_call_operand.vmem [shape: bf16[512,128], index: 0, kind: input, shape index: {}]
  %s1 = inlined_call_operand.vmem [shape: bf16[128,128], index: 1, kind: input, shape index: {}]
  %s2 = inlined_call_operand.vmem [shape: f32[1,128], index: 2, kind: input, shape index: {}]
  %s3 = inlined_call_operand.vmem [shape: bf16[512,128], index: 3, kind: output, shape index: {}]
  %s4 = sld [smem:[#allocation0]]
  $region53: #{_lambda_.3} parent=0
    _
  %s6 = ssub.s32 1, %s4
  %s7 = scalar_select 0, %s6, %s4
  loop: start=0, step=1, limit=4
  $region2: #{_lambda_.3} parent=0 // loop_pre_header
    _
  $region3: #{_lambda_.3} parent=0 // loop_header
    %s9 = sphi 0, %s13
    %p10 = scmp.ge.s32.totalorder %s9, 4
    %s16 = sphi 0, %s35
    %s17 = sphi 0, %s31
    %s18 = sphi 0, %s27
    %s19 = sphi 0, %s16
    %s20 = sphi 0, %s17
    %s21 = sphi 0, %s18
    %s22 = sphi 0, %s19
    %s23 = sphi 0, %s20
    %s24 = sphi 0, %s21
    %s40 = sphi 0, %s42
    %s43 = sphi 0, %s40
    %s44 = sphi 0, %s43
    %s60 = sphi 0, %s44
    %s68 = sphi 0, %s70
    %s71 = sphi 0, %s68
    %s72 = sphi 0, %s71
    %s88 = sphi 0, %s72
    %s94 = sphi 0, %s96
    %s97 = sphi 0, %s94
    %s98 = sphi 0, %s97
    %s114 = sphi 0, %s98
    %s122 = sphi 0, %s124
    %s125 = sphi 0, %s122
    %s126 = sphi 0, %s125
    %s142 = sphi 0, %s126
  $region4: #{_lambda_.3} parent=0 // loop_header_branch
    %12 = sbr.rel (%p10) target = $region8
  $region5: #{_lambda_.3} parent=0 // loop_body
    %s14 = ssub.s32 %s9, 1
    %s15 = ssub.s32 %s9, 2
    %s25 = sadd.s32 1, %s18
    %p26 = scmp.ge.s32.totalorder %s25, 1
    %s27 = scalar_select %p26, 0, %s25
    %s28 = sadd.s32 1, %s17
    %s29 = scalar_select %p26, %s28, %s17
    %p30 = scmp.ge.s32.totalorder %s29, 1
    %s31 = scalar_select %p30, 0, %s29
    %s32 = sadd.s32 1, %s16
    %s33 = scalar_select %p30, %s32, %s16
    %p34 = scmp.ge.s32.totalorder %s33, 2
    %s35 = scalar_select %p34, 0, %s33
    %s36 = ssub.s32 %s16, %s35
    %s37 = ssub.s32 %s18, %s27
    %s38 = sor.u32 %s36, %s37
    %p39 = scmp.eq.s32.totalorder %s38, 0
    %s41 = sadd.s32 %s40, 1
    %s42 = scalar_select %p39, %s40, %s41
    %p45 = pneg %p39
    %p46 = scmp.eq.s32.totalorder %s9, 1
    %p47 = por %p45, %p46
    %p48 = scmp.ne.s32.totalorder %s40, %s43
    %p49 = scmp.eq.s32.totalorder %s9, 0
    %p50 = por %p48, %p49
    %p51 = scmp.ne.s32.totalorder %s40, %s43
    %p52 = scmp.eq.s32.totalorder %s14, 1
    %p53 = por %p51, %p52
    %p54 = scmp.ne.s32.totalorder %s43, %s44
    %p55 = scmp.eq.s32.totalorder %s14, 0
    %p56 = por %p54, %p55
    %p57 = scmp.ne.s32.totalorder %s43, %s44
    %p58 = scmp.eq.s32.totalorder %s15, 1
    %p59 = por %p57, %p58
    %p61 = scmp.ne.s32.totalorder %s44, %s60
    %p62 = scmp.eq.s32.totalorder %s15, 0
    %p63 = por %p61, %p62
    %s64 = ssub.s32 %s18, %s27
    %s65 = ssub.s32 %s17, %s31
    %s66 = sor.u32 %s64, %s65
    %p67 = scmp.eq.s32.totalorder %s66, 0
    %s69 = sadd.s32 %s68, 1
    %s70 = scalar_select %p67, %s68, %s69
    %p73 = pneg %p67
    %p74 = scmp.eq.s32.totalorder %s9, 1
    %p75 = por %p73, %p74
    %p76 = scmp.ne.s32.totalorder %s68, %s71
    %p77 = scmp.eq.s32.totalorder %s9, 0
    %p78 = por %p76, %p77
    %p79 = scmp.ne.s32.totalorder %s68, %s71
    %p80 = scmp.eq.s32.totalorder %s14, 1
    %p81 = por %p79, %p80
    %p82 = scmp.ne.s32.totalorder %s71, %s72
    %p83 = scmp.eq.s32.totalorder %s14, 0
    %p84 = por %p82, %p83
    %p85 = scmp.ne.s32.totalorder %s71, %s72
    %p86 = scmp.eq.s32.totalorder %s15, 1
    %p87 = por %p85, %p86
    %p89 = scmp.ne.s32.totalorder %s72, %s88
    %p90 = scmp.eq.s32.totalorder %s15, 0
    %p91 = por %p89, %p90
    %s92 = ssub.s32 %s17, %s31
    %p93 = scmp.eq.s32.totalorder %s92, 0
    %s95 = sadd.s32 %s94, 1
    %s96 = scalar_select %p93, %s94, %s95
    %p99 = pneg %p93
    %p100 = scmp.eq.s32.totalorder %s9, 1
    %p101 = por %p99, %p100
    %p102 = scmp.ne.s32.totalorder %s94, %s97
    %p103 = scmp.eq.s32.totalorder %s9, 0
    %p104 = por %p102, %p103
    %p105 = scmp.ne.s32.totalorder %s94, %s97
    %p106 = scmp.eq.s32.totalorder %s14, 1
    %p107 = por %p105, %p106
    %p108 = scmp.ne.s32.totalorder %s97, %s98
    %p109 = scmp.eq.s32.totalorder %s14, 0
    %p110 = por %p108, %p109
    %p111 = scmp.ne.s32.totalorder %s97, %s98
    %p112 = scmp.eq.s32.totalorder %s15, 1
    %p113 = por %p111, %p112
    %p115 = scmp.ne.s32.totalorder %s98, %s114
    %p116 = scmp.eq.s32.totalorder %s15, 0
    %p117 = por %p115, %p116
    %s118 = ssub.s32 %s16, %s35
    %s119 = ssub.s32 %s17, %s31
    %s120 = sor.u32 %s118, %s119
    %p121 = scmp.eq.s32.totalorder %s120, 0
    %s123 = sadd.s32 %s122, 1
    %s124 = scalar_select %p121, %s122, %s123
    %p127 = pneg %p121
    %p128 = scmp.eq.s32.totalorder %s9, 1
    %p129 = por %p127, %p128
    %p130 = scmp.ne.s32.totalorder %s122, %s125
    %p131 = scmp.eq.s32.totalorder %s9, 0
    %p132 = por %p130, %p131
    %p133 = scmp.ne.s32.totalorder %s122, %s125
    %p134 = scmp.eq.s32.totalorder %s14, 1
    %p135 = por %p133, %p134
    %p136 = scmp.ne.s32.totalorder %s125, %s126
    %p137 = scmp.eq.s32.totalorder %s14, 0
    %p138 = por %p136, %p137
    %p139 = scmp.ne.s32.totalorder %s125, %s126
    %p140 = scmp.eq.s32.totalorder %s15, 1
    %p141 = por %p139, %p140
    %p143 = scmp.ne.s32.totalorder %s126, %s142
    %p144 = scmp.eq.s32.totalorder %s15, 0
    %p145 = por %p143, %p144
    %p146 = scmp.le.s32.totalorder 1, %s9
    %p147 = scmp.lt.s32.totalorder %s9, 3
    %p148 = pnand %p146, %p147
    %p149 = pneg %p148
    // Predicated region
    $region9: #{_lambda_.3} parent=5 // pred_check
      _
    $region10: #{_lambda_.3} parent=5 // pred_check_branch
      %151 = sbr.rel (%p148) target = $region12
    $region11: #{_lambda_.3} parent=5 // pred_region
      %s152 = ssub.s32 %s9, 1
      // Predicated region
      $region13: #{_lambda_.3} parent=11 // pred_check
        %p153 = pneg %p84
      $region14: #{_lambda_.3} parent=11 // pred_check_branch
        %155 = sbr.rel (%p153) target = $region16
      $region15: #{_lambda_.3} parent=11 // pred_region
        %s156 = smul.u32 16, %s21
        %p157 = scmp.lt.s32.totalorder %s156, 15
        %s158 = scalar_select %p157, %s156, 15
        %p159 = scmp.lt.s32.totalorder %s20, 0
        %s160 = scalar_select %p159, %s20, 0
        %s161 = sadd.s32 %s160, %s158
        %s162 = smul.addr %s161, 4
        %s163 = scalar_lea.vmem %s1, %s162
        %s164 = smul.u32 16, %s21
      $region16: #{_lambda_.3} parent=11 // pred_fallthru
        _
      // Predicated region
      $region17: #{_lambda_.3} parent=11 // pred_check
        %p165 = pneg %p110
      $region18: #{_lambda_.3} parent=11 // pred_check_branch
        %167 = sbr.rel (%p165) target = $region20
      $region19: #{_lambda_.3} parent=11 // pred_region
        %p168 = scmp.lt.s32.totalorder %s20, 0
        %s169 = scalar_select %p168, %s20, 0
        %s170 = scalar_lea.vmem %s2, %s169
      $region20: #{_lambda_.3} parent=11 // pred_fallthru
        _
    $region12: #{_lambda_.3} parent=5 // pred_fallthru
      _
    %p171 = scmp.lt.s32.totalorder %s9, 2
    // Predicated region
    $region21: #{_lambda_.3} parent=5 // pred_check
      %p172 = pneg %p171
    $region22: #{_lambda_.3} parent=5 // pred_check_branch
      %174 = sbr.rel (%p172) target = $region24
    $region23: #{_lambda_.3} parent=5 // pred_region
      // Predicated region
      $region25: #{_lambda_.3} parent=23 // pred_check
        %p175 = pneg %p50
      $region26: #{_lambda_.3} parent=23 // pred_check_branch
        %177 = sbr.rel (%p175) target = $region28
      $region27: #{_lambda_.3} parent=23 // pred_region
        %s178 = smul.u32 32, %s16
        %p179 = scmp.lt.s32.totalorder %s178, 63
        %s180 = scalar_select %p179, %s178, 63
        %p181 = scmp.lt.s32.totalorder %s18, 0
        %s182 = scalar_select %p181, %s18, 0
        %s183 = sadd.s32 %s182, %s180
        %s184 = smul.addr %s183, 4
        %s185 = scalar_lea.vmem %s0, %s184
        %s186 = smul.u32 32, %s16
      $region28: #{_lambda_.3} parent=23 // pred_fallthru
        _
    $region24: #{_lambda_.3} parent=5 // pred_fallthru
      _
    %p187 = scmp.le.s32.totalorder 1, %s9
    %p188 = scmp.lt.s32.totalorder %s9, 3
    %p189 = pnand %p187, %p188
    %p190 = pneg %p189
    // Predicated region
    $region29: #{_lambda_.3} parent=5 // pred_check
      _
    $region30: #{_lambda_.3} parent=5 // pred_check_branch
      %192 = sbr.rel (%p189) target = $region32
    $region31: #{_lambda_.3} parent=5 // pred_region
      %s193 = ssub.s32 %s9, 1
      %s194 = smul.u32 32, %s19
      %p195 = scmp.lt.s32.totalorder %s194, 63
      %s196 = scalar_select %p195, %s194, 63
      %p197 = scmp.lt.s32.totalorder %s21, 0
      %s198 = scalar_select %p197, %s21, 0
      %s199 = sadd.s32 %s198, %s196
      %s200 = smul.addr %s199, 4
      %s201 = scalar_lea.vmem %s0, %s200
      %p202 = pneg %p56
      %p203 = pneg %p53
      %s204 = smul.u32 16, %s21
      %p205 = scmp.lt.s32.totalorder %s204, 15
      %s206 = scalar_select %p205, %s204, 15
      %p207 = scmp.lt.s32.totalorder %s20, 0
      %s208 = scalar_select %p207, %s20, 0
      %s209 = sadd.s32 %s208, %s206
      %s210 = smul.addr %s209, 4
      %s211 = scalar_lea.vmem %s1, %s210
      %p212 = pneg %p84
      %p213 = pneg %p81
      %p214 = scmp.lt.s32.totalorder %s20, 0
      %s215 = scalar_select %p214, %s20, 0
      %s216 = scalar_lea.vmem %s2, %s215
      %p217 = pneg %p110
      %p218 = pneg %p107
      %p219 = pneg %p138
      %p220 = pneg %p135
      %s221 = smul.u32 32, %s19
      %p222 = scmp.lt.s32.totalorder %s221, 63
      %s223 = scalar_select %p222, %s221, 63
      %p224 = scmp.lt.s32.totalorder %s20, 0
      %s225 = scalar_select %p224, %s20, 0
      %s226 = sadd.s32 %s225, %s223
      %s227 = smul.addr %s226, 4
      %s228 = scalar_lea.vmem %s3, %s227
      %s229 = smul.u32 32, %s19
      %p230 = scmp.lt.s32.totalorder %s229, 63
      %s231 = scalar_select %p230, %s229, 63
      %p232 = scmp.lt.s32.totalorder %s21, 0
      %s233 = scalar_select %p232, %s21, 0
      %s234 = sadd.s32 %s233, %s231
      %s235 = smul.addr %s234, 4
      %s236 = scalar_lea.vmem %s0, %s235
      %s237 = smul.u32 32, %s19
      %s238 = smul.u32 16, %s21
      %p239 = scmp.lt.s32.totalorder %s238, 15
      %s240 = scalar_select %p239, %s238, 15
      %p241 = scmp.lt.s32.totalorder %s20, 0
      %s242 = scalar_select %p241, %s20, 0
      %s243 = sadd.s32 %s242, %s240
      %s244 = smul.addr %s243, 4
      %s245 = scalar_lea.vmem %s1, %s244
      %s246 = smul.u32 16, %s21
      %p247 = scmp.lt.s32.totalorder %s20, 0
      %s248 = scalar_select %p247, %s20, 0
      %s249 = scalar_lea.vmem %s2, %s248
      %s250 = smul.u32 32, %s19
      %p251 = scmp.lt.s32.totalorder %s250, 63
      %s252 = scalar_select %p251, %s250, 63
      %p253 = scmp.lt.s32.totalorder %s20, 0
      %s254 = scalar_select %p253, %s20, 0
      %s255 = sadd.s32 %s254, %s252
      %s256 = smul.addr %s255, 4
      %s257 = scalar_lea.vmem %s3, %s256
      %s258 = smul.u32 32, %s19
      %p259 = scmp.eq.s32.totalorder %s21, 0
      // Predicated region
      $region33: #{_lambda_.3} parent=31 // pred_check
        %p260 = pneg %p259
      $region34: #{_lambda_.3} parent=31 // pred_check_branch
        %262 = sbr.rel (%p260) target = $region36
      $region35: #{_lambda_.3} parent=31 // pred_region
        %263 = vst [vmem:[#allocation2] sm:$0xff] 0.0
        %264 = vst [vmem:[#allocation2 + $0x8] sm:$0xff] 0.0
        %265 = vst [vmem:[#allocation2 + $0x10] sm:$0xff] 0.0
        %266 = vst [vmem:[#allocation2 + $0x18] sm:$0xff] 0.0
        %267 = vst [vmem:[#allocation2 + $0x20] sm:$0xff] 0.0
        %268 = vst [vmem:[#allocation2 + $0x28] sm:$0xff] 0.0
        %269 = vst [vmem:[#allocation2 + $0x30] sm:$0xff] 0.0
        %270 = vst [vmem:[#allocation2 + $0x38] sm:$0xff] 0.0
        %271 = vst [vmem:[#allocation2 + $0x40] sm:$0xff] 0.0
        %272 = vst [vmem:[#allocation2 + $0x48] sm:$0xff] 0.0
        %273 = vst [vmem:[#allocation2 + $0x50] sm:$0xff] 0.0
        %274 = vst [vmem:[#allocation2 + $0x58] sm:$0xff] 0.0
        %275 = vst [vmem:[#allocation2 + $0x60] sm:$0xff] 0.0
        %276 = vst [vmem:[#allocation2 + $0x68] sm:$0xff] 0.0
        %277 = vst [vmem:[#allocation2 + $0x70] sm:$0xff] 0.0
        %278 = vst [vmem:[#allocation2 + $0x78] sm:$0xff] 0.0
        %279 = vst [vmem:[#allocation2 + $0x80] sm:$0xff] 0.0
        %280 = vst [vmem:[#allocation2 + $0x88] sm:$0xff] 0.0
        %281 = vst [vmem:[#allocation2 + $0x90] sm:$0xff] 0.0
        %282 = vst [vmem:[#allocation2 + $0x98] sm:$0xff] 0.0
        %283 = vst [vmem:[#allocation2 + $0xa0] sm:$0xff] 0.0
        %284 = vst [vmem:[#allocation2 + $0xa8] sm:$0xff] 0.0
        %285 = vst [vmem:[#allocation2 + $0xb0] sm:$0xff] 0.0
        %286 = vst [vmem:[#allocation2 + $0xb8] sm:$0xff] 0.0
        %287 = vst [vmem:[#allocation2 + $0xc0] sm:$0xff] 0.0
        %288 = vst [vmem:[#allocation2 + $0xc8] sm:$0xff] 0.0
        %289 = vst [vmem:[#allocation2 + $0xd0] sm:$0xff] 0.0
        %290 = vst [vmem:[#allocation2 + $0xd8] sm:$0xff] 0.0
        %291 = vst [vmem:[#allocation2 + $0xe0] sm:$0xff] 0.0
        %292 = vst [vmem:[#allocation2 + $0xe8] sm:$0xff] 0.0
        %293 = vst [vmem:[#allocation2 + $0xf0] sm:$0xff] 0.0
        %294 = vst [vmem:[#allocation2 + $0xf8] sm:$0xff] 0.0
      $region36: #{_lambda_.3} parent=31 // pred_fallthru
        _
      %v295 = vld [vmem:[#allocation2] sm:$0xff]
      %v296 = vld [vmem:[#allocation2 + $0x8] sm:$0xff]
      %v297 = vld [vmem:[#allocation2 + $0x10] sm:$0xff]
      %v298 = vld [vmem:[#allocation2 + $0x18] sm:$0xff]
      %v299 = vld [vmem:[#allocation2 + $0x20] sm:$0xff]
      %v300 = vld [vmem:[#allocation2 + $0x28] sm:$0xff]
      %v301 = vld [vmem:[#allocation2 + $0x30] sm:$0xff]
      %v302 = vld [vmem:[#allocation2 + $0x38] sm:$0xff]
      %v303 = vld [vmem:[#allocation2 + $0x40] sm:$0xff]
      %v304 = vld [vmem:[#allocation2 + $0x48] sm:$0xff]
      %v305 = vld [vmem:[#allocation2 + $0x50] sm:$0xff]
      %v306 = vld [vmem:[#allocation2 + $0x58] sm:$0xff]
      %v307 = vld [vmem:[#allocation2 + $0x60] sm:$0xff]
      %v308 = vld [vmem:[#allocation2 + $0x68] sm:$0xff]
      %v309 = vld [vmem:[#allocation2 + $0x70] sm:$0xff]
      %v310 = vld [vmem:[#allocation2 + $0x78] sm:$0xff]
      %v311 = vld [vmem:[#allocation2 + $0x80] sm:$0xff]
      %v312 = vld [vmem:[#allocation2 + $0x88] sm:$0xff]
      %v313 = vld [vmem:[#allocation2 + $0x90] sm:$0xff]
      %v314 = vld [vmem:[#allocation2 + $0x98] sm:$0xff]
      %v315 = vld [vmem:[#allocation2 + $0xa0] sm:$0xff]
      %v316 = vld [vmem:[#allocation2 + $0xa8] sm:$0xff]
      %v317 = vld [vmem:[#allocation2 + $0xb0] sm:$0xff]
      %v318 = vld [vmem:[#allocation2 + $0xb8] sm:$0xff]
      %v319 = vld [vmem:[#allocation2 + $0xc0] sm:$0xff]
      %v320 = vld [vmem:[#allocation2 + $0xc8] sm:$0xff]
      %v321 = vld [vmem:[#allocation2 + $0xd0] sm:$0xff]
      %v322 = vld [vmem:[#allocation2 + $0xd8] sm:$0xff]
      %v323 = vld [vmem:[#allocation2 + $0xe0] sm:$0xff]
      %v324 = vld [vmem:[#allocation2 + $0xe8] sm:$0xff]
      %v325 = vld [vmem:[#allocation2 + $0xf0] sm:$0xff]
      %v326 = vld [vmem:[#allocation2 + $0xf8] sm:$0xff]
      %v327 = vld [vmem:[%s236] sm:$0xf]
      %v328 = vld [vmem:[%s236 + $0x4] sm:$0xf]
      %v329 = vld [vmem:[%s236 + $0x8] sm:$0xf]
      %v330 = vld [vmem:[%s236 + $0xc] sm:$0xf]
      %v331 = vld [vmem:[%s236 + $0x10] sm:$0xf]
      %v332 = vld [vmem:[%s236 + $0x14] sm:$0xf]
      %v333 = vld [vmem:[%s236 + $0x18] sm:$0xf]
      %v334 = vld [vmem:[%s236 + $0x1c] sm:$0xf]
      %v335 = vld [vmem:[%s236 + $0x20] sm:$0xf]
      %v336 = vld [vmem:[%s236 + $0x24] sm:$0xf]
      %v337 = vld [vmem:[%s236 + $0x28] sm:$0xf]
      %v338 = vld [vmem:[%s236 + $0x2c] sm:$0xf]
      %v339 = vld [vmem:[%s236 + $0x30] sm:$0xf]
      %v340 = vld [vmem:[%s236 + $0x34] sm:$0xf]
      %v341 = vld [vmem:[%s236 + $0x38] sm:$0xf]
      %v342 = vld [vmem:[%s236 + $0x3c] sm:$0xf]
      %v343 = vld [vmem:[%s236 + $0x40] sm:$0xf]
      %v344 = vld [vmem:[%s236 + $0x44] sm:$0xf]
      %v345 = vld [vmem:[%s236 + $0x48] sm:$0xf]
      %v346 = vld [vmem:[%s236 + $0x4c] sm:$0xf]
      %v347 = vld [vmem:[%s236 + $0x50] sm:$0xf]
      %v348 = vld [vmem:[%s236 + $0x54] sm:$0xf]
      %v349 = vld [vmem:[%s236 + $0x58] sm:$0xf]
      %v350 = vld [vmem:[%s236 + $0x5c] sm:$0xf]
      %v351 = vld [vmem:[%s236 + $0x60] sm:$0xf]
      %v352 = vld [vmem:[%s236 + $0x64] sm:$0xf]
      %v353 = vld [vmem:[%s236 + $0x68] sm:$0xf]
      %v354 = vld [vmem:[%s236 + $0x6c] sm:$0xf]
      %v355 = vld [vmem:[%s236 + $0x70] sm:$0xf]
      %v356 = vld [vmem:[%s236 + $0x74] sm:$0xf]
      %v357 = vld [vmem:[%s236 + $0x78] sm:$0xf]
      %v358 = vld [vmem:[%s236 + $0x7c] sm:$0xf]
      %v359 = vld [vmem:[%s245] sm:$0xf]
      %v360 = vld [vmem:[%s245 + $0x4] sm:$0xf]
      %v361 = vld [vmem:[%s245 + $0x8] sm:$0xf]
      %v362 = vld [vmem:[%s245 + $0xc] sm:$0xf]
      %v363 = vld [vmem:[%s245 + $0x10] sm:$0xf]
      %v364 = vld [vmem:[%s245 + $0x14] sm:$0xf]
      %v365 = vld [vmem:[%s245 + $0x18] sm:$0xf]
      %v366 = vld [vmem:[%s245 + $0x1c] sm:$0xf]
      %v367 = vld [vmem:[%s245 + $0x20] sm:$0xf]
      %v368 = vld [vmem:[%s245 + $0x24] sm:$0xf]
      %v369 = vld [vmem:[%s245 + $0x28] sm:$0xf]
      %v370 = vld [vmem:[%s245 + $0x2c] sm:$0xf]
      %v371 = vld [vmem:[%s245 + $0x30] sm:$0xf]
      %v372 = vld [vmem:[%s245 + $0x34] sm:$0xf]
      %v373 = vld [vmem:[%s245 + $0x38] sm:$0xf]
      %v374 = vld [vmem:[%s245 + $0x3c] sm:$0xf]
      %v407 = vunpack.c.l.b16 %v327
      %v408 = vunpack.c.l.b16 %v328
      %v409 = vunpack.c.l.b16 %v329
      %v410 = vunpack.c.l.b16 %v330
      %v411 = vunpack.c.l.b16 %v331
      %v412 = vunpack.c.l.b16 %v332
      %v413 = vunpack.c.l.b16 %v333
      %v414 = vunpack.c.l.b16 %v334
      %v415 = vunpack.c.l.b16 %v335
      %v416 = vunpack.c.l.b16 %v336
      %v417 = vunpack.c.l.b16 %v337
      %v418 = vunpack.c.l.b16 %v338
      %v419 = vunpack.c.l.b16 %v339
      %v420 = vunpack.c.l.b16 %v340
      %v421 = vunpack.c.l.b16 %v341
      %v422 = vunpack.c.l.b16 %v342
      %v423 = vunpack.c.l.b16 %v343
      %v424 = vunpack.c.l.b16 %v344
      %v425 = vunpack.c.l.b16 %v345
      %v426 = vunpack.c.l.b16 %v346
      %v427 = vunpack.c.l.b16 %v347
      %v428 = vunpack.c.l.b16 %v348
      %v429 = vunpack.c.l.b16 %v349
      %v430 = vunpack.c.l.b16 %v350
      %v431 = vunpack.c.l.b16 %v351
      %v432 = vunpack.c.l.b16 %v352
      %v433 = vunpack.c.l.b16 %v353
      %v434 = vunpack.c.l.b16 %v354
      %v435 = vunpack.c.l.b16 %v355
      %v436 = vunpack.c.l.b16 %v356
      %v437 = vunpack.c.l.b16 %v357
      %v438 = vunpack.c.l.b16 %v358
      %v439 = vpack.c.b16 %v408, %v407
      %v440 = vpack.c.b16 %v410, %v409
      %v441 = vpack.c.b16 %v412, %v411
      %v442 = vpack.c.b16 %v414, %v413
      %v443 = vpack.c.b16 %v416, %v415
      %v444 = vpack.c.b16 %v418, %v417
      %v445 = vpack.c.b16 %v420, %v419
      %v446 = vpack.c.b16 %v422, %v421
      %v447 = vpack.c.b16 %v424, %v423
      %v448 = vpack.c.b16 %v426, %v425
      %v449 = vpack.c.b16 %v428, %v427
      %v450 = vpack.c.b16 %v430, %v429
      %v451 = vpack.c.b16 %v432, %v431
      %v452 = vpack.c.b16 %v434, %v433
      %v453 = vpack.c.b16 %v436, %v435
      %v454 = vpack.c.b16 %v438, %v437
      %v487 = vunpack.c.l.b16 %v359
      %v488 = vunpack.c.l.b16 %v360
      %v489 = vunpack.c.l.b16 %v361
      %v490 = vunpack.c.l.b16 %v362
      %v491 = vunpack.c.l.b16 %v363
      %v492 = vunpack.c.l.b16 %v364
      %v493 = vunpack.c.l.b16 %v365
      %v494 = vunpack.c.l.b16 %v366
      %v495 = vunpack.c.l.b16 %v367
      %v496 = vunpack.c.l.b16 %v368
      %v497 = vunpack.c.l.b16 %v369
      %v498 = vunpack.c.l.b16 %v370
      %v499 = vunpack.c.l.b16 %v371
      %v500 = vunpack.c.l.b16 %v372
      %v501 = vunpack.c.l.b16 %v373
      %v502 = vunpack.c.l.b16 %v374
      %v503 = vpack.c.b16 %v488, %v487
      %v504 = vpack.c.b16 %v490, %v489
      %v505 = vpack.c.b16 %v492, %v491
      %v506 = vpack.c.b16 %v494, %v493
      %v507 = vpack.c.b16 %v496, %v495
      %v508 = vpack.c.b16 %v498, %v497
      %v509 = vpack.c.b16 %v500, %v499
      %v510 = vpack.c.b16 %v502, %v501
      %519 = vmatpush.bf16.msra.mxu0 %v510
      %520 = vmatpush.bf16.msra.mxu0 %v509
      %521 = vmatpush.bf16.msra.mxu0 %v508
      %522 = vmatpush.bf16.msra.mxu0 %v507
      %523 = vmatpush.bf16.msra.mxu0 %v506
      %524 = vmatpush.bf16.msra.mxu0 %v505
      %525 = vmatpush.bf16.msra.mxu0 %v504
      %526 = vmatpush.bf16.msra.mxu0 %v503
      %527 = vmatmul.bf16.gmra.mxu0 %v439
      %v528 = vpop.f32.mrf.mxu0
      %v529 = vadd.f32 0.0, %v528
      %v530 = vpop.f32.mrf.mxu0
      %v531 = vadd.f32 0.0, %v530
      %532 = vmatmul.bf16.gmra.mxu0 %v440
      %v533 = vpop.f32.mrf.mxu0
      %v534 = vadd.f32 0.0, %v533
      %v535 = vpop.f32.mrf.mxu0
      %v536 = vadd.f32 0.0, %v535
      %537 = vmatmul.bf16.gmra.mxu0 %v441
      %v538 = vpop.f32.mrf.mxu0
      %v539 = vadd.f32 0.0, %v538
      %v540 = vpop.f32.mrf.mxu0
      %v541 = vadd.f32 0.0, %v540
      %542 = vmatmul.bf16.gmra.mxu0 %v442
      %v543 = vpop.f32.mrf.mxu0
      %v544 = vadd.f32 0.0, %v543
      %v545 = vpop.f32.mrf.mxu0
      %v546 = vadd.f32 0.0, %v545
      %547 = vmatmul.bf16.gmra.mxu0 %v443
      %v548 = vpop.f32.mrf.mxu0
      %v549 = vadd.f32 0.0, %v548
      %v550 = vpop.f32.mrf.mxu0
      %v551 = vadd.f32 0.0, %v550
      %552 = vmatmul.bf16.gmra.mxu0 %v444
      %v553 = vpop.f32.mrf.mxu0
      %v554 = vadd.f32 0.0, %v553
      %v555 = vpop.f32.mrf.mxu0
      %v556 = vadd.f32 0.0, %v555
      %557 = vmatmul.bf16.gmra.mxu0 %v445
      %v558 = vpop.f32.mrf.mxu0
      %v559 = vadd.f32 0.0, %v558
      %v560 = vpop.f32.mrf.mxu0
      %v561 = vadd.f32 0.0, %v560
      %562 = vmatmul.bf16.gmra.mxu0 %v446
      %v563 = vpop.f32.mrf.mxu0
      %v564 = vadd.f32 0.0, %v563
      %v565 = vpop.f32.mrf.mxu0
      %v566 = vadd.f32 0.0, %v565
      %567 = vmatmul.bf16.gmra.mxu0 %v447
      %v568 = vpop.f32.mrf.mxu0
      %v569 = vadd.f32 0.0, %v568
      %v570 = vpop.f32.mrf.mxu0
      %v571 = vadd.f32 0.0, %v570
      %572 = vmatmul.bf16.gmra.mxu0 %v448
      %v573 = vpop.f32.mrf.mxu0
      %v574 = vadd.f32 0.0, %v573
      %v575 = vpop.f32.mrf.mxu0
      %v576 = vadd.f32 0.0, %v575
      %577 = vmatmul.bf16.gmra.mxu0 %v449
      %v578 = vpop.f32.mrf.mxu0
      %v579 = vadd.f32 0.0, %v578
      %v580 = vpop.f32.mrf.mxu0
      %v581 = vadd.f32 0.0, %v580
      %582 = vmatmul.bf16.gmra.mxu0 %v450
      %v583 = vpop.f32.mrf.mxu0
      %v584 = vadd.f32 0.0, %v583
      %v585 = vpop.f32.mrf.mxu0
      %v586 = vadd.f32 0.0, %v585
      %587 = vmatmul.bf16.gmra.mxu0 %v451
      %v588 = vpop.f32.mrf.mxu0
      %v589 = vadd.f32 0.0, %v588
      %v590 = vpop.f32.mrf.mxu0
      %v591 = vadd.f32 0.0, %v590
      %592 = vmatmul.bf16.gmra.mxu0 %v452
      %v593 = vpop.f32.mrf.mxu0
      %v594 = vadd.f32 0.0, %v593
      %v595 = vpop.f32.mrf.mxu0
      %v596 = vadd.f32 0.0, %v595
      %597 = vmatmul.bf16.gmra.mxu0 %v453
      %v598 = vpop.f32.mrf.mxu0
      %v599 = vadd.f32 0.0, %v598
      %v600 = vpop.f32.mrf.mxu0
      %v601 = vadd.f32 0.0, %v600
      %602 = vmatmul.bf16.gmra.mxu0 %v454
      %v603 = vpop.f32.mrf.mxu0
      %v604 = vadd.f32 0.0, %v603
      %v605 = vpop.f32.mrf.mxu0
      %v606 = vadd.f32 0.0, %v605
      %607 = vdwg.mxu0
      %v608 = vadd.f32 %v295, %v529
      %v609 = vadd.f32 %v296, %v531
      %v610 = vadd.f32 %v297, %v534
      %v611 = vadd.f32 %v298, %v536
      %v612 = vadd.f32 %v299, %v539
      %v613 = vadd.f32 %v300, %v541
      %v614 = vadd.f32 %v301, %v544
      %v615 = vadd.f32 %v302, %v546
      %v616 = vadd.f32 %v303, %v549
      %v617 = vadd.f32 %v304, %v551
      %v618 = vadd.f32 %v305, %v554
      %v619 = vadd.f32 %v306, %v556
      %v620 = vadd.f32 %v307, %v559
      %v621 = vadd.f32 %v308, %v561
      %v622 = vadd.f32 %v309, %v564
      %v623 = vadd.f32 %v310, %v566
      %v624 = vadd.f32 %v311, %v569
      %v625 = vadd.f32 %v312, %v571
      %v626 = vadd.f32 %v313, %v574
      %v627 = vadd.f32 %v314, %v576
      %v628 = vadd.f32 %v315, %v579
      %v629 = vadd.f32 %v316, %v581
      %v630 = vadd.f32 %v317, %v584
      %v631 = vadd.f32 %v318, %v586
      %v632 = vadd.f32 %v319, %v589
      %v633 = vadd.f32 %v320, %v591
      %v634 = vadd.f32 %v321, %v594
      %v635 = vadd.f32 %v322, %v596
      %v636 = vadd.f32 %v323, %v599
      %v637 = vadd.f32 %v324, %v601
      %v638 = vadd.f32 %v325, %v604
      %v639 = vadd.f32 %v326, %v606
      %640 = vst [vmem:[#allocation2] sm:$0xff] %v608
      %641 = vst [vmem:[#allocation2 + $0x8] sm:$0xff] %v609
      %642 = vst [vmem:[#allocation2 + $0x10] sm:$0xff] %v610
      %643 = vst [vmem:[#allocation2 + $0x18] sm:$0xff] %v611
      %644 = vst [vmem:[#allocation2 + $0x20] sm:$0xff] %v612
      %645 = vst [vmem:[#allocation2 + $0x28] sm:$0xff] %v613
      %646 = vst [vmem:[#allocation2 + $0x30] sm:$0xff] %v614
      %647 = vst [vmem:[#allocation2 + $0x38] sm:$0xff] %v615
      %648 = vst [vmem:[#allocation2 + $0x40] sm:$0xff] %v616
      %649 = vst [vmem:[#allocation2 + $0x48] sm:$0xff] %v617
      %650 = vst [vmem:[#allocation2 + $0x50] sm:$0xff] %v618
      %651 = vst [vmem:[#allocation2 + $0x58] sm:$0xff] %v619
      %652 = vst [vmem:[#allocation2 + $0x60] sm:$0xff] %v620
      %653 = vst [vmem:[#allocation2 + $0x68] sm:$0xff] %v621
      %654 = vst [vmem:[#allocation2 + $0x70] sm:$0xff] %v622
      %655 = vst [vmem:[#allocation2 + $0x78] sm:$0xff] %v623
      %656 = vst [vmem:[#allocation2 + $0x80] sm:$0xff] %v624
      %657 = vst [vmem:[#allocation2 + $0x88] sm:$0xff] %v625
      %658 = vst [vmem:[#allocation2 + $0x90] sm:$0xff] %v626
      %659 = vst [vmem:[#allocation2 + $0x98] sm:$0xff] %v627
      %660 = vst [vmem:[#allocation2 + $0xa0] sm:$0xff] %v628
      %661 = vst [vmem:[#allocation2 + $0xa8] sm:$0xff] %v629
      %662 = vst [vmem:[#allocation2 + $0xb0] sm:$0xff] %v630
      %663 = vst [vmem:[#allocation2 + $0xb8] sm:$0xff] %v631
      %664 = vst [vmem:[#allocation2 + $0xc0] sm:$0xff] %v632
      %665 = vst [vmem:[#allocation2 + $0xc8] sm:$0xff] %v633
      %666 = vst [vmem:[#allocation2 + $0xd0] sm:$0xff] %v634
      %667 = vst [vmem:[#allocation2 + $0xd8] sm:$0xff] %v635
      %668 = vst [vmem:[#allocation2 + $0xe0] sm:$0xff] %v636
      %669 = vst [vmem:[#allocation2 + $0xe8] sm:$0xff] %v637
      %670 = vst [vmem:[#allocation2 + $0xf0] sm:$0xff] %v638
      %671 = vst [vmem:[#allocation2 + $0xf8] sm:$0xff] %v639
      // Predicated region
      $region37: #{_lambda_.3} parent=31 // pred_check
        %p672 = pneg %p259
      $region38: #{_lambda_.3} parent=31 // pred_check_branch
        %674 = sbr.rel (%p672) target = $region40
      $region39: #{_lambda_.3} parent=31 // pred_region
        %v675 = vld [vmem:[#allocation2] sm:$0xff]
        %v676 = vld [vmem:[#allocation2 + $0x8] sm:$0xff]
        %v677 = vld [vmem:[#allocation2 + $0x10] sm:$0xff]
        %v678 = vld [vmem:[#allocation2 + $0x18] sm:$0xff]
        %v679 = vld [vmem:[#allocation2 + $0x20] sm:$0xff]
        %v680 = vld [vmem:[#allocation2 + $0x28] sm:$0xff]
        %v681 = vld [vmem:[#allocation2 + $0x30] sm:$0xff]
        %v682 = vld [vmem:[#allocation2 + $0x38] sm:$0xff]
        %v683 = vld [vmem:[#allocation2 + $0x40] sm:$0xff]
        %v684 = vld [vmem:[#allocation2 + $0x48] sm:$0xff]
        %v685 = vld [vmem:[#allocation2 + $0x50] sm:$0xff]
        %v686 = vld [vmem:[#allocation2 + $0x58] sm:$0xff]
        %v687 = vld [vmem:[#allocation2 + $0x60] sm:$0xff]
        %v688 = vld [vmem:[#allocation2 + $0x68] sm:$0xff]
        %v689 = vld [vmem:[#allocation2 + $0x70] sm:$0xff]
        %v690 = vld [vmem:[#allocation2 + $0x78] sm:$0xff]
        %v691 = vld [vmem:[#allocation2 + $0x80] sm:$0xff]
        %v692 = vld [vmem:[#allocation2 + $0x88] sm:$0xff]
        %v693 = vld [vmem:[#allocation2 + $0x90] sm:$0xff]
        %v694 = vld [vmem:[#allocation2 + $0x98] sm:$0xff]
        %v695 = vld [vmem:[#allocation2 + $0xa0] sm:$0xff]
        %v696 = vld [vmem:[#allocation2 + $0xa8] sm:$0xff]
        %v697 = vld [vmem:[#allocation2 + $0xb0] sm:$0xff]
        %v698 = vld [vmem:[#allocation2 + $0xb8] sm:$0xff]
        %v699 = vld [vmem:[#allocation2 + $0xc0] sm:$0xff]
        %v700 = vld [vmem:[#allocation2 + $0xc8] sm:$0xff]
        %v701 = vld [vmem:[#allocation2 + $0xd0] sm:$0xff]
        %v702 = vld [vmem:[#allocation2 + $0xd8] sm:$0xff]
        %v703 = vld [vmem:[#allocation2 + $0xe0] sm:$0xff]
        %v704 = vld [vmem:[#allocation2 + $0xe8] sm:$0xff]
        %v705 = vld [vmem:[#allocation2 + $0xf0] sm:$0xff]
        %v706 = vld [vmem:[#allocation2 + $0xf8] sm:$0xff]
        %v707 = vld [vmem:[%s249] sm:$0x1]
        %v709 = vperm.slane %v707, 0
        %v711 = vadd.f32 %v675, %v709
        %v712 = vadd.f32 %v676, %v709
        %v713 = vadd.f32 %v677, %v709
        %v714 = vadd.f32 %v678, %v709
        %v715 = vadd.f32 %v679, %v709
        %v716 = vadd.f32 %v680, %v709
        %v717 = vadd.f32 %v681, %v709
        %v718 = vadd.f32 %v682, %v709
        %v719 = vadd.f32 %v683, %v709
        %v720 = vadd.f32 %v684, %v709
        %v721 = vadd.f32 %v685, %v709
        %v722 = vadd.f32 %v686, %v709
        %v723 = vadd.f32 %v687, %v709
        %v724 = vadd.f32 %v688, %v709
        %v725 = vadd.f32 %v689, %v709
        %v726 = vadd.f32 %v690, %v709
        %v727 = vadd.f32 %v691, %v709
        %v728 = vadd.f32 %v692, %v709
        %v729 = vadd.f32 %v693, %v709
        %v730 = vadd.f32 %v694, %v709
        %v731 = vadd.f32 %v695, %v709
        %v732 = vadd.f32 %v696, %v709
        %v733 = vadd.f32 %v697, %v709
        %v734 = vadd.f32 %v698, %v709
        %v735 = vadd.f32 %v699, %v709
        %v736 = vadd.f32 %v700, %v709
        %v737 = vadd.f32 %v701, %v709
        %v738 = vadd.f32 %v702, %v709
        %v739 = vadd.f32 %v703, %v709
        %v740 = vadd.f32 %v704, %v709
        %v741 = vadd.f32 %v705, %v709
        %v742 = vadd.f32 %v706, %v709
        %v743 = vmax.f32 %v711, 0.0
        %v744 = vmax.f32 %v712, 0.0
        %v745 = vmax.f32 %v713, 0.0
        %v746 = vmax.f32 %v714, 0.0
        %v747 = vmax.f32 %v715, 0.0
        %v748 = vmax.f32 %v716, 0.0
        %v749 = vmax.f32 %v717, 0.0
        %v750 = vmax.f32 %v718, 0.0
        %v751 = vmax.f32 %v719, 0.0
        %v752 = vmax.f32 %v720, 0.0
        %v753 = vmax.f32 %v721, 0.0
        %v754 = vmax.f32 %v722, 0.0
        %v755 = vmax.f32 %v723, 0.0
        %v756 = vmax.f32 %v724, 0.0
        %v757 = vmax.f32 %v725, 0.0
        %v758 = vmax.f32 %v726, 0.0
        %v759 = vmax.f32 %v727, 0.0
        %v760 = vmax.f32 %v728, 0.0
        %v761 = vmax.f32 %v729, 0.0
        %v762 = vmax.f32 %v730, 0.0
        %v763 = vmax.f32 %v731, 0.0
        %v764 = vmax.f32 %v732, 0.0
        %v765 = vmax.f32 %v733, 0.0
        %v766 = vmax.f32 %v734, 0.0
        %v767 = vmax.f32 %v735, 0.0
        %v768 = vmax.f32 %v736, 0.0
        %v769 = vmax.f32 %v737, 0.0
        %v770 = vmax.f32 %v738, 0.0
        %v771 = vmax.f32 %v739, 0.0
        %v772 = vmax.f32 %v740, 0.0
        %v773 = vmax.f32 %v741, 0.0
        %v774 = vmax.f32 %v742, 0.0
        %v775 = vpack.c.bf16 %v743, %v743
        %v776 = vpack.c.bf16 %v744, %v744
        %v777 = vpack.c.bf16 %v745, %v745
        %v778 = vpack.c.bf16 %v746, %v746
        %v779 = vpack.c.bf16 %v747, %v747
        %v780 = vpack.c.bf16 %v748, %v748
        %v781 = vpack.c.bf16 %v749, %v749
        %v782 = vpack.c.bf16 %v750, %v750
        %v783 = vpack.c.bf16 %v751, %v751
        %v784 = vpack.c.bf16 %v752, %v752
        %v785 = vpack.c.bf16 %v753, %v753
        %v786 = vpack.c.bf16 %v754, %v754
        %v787 = vpack.c.bf16 %v755, %v755
        %v788 = vpack.c.bf16 %v756, %v756
        %v789 = vpack.c.bf16 %v757, %v757
        %v790 = vpack.c.bf16 %v758, %v758
        %v791 = vpack.c.bf16 %v759, %v759
        %v792 = vpack.c.bf16 %v760, %v760
        %v793 = vpack.c.bf16 %v761, %v761
        %v794 = vpack.c.bf16 %v762, %v762
        %v795 = vpack.c.bf16 %v763, %v763
        %v796 = vpack.c.bf16 %v764, %v764
        %v797 = vpack.c.bf16 %v765, %v765
        %v798 = vpack.c.bf16 %v766, %v766
        %v799 = vpack.c.bf16 %v767, %v767
        %v800 = vpack.c.bf16 %v768, %v768
        %v801 = vpack.c.bf16 %v769, %v769
        %v802 = vpack.c.bf16 %v770, %v770
        %v803 = vpack.c.bf16 %v771, %v771
        %v804 = vpack.c.bf16 %v772, %v772
        %v805 = vpack.c.bf16 %v773, %v773
        %v806 = vpack.c.bf16 %v774, %v774
        %807 = vst [vmem:[%s257] sm:$0xf] %v775
        %808 = vst [vmem:[%s257 + $0x4] sm:$0xf] %v776
        %809 = vst [vmem:[%s257 + $0x8] sm:$0xf] %v777
        %810 = vst [vmem:[%s257 + $0xc] sm:$0xf] %v778
        %811 = vst [vmem:[%s257 + $0x10] sm:$0xf] %v779
        %812 = vst [vmem:[%s257 + $0x14] sm:$0xf] %v780
        %813 = vst [vmem:[%s257 + $0x18] sm:$0xf] %v781
        %814 = vst [vmem:[%s257 + $0x1c] sm:$0xf] %v782
        %815 = vst [vmem:[%s257 + $0x20] sm:$0xf] %v783
        %816 = vst [vmem:[%s257 + $0x24] sm:$0xf] %v784
        %817 = vst [vmem:[%s257 + $0x28] sm:$0xf] %v785
        %818 = vst [vmem:[%s257 + $0x2c] sm:$0xf] %v786
        %819 = vst [vmem:[%s257 + $0x30] sm:$0xf] %v787
        %820 = vst [vmem:[%s257 + $0x34] sm:$0xf] %v788
        %821 = vst [vmem:[%s257 + $0x38] sm:$0xf] %v789
        %822 = vst [vmem:[%s257 + $0x3c] sm:$0xf] %v790
        %823 = vst [vmem:[%s257 + $0x40] sm:$0xf] %v791
        %824 = vst [vmem:[%s257 + $0x44] sm:$0xf] %v792
        %825 = vst [vmem:[%s257 + $0x48] sm:$0xf] %v793
        %826 = vst [vmem:[%s257 + $0x4c] sm:$0xf] %v794
        %827 = vst [vmem:[%s257 + $0x50] sm:$0xf] %v795
        %828 = vst [vmem:[%s257 + $0x54] sm:$0xf] %v796
        %829 = vst [vmem:[%s257 + $0x58] sm:$0xf] %v797
        %830 = vst [vmem:[%s257 + $0x5c] sm:$0xf] %v798
        %831 = vst [vmem:[%s257 + $0x60] sm:$0xf] %v799
        %832 = vst [vmem:[%s257 + $0x64] sm:$0xf] %v800
        %833 = vst [vmem:[%s257 + $0x68] sm:$0xf] %v801
        %834 = vst [vmem:[%s257 + $0x6c] sm:$0xf] %v802
        %835 = vst [vmem:[%s257 + $0x70] sm:$0xf] %v803
        %836 = vst [vmem:[%s257 + $0x74] sm:$0xf] %v804
        %837 = vst [vmem:[%s257 + $0x78] sm:$0xf] %v805
        %838 = vst [vmem:[%s257 + $0x7c] sm:$0xf] %v806
      $region40: #{_lambda_.3} parent=31 // pred_fallthru
        _
      %s839 = smul.u32 32, %s19
      %p840 = scmp.lt.s32.totalorder %s839, 63
      %s841 = scalar_select %p840, %s839, 63
      %p842 = scmp.lt.s32.totalorder %s20, 0
      %s843 = scalar_select %p842, %s20, 0
      %s844 = sadd.s32 %s843, %s841
      %s845 = smul.addr %s844, 4
      %s846 = scalar_lea.vmem %s3, %s845
      // Predicated region
      $region41: #{_lambda_.3} parent=31 // pred_check
        %p847 = pneg %p135
      $region42: #{_lambda_.3} parent=31 // pred_check_branch
        %849 = sbr.rel (%p847) target = $region44
      $region43: #{_lambda_.3} parent=31 // pred_region
        %s850 = smul.u32 32, %s19
      $region44: #{_lambda_.3} parent=31 // pred_fallthru
        _
    $region32: #{_lambda_.3} parent=5 // pred_fallthru
      _
    %p851 = scmp.le.s32.totalorder 2, %s9
    // Predicated region
    $region45: #{_lambda_.3} parent=5 // pred_check
      %p852 = pneg %p851
    $region46: #{_lambda_.3} parent=5 // pred_check_branch
      %854 = sbr.rel (%p852) target = $region48
    $region47: #{_lambda_.3} parent=5 // pred_region
      %s855 = ssub.s32 %s9, 2
      // Predicated region
      $region49: #{_lambda_.3} parent=47 // pred_check
        %p856 = pneg %p141
      $region50: #{_lambda_.3} parent=47 // pred_check_branch
        %858 = sbr.rel (%p856) target = $region52
      $region51: #{_lambda_.3} parent=47 // pred_region
        %s859 = smul.u32 32, %s22
        %p860 = scmp.lt.s32.totalorder %s859, 63
        %s861 = scalar_select %p860, %s859, 63
        %p862 = scmp.lt.s32.totalorder %s23, 0
        %s863 = scalar_select %p862, %s23, 0
        %s864 = sadd.s32 %s863, %s861
        %s865 = smul.addr %s864, 4
        %s866 = scalar_lea.vmem %s3, %s865
      $region52: #{_lambda_.3} parent=47 // pred_fallthru
        _
    $region48: #{_lambda_.3} parent=5 // pred_fallthru
      _
  $region6: #{_lambda_.3} parent=0 // loop_footer
    %s13 = sadd.s32 1, %s9
  $region7: #{_lambda_.3} parent=0 // loop_footer_branch
    %8 = sbr.rel target = $region3
  $region8: #{_lambda_.3} parent=0 // loop_exit
    _

// kernel: _lambda_.5
$region0: #{_lambda_.5}
  #allocation0 [shape = 'u32[]', space=smem, size = 0x4, offset = 0x4, fixed_abs, tag = 'smem constant byte address 0x4 - core index']
  #allocation1 [shape = 'u32[72,128]{1,0:T(1,128)}', space=vmem, size = 0x9000, scoped, tag = 'internal scratch']
  #allocation2 [shape = 'f32[256,128]{1,0:T(8,128)}', space=vmem, size = 0x20000, scoped, tag = 'scratch operand']
  %s0 = inlined_call_operand.vmem [shape: bf16[512,128], index: 0, kind: input, shape index: {}]
  %s1 = inlined_call_operand.vmem [shape: bf16[128,128], index: 1, kind: input, shape index: {}]
  %s2 = inlined_call_operand.vmem [shape: f32[1,128], index: 2, kind: input, shape index: {}]
  %s3 = inlined_call_operand.vmem [shape: f32[512,128], index: 3, kind: input, shape index: {}]
  %s4 = inlined_call_operand.vmem [shape: f32[512,128], index: 4, kind: output, shape index: {}]
  %s5 = sld [smem:[#allocation0]]
  $region57: #{_lambda_.5} parent=0
    _
  %s7 = ssub.s32 1, %s5
  %s8 = scalar_select 0, %s7, %s5
  loop: start=0, step=1, limit=4
  $region2: #{_lambda_.5} parent=0 // loop_pre_header
    _
  $region3: #{_lambda_.5} parent=0 // loop_header
    %s10 = sphi 0, %s14
    %p11 = scmp.ge.s32.totalorder %s10, 4
    %s17 = sphi 0, %s36
    %s18 = sphi 0, %s32
    %s19 = sphi 0, %s28
    %s20 = sphi 0, %s17
    %s21 = sphi 0, %s18
    %s22 = sphi 0, %s19
    %s23 = sphi 0, %s20
    %s24 = sphi 0, %s21
    %s25 = sphi 0, %s22
    %s41 = sphi 0, %s43
    %s44 = sphi 0, %s41
    %s45 = sphi 0, %s44
    %s61 = sphi 0, %s45
    %s69 = sphi 0, %s71
    %s72 = sphi 0, %s69
    %s73 = sphi 0, %s72
    %s89 = sphi 0, %s73
    %s95 = sphi 0, %s97
    %s98 = sphi 0, %s95
    %s99 = sphi 0, %s98
    %s115 = sphi 0, %s99
    %s123 = sphi 0, %s125
    %s126 = sphi 0, %s123
    %s127 = sphi 0, %s126
    %s143 = sphi 0, %s127
    %s151 = sphi 0, %s153
    %s154 = sphi 0, %s151
    %s155 = sphi 0, %s154
    %s171 = sphi 0, %s155
  $region4: #{_lambda_.5} parent=0 // loop_header_branch
    %13 = sbr.rel (%p11) target = $region8
  $region5: #{_lambda_.5} parent=0 // loop_body
    %s15 = ssub.s32 %s10, 1
    %s16 = ssub.s32 %s10, 2
    %s26 = sadd.s32 1, %s19
    %p27 = scmp.ge.s32.totalorder %s26, 1
    %s28 = scalar_select %p27, 0, %s26
    %s29 = sadd.s32 1, %s18
    %s30 = scalar_select %p27, %s29, %s18
    %p31 = scmp.ge.s32.totalorder %s30, 1
    %s32 = scalar_select %p31, 0, %s30
    %s33 = sadd.s32 1, %s17
    %s34 = scalar_select %p31, %s33, %s17
    %p35 = scmp.ge.s32.totalorder %s34, 2
    %s36 = scalar_select %p35, 0, %s34
    %s37 = ssub.s32 %s17, %s36
    %s38 = ssub.s32 %s19, %s28
    %s39 = sor.u32 %s37, %s38
    %p40 = scmp.eq.s32.totalorder %s39, 0
    %s42 = sadd.s32 %s41, 1
    %s43 = scalar_select %p40, %s41, %s42
    %p46 = pneg %p40
    %p47 = scmp.eq.s32.totalorder %s10, 1
    %p48 = por %p46, %p47
    %p49 = scmp.ne.s32.totalorder %s41, %s44
    %p50 = scmp.eq.s32.totalorder %s10, 0
    %p51 = por %p49, %p50
    %p52 = scmp.ne.s32.totalorder %s41, %s44
    %p53 = scmp.eq.s32.totalorder %s15, 1
    %p54 = por %p52, %p53
    %p55 = scmp.ne.s32.totalorder %s44, %s45
    %p56 = scmp.eq.s32.totalorder %s15, 0
    %p57 = por %p55, %p56
    %p58 = scmp.ne.s32.totalorder %s44, %s45
    %p59 = scmp.eq.s32.totalorder %s16, 1
    %p60 = por %p58, %p59
    %p62 = scmp.ne.s32.totalorder %s45, %s61
    %p63 = scmp.eq.s32.totalorder %s16, 0
    %p64 = por %p62, %p63
    %s65 = ssub.s32 %s19, %s28
    %s66 = ssub.s32 %s18, %s32
    %s67 = sor.u32 %s65, %s66
    %p68 = scmp.eq.s32.totalorder %s67, 0
    %s70 = sadd.s32 %s69, 1
    %s71 = scalar_select %p68, %s69, %s70
    %p74 = pneg %p68
    %p75 = scmp.eq.s32.totalorder %s10, 1
    %p76 = por %p74, %p75
    %p77 = scmp.ne.s32.totalorder %s69, %s72
    %p78 = scmp.eq.s32.totalorder %s10, 0
    %p79 = por %p77, %p78
    %p80 = scmp.ne.s32.totalorder %s69, %s72
    %p81 = scmp.eq.s32.totalorder %s15, 1
    %p82 = por %p80, %p81
    %p83 = scmp.ne.s32.totalorder %s72, %s73
    %p84 = scmp.eq.s32.totalorder %s15, 0
    %p85 = por %p83, %p84
    %p86 = scmp.ne.s32.totalorder %s72, %s73
    %p87 = scmp.eq.s32.totalorder %s16, 1
    %p88 = por %p86, %p87
    %p90 = scmp.ne.s32.totalorder %s73, %s89
    %p91 = scmp.eq.s32.totalorder %s16, 0
    %p92 = por %p90, %p91
    %s93 = ssub.s32 %s18, %s32
    %p94 = scmp.eq.s32.totalorder %s93, 0
    %s96 = sadd.s32 %s95, 1
    %s97 = scalar_select %p94, %s95, %s96
    %p100 = pneg %p94
    %p101 = scmp.eq.s32.totalorder %s10, 1
    %p102 = por %p100, %p101
    %p103 = scmp.ne.s32.totalorder %s95, %s98
    %p104 = scmp.eq.s32.totalorder %s10, 0
    %p105 = por %p103, %p104
    %p106 = scmp.ne.s32.totalorder %s95, %s98
    %p107 = scmp.eq.s32.totalorder %s15, 1
    %p108 = por %p106, %p107
    %p109 = scmp.ne.s32.totalorder %s98, %s99
    %p110 = scmp.eq.s32.totalorder %s15, 0
    %p111 = por %p109, %p110
    %p112 = scmp.ne.s32.totalorder %s98, %s99
    %p113 = scmp.eq.s32.totalorder %s16, 1
    %p114 = por %p112, %p113
    %p116 = scmp.ne.s32.totalorder %s99, %s115
    %p117 = scmp.eq.s32.totalorder %s16, 0
    %p118 = por %p116, %p117
    %s119 = ssub.s32 %s17, %s36
    %s120 = ssub.s32 %s18, %s32
    %s121 = sor.u32 %s119, %s120
    %p122 = scmp.eq.s32.totalorder %s121, 0
    %s124 = sadd.s32 %s123, 1
    %s125 = scalar_select %p122, %s123, %s124
    %p128 = pneg %p122
    %p129 = scmp.eq.s32.totalorder %s10, 1
    %p130 = por %p128, %p129
    %p131 = scmp.ne.s32.totalorder %s123, %s126
    %p132 = scmp.eq.s32.totalorder %s10, 0
    %p133 = por %p131, %p132
    %p134 = scmp.ne.s32.totalorder %s123, %s126
    %p135 = scmp.eq.s32.totalorder %s15, 1
    %p136 = por %p134, %p135
    %p137 = scmp.ne.s32.totalorder %s126, %s127
    %p138 = scmp.eq.s32.totalorder %s15, 0
    %p139 = por %p137, %p138
    %p140 = scmp.ne.s32.totalorder %s126, %s127
    %p141 = scmp.eq.s32.totalorder %s16, 1
    %p142 = por %p140, %p141
    %p144 = scmp.ne.s32.totalorder %s127, %s143
    %p145 = scmp.eq.s32.totalorder %s16, 0
    %p146 = por %p144, %p145
    %s147 = ssub.s32 %s17, %s36
    %s148 = ssub.s32 %s18, %s32
    %s149 = sor.u32 %s147, %s148
    %p150 = scmp.eq.s32.totalorder %s149, 0
    %s152 = sadd.s32 %s151, 1
    %s153 = scalar_select %p150, %s151, %s152
    %p156 = pneg %p150
    %p157 = scmp.eq.s32.totalorder %s10, 1
    %p158 = por %p156, %p157
    %p159 = scmp.ne.s32.totalorder %s151, %s154
    %p160 = scmp.eq.s32.totalorder %s10, 0
    %p161 = por %p159, %p160
    %p162 = scmp.ne.s32.totalorder %s151, %s154
    %p163 = scmp.eq.s32.totalorder %s15, 1
    %p164 = por %p162, %p163
    %p165 = scmp.ne.s32.totalorder %s154, %s155
    %p166 = scmp.eq.s32.totalorder %s15, 0
    %p167 = por %p165, %p166
    %p168 = scmp.ne.s32.totalorder %s154, %s155
    %p169 = scmp.eq.s32.totalorder %s16, 1
    %p170 = por %p168, %p169
    %p172 = scmp.ne.s32.totalorder %s155, %s171
    %p173 = scmp.eq.s32.totalorder %s16, 0
    %p174 = por %p172, %p173
    %p175 = scmp.le.s32.totalorder 1, %s10
    %p176 = scmp.lt.s32.totalorder %s10, 3
    %p177 = pnand %p175, %p176
    %p178 = pneg %p177
    // Predicated region
    $region9: #{_lambda_.5} parent=5 // pred_check
      _
    $region10: #{_lambda_.5} parent=5 // pred_check_branch
      %180 = sbr.rel (%p177) target = $region12
    $region11: #{_lambda_.5} parent=5 // pred_region
      %s181 = ssub.s32 %s10, 1
      // Predicated region
      $region13: #{_lambda_.5} parent=11 // pred_check
        %p182 = pneg %p85
      $region14: #{_lambda_.5} parent=11 // pred_check_branch
        %184 = sbr.rel (%p182) target = $region16
      $region15: #{_lambda_.5} parent=11 // pred_region
        %s185 = smul.u32 16, %s22
        %p186 = scmp.lt.s32.totalorder %s185, 15
        %s187 = scalar_select %p186, %s185, 15
        %p188 = scmp.lt.s32.totalorder %s21, 0
        %s189 = scalar_select %p188, %s21, 0
        %s190 = sadd.s32 %s189, %s187
        %s191 = smul.addr %s190, 4
        %s192 = scalar_lea.vmem %s1, %s191
        %s193 = smul.u32 16, %s22
      $region16: #{_lambda_.5} parent=11 // pred_fallthru
        _
      // Predicated region
      $region17: #{_lambda_.5} parent=11 // pred_check
        %p194 = pneg %p111
      $region18: #{_lambda_.5} parent=11 // pred_check_branch
        %196 = sbr.rel (%p194) target = $region20
      $region19: #{_lambda_.5} parent=11 // pred_region
        %p197 = scmp.lt.s32.totalorder %s21, 0
        %s198 = scalar_select %p197, %s21, 0
        %s199 = scalar_lea.vmem %s2, %s198
      $region20: #{_lambda_.5} parent=11 // pred_fallthru
        _
    $region12: #{_lambda_.5} parent=5 // pred_fallthru
      _
    %p200 = scmp.lt.s32.totalorder %s10, 2
    // Predicated region
    $region21: #{_lambda_.5} parent=5 // pred_check
      %p201 = pneg %p200
    $region22: #{_lambda_.5} parent=5 // pred_check_branch
      %203 = sbr.rel (%p201) target = $region24
    $region23: #{_lambda_.5} parent=5 // pred_region
      // Predicated region
      $region25: #{_lambda_.5} parent=23 // pred_check
        %p204 = pneg %p51
      $region26: #{_lambda_.5} parent=23 // pred_check_branch
        %206 = sbr.rel (%p204) target = $region28
      $region27: #{_lambda_.5} parent=23 // pred_region
        %s207 = smul.u32 32, %s17
        %p208 = scmp.lt.s32.totalorder %s207, 63
        %s209 = scalar_select %p208, %s207, 63
        %p210 = scmp.lt.s32.totalorder %s19, 0
        %s211 = scalar_select %p210, %s19, 0
        %s212 = sadd.s32 %s211, %s209
        %s213 = smul.addr %s212, 4
        %s214 = scalar_lea.vmem %s0, %s213
        %s215 = smul.u32 32, %s17
      $region28: #{_lambda_.5} parent=23 // pred_fallthru
        _
      // Predicated region
      $region29: #{_lambda_.5} parent=23 // pred_check
        %p216 = pneg %p133
      $region30: #{_lambda_.5} parent=23 // pred_check_branch
        %218 = sbr.rel (%p216) target = $region32
      $region31: #{_lambda_.5} parent=23 // pred_region
        %s219 = smul.u32 32, %s17
        %p220 = scmp.lt.s32.totalorder %s219, 63
        %s221 = scalar_select %p220, %s219, 63
        %p222 = scmp.lt.s32.totalorder %s18, 0
        %s223 = scalar_select %p222, %s18, 0
        %s224 = sadd.s32 %s223, %s221
        %s225 = smul.addr %s224, 8
        %s226 = scalar_lea.vmem %s3, %s225
        %s227 = smul.u32 32, %s17
      $region32: #{_lambda_.5} parent=23 // pred_fallthru
        _
    $region24: #{_lambda_.5} parent=5 // pred_fallthru
      _
    %p228 = scmp.le.s32.totalorder 1, %s10
    %p229 = scmp.lt.s32.totalorder %s10, 3
    %p230 = pnand %p228, %p229
    %p231 = pneg %p230
    // Predicated region
    $region33: #{_lambda_.5} parent=5 // pred_check
      _
    $region34: #{_lambda_.5} parent=5 // pred_check_branch
      %233 = sbr.rel (%p230) target = $region36
    $region35: #{_lambda_.5} parent=5 // pred_region
      %s234 = ssub.s32 %s10, 1
      %s235 = smul.u32 32, %s20
      %p236 = scmp.lt.s32.totalorder %s235, 63
      %s237 = scalar_select %p236, %s235, 63
      %p238 = scmp.lt.s32.totalorder %s22, 0
      %s239 = scalar_select %p238, %s22, 0
      %s240 = sadd.s32 %s239, %s237
      %s241 = smul.addr %s240, 4
      %s242 = scalar_lea.vmem %s0, %s241
      %p243 = pneg %p57
      %p244 = pneg %p54
      %s245 = smul.u32 16, %s22
      %p246 = scmp.lt.s32.totalorder %s245, 15
      %s247 = scalar_select %p246, %s245, 15
      %p248 = scmp.lt.s32.totalorder %s21, 0
      %s249 = scalar_select %p248, %s21, 0
      %s250 = sadd.s32 %s249, %s247
      %s251 = smul.addr %s250, 4
      %s252 = scalar_lea.vmem %s1, %s251
      %p253 = pneg %p85
      %p254 = pneg %p82
      %p255 = scmp.lt.s32.totalorder %s21, 0
      %s256 = scalar_select %p255, %s21, 0
      %s257 = scalar_lea.vmem %s2, %s256
      %p258 = pneg %p111
      %p259 = pneg %p108
      %s260 = smul.u32 32, %s20
      %p261 = scmp.lt.s32.totalorder %s260, 63
      %s262 = scalar_select %p261, %s260, 63
      %p263 = scmp.lt.s32.totalorder %s21, 0
      %s264 = scalar_select %p263, %s21, 0
      %s265 = sadd.s32 %s264, %s262
      %s266 = smul.addr %s265, 8
      %s267 = scalar_lea.vmem %s3, %s266
      %p268 = pneg %p139
      %p269 = pneg %p136
      %p270 = pneg %p167
      %p271 = pneg %p164
      %s272 = smul.u32 32, %s20
      %p273 = scmp.lt.s32.totalorder %s272, 63
      %s274 = scalar_select %p273, %s272, 63
      %p275 = scmp.lt.s32.totalorder %s21, 0
      %s276 = scalar_select %p275, %s21, 0
      %s277 = sadd.s32 %s276, %s274
      %s278 = smul.addr %s277, 8
      %s279 = scalar_lea.vmem %s4, %s278
      %s280 = smul.u32 32, %s20
      %p281 = scmp.lt.s32.totalorder %s280, 63
      %s282 = scalar_select %p281, %s280, 63
      %p283 = scmp.lt.s32.totalorder %s22, 0
      %s284 = scalar_select %p283, %s22, 0
      %s285 = sadd.s32 %s284, %s282
      %s286 = smul.addr %s285, 4
      %s287 = scalar_lea.vmem %s0, %s286
      %s288 = smul.u32 32, %s20
      %s289 = smul.u32 16, %s22
      %p290 = scmp.lt.s32.totalorder %s289, 15
      %s291 = scalar_select %p290, %s289, 15
      %p292 = scmp.lt.s32.totalorder %s21, 0
      %s293 = scalar_select %p292, %s21, 0
      %s294 = sadd.s32 %s293, %s291
      %s295 = smul.addr %s294, 4
      %s296 = scalar_lea.vmem %s1, %s295
      %s297 = smul.u32 16, %s22
      %p298 = scmp.lt.s32.totalorder %s21, 0
      %s299 = scalar_select %p298, %s21, 0
      %s300 = scalar_lea.vmem %s2, %s299
      %s301 = smul.u32 32, %s20
      %p302 = scmp.lt.s32.totalorder %s301, 63
      %s303 = scalar_select %p302, %s301, 63
      %p304 = scmp.lt.s32.totalorder %s21, 0
      %s305 = scalar_select %p304, %s21, 0
      %s306 = sadd.s32 %s305, %s303
      %s307 = smul.addr %s306, 8
      %s308 = scalar_lea.vmem %s3, %s307
      %s309 = smul.u32 32, %s20
      %s310 = smul.u32 32, %s20
      %p311 = scmp.lt.s32.totalorder %s310, 63
      %s312 = scalar_select %p311, %s310, 63
      %p313 = scmp.lt.s32.totalorder %s21, 0
      %s314 = scalar_select %p313, %s21, 0
      %s315 = sadd.s32 %s314, %s312
      %s316 = smul.addr %s315, 8
      %s317 = scalar_lea.vmem %s4, %s316
      %s318 = smul.u32 32, %s20
      %p319 = scmp.eq.s32.totalorder %s22, 0
      // Predicated region
      $region37: #{_lambda_.5} parent=35 // pred_check
        %p320 = pneg %p319
      $region38: #{_lambda_.5} parent=35 // pred_check_branch
        %322 = sbr.rel (%p320) target = $region40
      $region39: #{_lambda_.5} parent=35 // pred_region
        %323 = vst [vmem:[#allocation2] sm:$0xff] 0.0
        %324 = vst [vmem:[#allocation2 + $0x8] sm:$0xff] 0.0
        %325 = vst [vmem:[#allocation2 + $0x10] sm:$0xff] 0.0
        %326 = vst [vmem:[#allocation2 + $0x18] sm:$0xff] 0.0
        %327 = vst [vmem:[#allocation2 + $0x20] sm:$0xff] 0.0
        %328 = vst [vmem:[#allocation2 + $0x28] sm:$0xff] 0.0
        %329 = vst [vmem:[#allocation2 + $0x30] sm:$0xff] 0.0
        %330 = vst [vmem:[#allocation2 + $0x38] sm:$0xff] 0.0
        %331 = vst [vmem:[#allocation2 + $0x40] sm:$0xff] 0.0
        %332 = vst [vmem:[#allocation2 + $0x48] sm:$0xff] 0.0
        %333 = vst [vmem:[#allocation2 + $0x50] sm:$0xff] 0.0
        %334 = vst [vmem:[#allocation2 + $0x58] sm:$0xff] 0.0
        %335 = vst [vmem:[#allocation2 + $0x60] sm:$0xff] 0.0
        %336 = vst [vmem:[#allocation2 + $0x68] sm:$0xff] 0.0
        %337 = vst [vmem:[#allocation2 + $0x70] sm:$0xff] 0.0
        %338 = vst [vmem:[#allocation2 + $0x78] sm:$0xff] 0.0
        %339 = vst [vmem:[#allocation2 + $0x80] sm:$0xff] 0.0
        %340 = vst [vmem:[#allocation2 + $0x88] sm:$0xff] 0.0
        %341 = vst [vmem:[#allocation2 + $0x90] sm:$0xff] 0.0
        %342 = vst [vmem:[#allocation2 + $0x98] sm:$0xff] 0.0
        %343 = vst [vmem:[#allocation2 + $0xa0] sm:$0xff] 0.0
        %344 = vst [vmem:[#allocation2 + $0xa8] sm:$0xff] 0.0
        %345 = vst [vmem:[#allocation2 + $0xb0] sm:$0xff] 0.0
        %346 = vst [vmem:[#allocation2 + $0xb8] sm:$0xff] 0.0
        %347 = vst [vmem:[#allocation2 + $0xc0] sm:$0xff] 0.0
        %348 = vst [vmem:[#allocation2 + $0xc8] sm:$0xff] 0.0
        %349 = vst [vmem:[#allocation2 + $0xd0] sm:$0xff] 0.0
        %350 = vst [vmem:[#allocation2 + $0xd8] sm:$0xff] 0.0
        %351 = vst [vmem:[#allocation2 + $0xe0] sm:$0xff] 0.0
        %352 = vst [vmem:[#allocation2 + $0xe8] sm:$0xff] 0.0
        %353 = vst [vmem:[#allocation2 + $0xf0] sm:$0xff] 0.0
        %354 = vst [vmem:[#allocation2 + $0xf8] sm:$0xff] 0.0
      $region40: #{_lambda_.5} parent=35 // pred_fallthru
        _
      %v355 = vld [vmem:[#allocation2] sm:$0xff]
      %v356 = vld [vmem:[#allocation2 + $0x8] sm:$0xff]
      %v357 = vld [vmem:[#allocation2 + $0x10] sm:$0xff]
      %v358 = vld [vmem:[#allocation2 + $0x18] sm:$0xff]
      %v359 = vld [vmem:[#allocation2 + $0x20] sm:$0xff]
      %v360 = vld [vmem:[#allocation2 + $0x28] sm:$0xff]
      %v361 = vld [vmem:[#allocation2 + $0x30] sm:$0xff]
      %v362 = vld [vmem:[#allocation2 + $0x38] sm:$0xff]
      %v363 = vld [vmem:[#allocation2 + $0x40] sm:$0xff]
      %v364 = vld [vmem:[#allocation2 + $0x48] sm:$0xff]
      %v365 = vld [vmem:[#allocation2 + $0x50] sm:$0xff]
      %v366 = vld [vmem:[#allocation2 + $0x58] sm:$0xff]
      %v367 = vld [vmem:[#allocation2 + $0x60] sm:$0xff]
      %v368 = vld [vmem:[#allocation2 + $0x68] sm:$0xff]
      %v369 = vld [vmem:[#allocation2 + $0x70] sm:$0xff]
      %v370 = vld [vmem:[#allocation2 + $0x78] sm:$0xff]
      %v371 = vld [vmem:[#allocation2 + $0x80] sm:$0xff]
      %v372 = vld [vmem:[#allocation2 + $0x88] sm:$0xff]
      %v373 = vld [vmem:[#allocation2 + $0x90] sm:$0xff]
      %v374 = vld [vmem:[#allocation2 + $0x98] sm:$0xff]
      %v375 = vld [vmem:[#allocation2 + $0xa0] sm:$0xff]
      %v376 = vld [vmem:[#allocation2 + $0xa8] sm:$0xff]
      %v377 = vld [vmem:[#allocation2 + $0xb0] sm:$0xff]
      %v378 = vld [vmem:[#allocation2 + $0xb8] sm:$0xff]
      %v379 = vld [vmem:[#allocation2 + $0xc0] sm:$0xff]
      %v380 = vld [vmem:[#allocation2 + $0xc8] sm:$0xff]
      %v381 = vld [vmem:[#allocation2 + $0xd0] sm:$0xff]
      %v382 = vld [vmem:[#allocation2 + $0xd8] sm:$0xff]
      %v383 = vld [vmem:[#allocation2 + $0xe0] sm:$0xff]
      %v384 = vld [vmem:[#allocation2 + $0xe8] sm:$0xff]
      %v385 = vld [vmem:[#allocation2 + $0xf0] sm:$0xff]
      %v386 = vld [vmem:[#allocation2 + $0xf8] sm:$0xff]
      %v387 = vld [vmem:[%s287] sm:$0xf]
      %v388 = vld [vmem:[%s287 + $0x4] sm:$0xf]
      %v389 = vld [vmem:[%s287 + $0x8] sm:$0xf]
      %v390 = vld [vmem:[%s287 + $0xc] sm:$0xf]
      %v391 = vld [vmem:[%s287 + $0x10] sm:$0xf]
      %v392 = vld [vmem:[%s287 + $0x14] sm:$0xf]
      %v393 = vld [vmem:[%s287 + $0x18] sm:$0xf]
      %v394 = vld [vmem:[%s287 + $0x1c] sm:$0xf]
      %v395 = vld [vmem:[%s287 + $0x20] sm:$0xf]
      %v396 = vld [vmem:[%s287 + $0x24] sm:$0xf]
      %v397 = vld [vmem:[%s287 + $0x28] sm:$0xf]
      %v398 = vld [vmem:[%s287 + $0x2c] sm:$0xf]
      %v399 = vld [vmem:[%s287 + $0x30] sm:$0xf]
      %v400 = vld [vmem:[%s287 + $0x34] sm:$0xf]
      %v401 = vld [vmem:[%s287 + $0x38] sm:$0xf]
      %v402 = vld [vmem:[%s287 + $0x3c] sm:$0xf]
      %v403 = vld [vmem:[%s287 + $0x40] sm:$0xf]
      %v404 = vld [vmem:[%s287 + $0x44] sm:$0xf]
      %v405 = vld [vmem:[%s287 + $0x48] sm:$0xf]
      %v406 = vld [vmem:[%s287 + $0x4c] sm:$0xf]
      %v407 = vld [vmem:[%s287 + $0x50] sm:$0xf]
      %v408 = vld [vmem:[%s287 + $0x54] sm:$0xf]
      %v409 = vld [vmem:[%s287 + $0x58] sm:$0xf]
      %v410 = vld [vmem:[%s287 + $0x5c] sm:$0xf]
      %v411 = vld [vmem:[%s287 + $0x60] sm:$0xf]
      %v412 = vld [vmem:[%s287 + $0x64] sm:$0xf]
      %v413 = vld [vmem:[%s287 + $0x68] sm:$0xf]
      %v414 = vld [vmem:[%s287 + $0x6c] sm:$0xf]
      %v415 = vld [vmem:[%s287 + $0x70] sm:$0xf]
      %v416 = vld [vmem:[%s287 + $0x74] sm:$0xf]
      %v417 = vld [vmem:[%s287 + $0x78] sm:$0xf]
      %v418 = vld [vmem:[%s287 + $0x7c] sm:$0xf]
      %v419 = vld [vmem:[%s296] sm:$0xf]
      %v420 = vld [vmem:[%s296 + $0x4] sm:$0xf]
      %v421 = vld [vmem:[%s296 + $0x8] sm:$0xf]
      %v422 = vld [vmem:[%s296 + $0xc] sm:$0xf]
      %v423 = vld [vmem:[%s296 + $0x10] sm:$0xf]
      %v424 = vld [vmem:[%s296 + $0x14] sm:$0xf]
      %v425 = vld [vmem:[%s296 + $0x18] sm:$0xf]
      %v426 = vld [vmem:[%s296 + $0x1c] sm:$0xf]
      %v427 = vld [vmem:[%s296 + $0x20] sm:$0xf]
      %v428 = vld [vmem:[%s296 + $0x24] sm:$0xf]
      %v429 = vld [vmem:[%s296 + $0x28] sm:$0xf]
      %v430 = vld [vmem:[%s296 + $0x2c] sm:$0xf]
      %v431 = vld [vmem:[%s296 + $0x30] sm:$0xf]
      %v432 = vld [vmem:[%s296 + $0x34] sm:$0xf]
      %v433 = vld [vmem:[%s296 + $0x38] sm:$0xf]
      %v434 = vld [vmem:[%s296 + $0x3c] sm:$0xf]
      %v467 = vunpack.c.l.b16 %v387
      %v468 = vunpack.c.l.b16 %v388
      %v469 = vunpack.c.l.b16 %v389
      %v470 = vunpack.c.l.b16 %v390
      %v471 = vunpack.c.l.b16 %v391
      %v472 = vunpack.c.l.b16 %v392
      %v473 = vunpack.c.l.b16 %v393
      %v474 = vunpack.c.l.b16 %v394
      %v475 = vunpack.c.l.b16 %v395
      %v476 = vunpack.c.l.b16 %v396
      %v477 = vunpack.c.l.b16 %v397
      %v478 = vunpack.c.l.b16 %v398
      %v479 = vunpack.c.l.b16 %v399
      %v480 = vunpack.c.l.b16 %v400
      %v481 = vunpack.c.l.b16 %v401
      %v482 = vunpack.c.l.b16 %v402
      %v483 = vunpack.c.l.b16 %v403
      %v484 = vunpack.c.l.b16 %v404
      %v485 = vunpack.c.l.b16 %v405
      %v486 = vunpack.c.l.b16 %v406
      %v487 = vunpack.c.l.b16 %v407
      %v488 = vunpack.c.l.b16 %v408
      %v489 = vunpack.c.l.b16 %v409
      %v490 = vunpack.c.l.b16 %v410
      %v491 = vunpack.c.l.b16 %v411
      %v492 = vunpack.c.l.b16 %v412
      %v493 = vunpack.c.l.b16 %v413
      %v494 = vunpack.c.l.b16 %v414
      %v495 = vunpack.c.l.b16 %v415
      %v496 = vunpack.c.l.b16 %v416
      %v497 = vunpack.c.l.b16 %v417
      %v498 = vunpack.c.l.b16 %v418
      %v499 = vpack.c.b16 %v468, %v467
      %v500 = vpack.c.b16 %v470, %v469
      %v501 = vpack.c.b16 %v472, %v471
      %v502 = vpack.c.b16 %v474, %v473
      %v503 = vpack.c.b16 %v476, %v475
      %v504 = vpack.c.b16 %v478, %v477
      %v505 = vpack.c.b16 %v480, %v479
      %v506 = vpack.c.b16 %v482, %v481
      %v507 = vpack.c.b16 %v484, %v483
      %v508 = vpack.c.b16 %v486, %v485
      %v509 = vpack.c.b16 %v488, %v487
      %v510 = vpack.c.b16 %v490, %v489
      %v511 = vpack.c.b16 %v492, %v491
      %v512 = vpack.c.b16 %v494, %v493
      %v513 = vpack.c.b16 %v496, %v495
      %v514 = vpack.c.b16 %v498, %v497
      %v547 = vunpack.c.l.b16 %v419
      %v548 = vunpack.c.l.b16 %v420
      %v549 = vunpack.c.l.b16 %v421
      %v550 = vunpack.c.l.b16 %v422
      %v551 = vunpack.c.l.b16 %v423
      %v552 = vunpack.c.l.b16 %v424
      %v553 = vunpack.c.l.b16 %v425
      %v554 = vunpack.c.l.b16 %v426
      %v555 = vunpack.c.l.b16 %v427
      %v556 = vunpack.c.l.b16 %v428
      %v557 = vunpack.c.l.b16 %v429
      %v558 = vunpack.c.l.b16 %v430
      %v559 = vunpack.c.l.b16 %v431
      %v560 = vunpack.c.l.b16 %v432
      %v561 = vunpack.c.l.b16 %v433
      %v562 = vunpack.c.l.b16 %v434
      %v563 = vpack.c.b16 %v548, %v547
      %v564 = vpack.c.b16 %v550, %v549
      %v565 = vpack.c.b16 %v552, %v551
      %v566 = vpack.c.b16 %v554, %v553
      %v567 = vpack.c.b16 %v556, %v555
      %v568 = vpack.c.b16 %v558, %v557
      %v569 = vpack.c.b16 %v560, %v559
      %v570 = vpack.c.b16 %v562, %v561
      %579 = vmatpush.bf16.msra.mxu0 %v570
      %580 = vmatpush.bf16.msra.mxu0 %v569
      %581 = vmatpush.bf16.msra.mxu0 %v568
      %582 = vmatpush.bf16.msra.mxu0 %v567
      %583 = vmatpush.bf16.msra.mxu0 %v566
      %584 = vmatpush.bf16.msra.mxu0 %v565
      %585 = vmatpush.bf16.msra.mxu0 %v564
      %586 = vmatpush.bf16.msra.mxu0 %v563
      %587 = vmatmul.bf16.gmra.mxu0 %v499
      %v588 = vpop.f32.mrf.mxu0
      %v589 = vadd.f32 0.0, %v588
      %v590 = vpop.f32.mrf.mxu0
      %v591 = vadd.f32 0.0, %v590
      %592 = vmatmul.bf16.gmra.mxu0 %v500
      %v593 = vpop.f32.mrf.mxu0
      %v594 = vadd.f32 0.0, %v593
      %v595 = vpop.f32.mrf.mxu0
      %v596 = vadd.f32 0.0, %v595
      %597 = vmatmul.bf16.gmra.mxu0 %v501
      %v598 = vpop.f32.mrf.mxu0
      %v599 = vadd.f32 0.0, %v598
      %v600 = vpop.f32.mrf.mxu0
      %v601 = vadd.f32 0.0, %v600
      %602 = vmatmul.bf16.gmra.mxu0 %v502
      %v603 = vpop.f32.mrf.mxu0
      %v604 = vadd.f32 0.0, %v603
      %v605 = vpop.f32.mrf.mxu0
      %v606 = vadd.f32 0.0, %v605
      %607 = vmatmul.bf16.gmra.mxu0 %v503
      %v608 = vpop.f32.mrf.mxu0
      %v609 = vadd.f32 0.0, %v608
      %v610 = vpop.f32.mrf.mxu0
      %v611 = vadd.f32 0.0, %v610
      %612 = vmatmul.bf16.gmra.mxu0 %v504
      %v613 = vpop.f32.mrf.mxu0
      %v614 = vadd.f32 0.0, %v613
      %v615 = vpop.f32.mrf.mxu0
      %v616 = vadd.f32 0.0, %v615
      %617 = vmatmul.bf16.gmra.mxu0 %v505
      %v618 = vpop.f32.mrf.mxu0
      %v619 = vadd.f32 0.0, %v618
      %v620 = vpop.f32.mrf.mxu0
      %v621 = vadd.f32 0.0, %v620
      %622 = vmatmul.bf16.gmra.mxu0 %v506
      %v623 = vpop.f32.mrf.mxu0
      %v624 = vadd.f32 0.0, %v623
      %v625 = vpop.f32.mrf.mxu0
      %v626 = vadd.f32 0.0, %v625
      %627 = vmatmul.bf16.gmra.mxu0 %v507
      %v628 = vpop.f32.mrf.mxu0
      %v629 = vadd.f32 0.0, %v628
      %v630 = vpop.f32.mrf.mxu0
      %v631 = vadd.f32 0.0, %v630
      %632 = vmatmul.bf16.gmra.mxu0 %v508
      %v633 = vpop.f32.mrf.mxu0
      %v634 = vadd.f32 0.0, %v633
      %v635 = vpop.f32.mrf.mxu0
      %v636 = vadd.f32 0.0, %v635
      %637 = vmatmul.bf16.gmra.mxu0 %v509
      %v638 = vpop.f32.mrf.mxu0
      %v639 = vadd.f32 0.0, %v638
      %v640 = vpop.f32.mrf.mxu0
      %v641 = vadd.f32 0.0, %v640
      %642 = vmatmul.bf16.gmra.mxu0 %v510
      %v643 = vpop.f32.mrf.mxu0
      %v644 = vadd.f32 0.0, %v643
      %v645 = vpop.f32.mrf.mxu0
      %v646 = vadd.f32 0.0, %v645
      %647 = vmatmul.bf16.gmra.mxu0 %v511
      %v648 = vpop.f32.mrf.mxu0
      %v649 = vadd.f32 0.0, %v648
      %v650 = vpop.f32.mrf.mxu0
      %v651 = vadd.f32 0.0, %v650
      %652 = vmatmul.bf16.gmra.mxu0 %v512
      %v653 = vpop.f32.mrf.mxu0
      %v654 = vadd.f32 0.0, %v653
      %v655 = vpop.f32.mrf.mxu0
      %v656 = vadd.f32 0.0, %v655
      %657 = vmatmul.bf16.gmra.mxu0 %v513
      %v658 = vpop.f32.mrf.mxu0
      %v659 = vadd.f32 0.0, %v658
      %v660 = vpop.f32.mrf.mxu0
      %v661 = vadd.f32 0.0, %v660
      %662 = vmatmul.bf16.gmra.mxu0 %v514
      %v663 = vpop.f32.mrf.mxu0
      %v664 = vadd.f32 0.0, %v663
      %v665 = vpop.f32.mrf.mxu0
      %v666 = vadd.f32 0.0, %v665
      %667 = vdwg.mxu0
      %v668 = vadd.f32 %v355, %v589
      %v669 = vadd.f32 %v356, %v591
      %v670 = vadd.f32 %v357, %v594
      %v671 = vadd.f32 %v358, %v596
      %v672 = vadd.f32 %v359, %v599
      %v673 = vadd.f32 %v360, %v601
      %v674 = vadd.f32 %v361, %v604
      %v675 = vadd.f32 %v362, %v606
      %v676 = vadd.f32 %v363, %v609
      %v677 = vadd.f32 %v364, %v611
      %v678 = vadd.f32 %v365, %v614
      %v679 = vadd.f32 %v366, %v616
      %v680 = vadd.f32 %v367, %v619
      %v681 = vadd.f32 %v368, %v621
      %v682 = vadd.f32 %v369, %v624
      %v683 = vadd.f32 %v370, %v626
      %v684 = vadd.f32 %v371, %v629
      %v685 = vadd.f32 %v372, %v631
      %v686 = vadd.f32 %v373, %v634
      %v687 = vadd.f32 %v374, %v636
      %v688 = vadd.f32 %v375, %v639
      %v689 = vadd.f32 %v376, %v641
      %v690 = vadd.f32 %v377, %v644
      %v691 = vadd.f32 %v378, %v646
      %v692 = vadd.f32 %v379, %v649
      %v693 = vadd.f32 %v380, %v651
      %v694 = vadd.f32 %v381, %v654
      %v695 = vadd.f32 %v382, %v656
      %v696 = vadd.f32 %v383, %v659
      %v697 = vadd.f32 %v384, %v661
      %v698 = vadd.f32 %v385, %v664
      %v699 = vadd.f32 %v386, %v666
      %700 = vst [vmem:[#allocation2] sm:$0xff] %v668
      %701 = vst [vmem:[#allocation2 + $0x8] sm:$0xff] %v669
      %702 = vst [vmem:[#allocation2 + $0x10] sm:$0xff] %v670
      %703 = vst [vmem:[#allocation2 + $0x18] sm:$0xff] %v671
      %704 = vst [vmem:[#allocation2 + $0x20] sm:$0xff] %v672
      %705 = vst [vmem:[#allocation2 + $0x28] sm:$0xff] %v673
      %706 = vst [vmem:[#allocation2 + $0x30] sm:$0xff] %v674
      %707 = vst [vmem:[#allocation2 + $0x38] sm:$0xff] %v675
      %708 = vst [vmem:[#allocation2 + $0x40] sm:$0xff] %v676
      %709 = vst [vmem:[#allocation2 + $0x48] sm:$0xff] %v677
      %710 = vst [vmem:[#allocation2 + $0x50] sm:$0xff] %v678
      %711 = vst [vmem:[#allocation2 + $0x58] sm:$0xff] %v679
      %712 = vst [vmem:[#allocation2 + $0x60] sm:$0xff] %v680
      %713 = vst [vmem:[#allocation2 + $0x68] sm:$0xff] %v681
      %714 = vst [vmem:[#allocation2 + $0x70] sm:$0xff] %v682
      %715 = vst [vmem:[#allocation2 + $0x78] sm:$0xff] %v683
      %716 = vst [vmem:[#allocation2 + $0x80] sm:$0xff] %v684
      %717 = vst [vmem:[#allocation2 + $0x88] sm:$0xff] %v685
      %718 = vst [vmem:[#allocation2 + $0x90] sm:$0xff] %v686
      %719 = vst [vmem:[#allocation2 + $0x98] sm:$0xff] %v687
      %720 = vst [vmem:[#allocation2 + $0xa0] sm:$0xff] %v688
      %721 = vst [vmem:[#allocation2 + $0xa8] sm:$0xff] %v689
      %722 = vst [vmem:[#allocation2 + $0xb0] sm:$0xff] %v690
      %723 = vst [vmem:[#allocation2 + $0xb8] sm:$0xff] %v691
      %724 = vst [vmem:[#allocation2 + $0xc0] sm:$0xff] %v692
      %725 = vst [vmem:[#allocation2 + $0xc8] sm:$0xff] %v693
      %726 = vst [vmem:[#allocation2 + $0xd0] sm:$0xff] %v694
      %727 = vst [vmem:[#allocation2 + $0xd8] sm:$0xff] %v695
      %728 = vst [vmem:[#allocation2 + $0xe0] sm:$0xff] %v696
      %729 = vst [vmem:[#allocation2 + $0xe8] sm:$0xff] %v697
      %730 = vst [vmem:[#allocation2 + $0xf0] sm:$0xff] %v698
      %731 = vst [vmem:[#allocation2 + $0xf8] sm:$0xff] %v699
      // Predicated region
      $region41: #{_lambda_.5} parent=35 // pred_check
        %p732 = pneg %p319
      $region42: #{_lambda_.5} parent=35 // pred_check_branch
        %734 = sbr.rel (%p732) target = $region44
      $region43: #{_lambda_.5} parent=35 // pred_region
        %v735 = vld [vmem:[#allocation2] sm:$0xff]
        %v736 = vld [vmem:[#allocation2 + $0x8] sm:$0xff]
        %v737 = vld [vmem:[#allocation2 + $0x10] sm:$0xff]
        %v738 = vld [vmem:[#allocation2 + $0x18] sm:$0xff]
        %v739 = vld [vmem:[#allocation2 + $0x20] sm:$0xff]
        %v740 = vld [vmem:[#allocation2 + $0x28] sm:$0xff]
        %v741 = vld [vmem:[#allocation2 + $0x30] sm:$0xff]
        %v742 = vld [vmem:[#allocation2 + $0x38] sm:$0xff]
        %v743 = vld [vmem:[#allocation2 + $0x40] sm:$0xff]
        %v744 = vld [vmem:[#allocation2 + $0x48] sm:$0xff]
        %v745 = vld [vmem:[#allocation2 + $0x50] sm:$0xff]
        %v746 = vld [vmem:[#allocation2 + $0x58] sm:$0xff]
        %v747 = vld [vmem:[#allocation2 + $0x60] sm:$0xff]
        %v748 = vld [vmem:[#allocation2 + $0x68] sm:$0xff]
        %v749 = vld [vmem:[#allocation2 + $0x70] sm:$0xff]
        %v750 = vld [vmem:[#allocation2 + $0x78] sm:$0xff]
        %v751 = vld [vmem:[#allocation2 + $0x80] sm:$0xff]
        %v752 = vld [vmem:[#allocation2 + $0x88] sm:$0xff]
        %v753 = vld [vmem:[#allocation2 + $0x90] sm:$0xff]
        %v754 = vld [vmem:[#allocation2 + $0x98] sm:$0xff]
        %v755 = vld [vmem:[#allocation2 + $0xa0] sm:$0xff]
        %v756 = vld [vmem:[#allocation2 + $0xa8] sm:$0xff]
        %v757 = vld [vmem:[#allocation2 + $0xb0] sm:$0xff]
        %v758 = vld [vmem:[#allocation2 + $0xb8] sm:$0xff]
        %v759 = vld [vmem:[#allocation2 + $0xc0] sm:$0xff]
        %v760 = vld [vmem:[#allocation2 + $0xc8] sm:$0xff]
        %v761 = vld [vmem:[#allocation2 + $0xd0] sm:$0xff]
        %v762 = vld [vmem:[#allocation2 + $0xd8] sm:$0xff]
        %v763 = vld [vmem:[#allocation2 + $0xe0] sm:$0xff]
        %v764 = vld [vmem:[#allocation2 + $0xe8] sm:$0xff]
        %v765 = vld [vmem:[#allocation2 + $0xf0] sm:$0xff]
        %v766 = vld [vmem:[#allocation2 + $0xf8] sm:$0xff]
        %v767 = vld [vmem:[%s300] sm:$0x1]
        %v769 = vperm.slane %v767, 0
        %v771 = vadd.f32 %v735, %v769
        %v772 = vadd.f32 %v736, %v769
        %v773 = vadd.f32 %v737, %v769
        %v774 = vadd.f32 %v738, %v769
        %v775 = vadd.f32 %v739, %v769
        %v776 = vadd.f32 %v740, %v769
        %v777 = vadd.f32 %v741, %v769
        %v778 = vadd.f32 %v742, %v769
        %v779 = vadd.f32 %v743, %v769
        %v780 = vadd.f32 %v744, %v769
        %v781 = vadd.f32 %v745, %v769
        %v782 = vadd.f32 %v746, %v769
        %v783 = vadd.f32 %v747, %v769
        %v784 = vadd.f32 %v748, %v769
        %v785 = vadd.f32 %v749, %v769
        %v786 = vadd.f32 %v750, %v769
        %v787 = vadd.f32 %v751, %v769
        %v788 = vadd.f32 %v752, %v769
        %v789 = vadd.f32 %v753, %v769
        %v790 = vadd.f32 %v754, %v769
        %v791 = vadd.f32 %v755, %v769
        %v792 = vadd.f32 %v756, %v769
        %v793 = vadd.f32 %v757, %v769
        %v794 = vadd.f32 %v758, %v769
        %v795 = vadd.f32 %v759, %v769
        %v796 = vadd.f32 %v760, %v769
        %v797 = vadd.f32 %v761, %v769
        %v798 = vadd.f32 %v762, %v769
        %v799 = vadd.f32 %v763, %v769
        %v800 = vadd.f32 %v764, %v769
        %v801 = vadd.f32 %v765, %v769
        %v802 = vadd.f32 %v766, %v769
        %v803 = vld [vmem:[%s308] sm:$0xff]
        %v804 = vld [vmem:[%s308 + $0x8] sm:$0xff]
        %v805 = vld [vmem:[%s308 + $0x10] sm:$0xff]
        %v806 = vld [vmem:[%s308 + $0x18] sm:$0xff]
        %v807 = vld [vmem:[%s308 + $0x20] sm:$0xff]
        %v808 = vld [vmem:[%s308 + $0x28] sm:$0xff]
        %v809 = vld [vmem:[%s308 + $0x30] sm:$0xff]
        %v810 = vld [vmem:[%s308 + $0x38] sm:$0xff]
        %v811 = vld [vmem:[%s308 + $0x40] sm:$0xff]
        %v812 = vld [vmem:[%s308 + $0x48] sm:$0xff]
        %v813 = vld [vmem:[%s308 + $0x50] sm:$0xff]
        %v814 = vld [vmem:[%s308 + $0x58] sm:$0xff]
        %v815 = vld [vmem:[%s308 + $0x60] sm:$0xff]
        %v816 = vld [vmem:[%s308 + $0x68] sm:$0xff]
        %v817 = vld [vmem:[%s308 + $0x70] sm:$0xff]
        %v818 = vld [vmem:[%s308 + $0x78] sm:$0xff]
        %v819 = vld [vmem:[%s308 + $0x80] sm:$0xff]
        %v820 = vld [vmem:[%s308 + $0x88] sm:$0xff]
        %v821 = vld [vmem:[%s308 + $0x90] sm:$0xff]
        %v822 = vld [vmem:[%s308 + $0x98] sm:$0xff]
        %v823 = vld [vmem:[%s308 + $0xa0] sm:$0xff]
        %v824 = vld [vmem:[%s308 + $0xa8] sm:$0xff]
        %v825 = vld [vmem:[%s308 + $0xb0] sm:$0xff]
        %v826 = vld [vmem:[%s308 + $0xb8] sm:$0xff]
        %v827 = vld [vmem:[%s308 + $0xc0] sm:$0xff]
        %v828 = vld [vmem:[%s308 + $0xc8] sm:$0xff]
        %v829 = vld [vmem:[%s308 + $0xd0] sm:$0xff]
        %v830 = vld [vmem:[%s308 + $0xd8] sm:$0xff]
        %v831 = vld [vmem:[%s308 + $0xe0] sm:$0xff]
        %v832 = vld [vmem:[%s308 + $0xe8] sm:$0xff]
        %v833 = vld [vmem:[%s308 + $0xf0] sm:$0xff]
        %v834 = vld [vmem:[%s308 + $0xf8] sm:$0xff]
        %v835 = vadd.f32 %v771, %v803
        %v836 = vadd.f32 %v772, %v804
        %v837 = vadd.f32 %v773, %v805
        %v838 = vadd.f32 %v774, %v806
        %v839 = vadd.f32 %v775, %v807
        %v840 = vadd.f32 %v776, %v808
        %v841 = vadd.f32 %v777, %v809
        %v842 = vadd.f32 %v778, %v810
        %v843 = vadd.f32 %v779, %v811
        %v844 = vadd.f32 %v780, %v812
        %v845 = vadd.f32 %v781, %v813
        %v846 = vadd.f32 %v782, %v814
        %v847 = vadd.f32 %v783, %v815
        %v848 = vadd.f32 %v784, %v816
        %v849 = vadd.f32 %v785, %v817
        %v850 = vadd.f32 %v786, %v818
        %v851 = vadd.f32 %v787, %v819
        %v852 = vadd.f32 %v788, %v820
        %v853 = vadd.f32 %v789, %v821
        %v854 = vadd.f32 %v790, %v822
        %v855 = vadd.f32 %v791, %v823
        %v856 = vadd.f32 %v792, %v824
        %v857 = vadd.f32 %v793, %v825
        %v858 = vadd.f32 %v794, %v826
        %v859 = vadd.f32 %v795, %v827
        %v860 = vadd.f32 %v796, %v828
        %v861 = vadd.f32 %v797, %v829
        %v862 = vadd.f32 %v798, %v830
        %v863 = vadd.f32 %v799, %v831
        %v864 = vadd.f32 %v800, %v832
        %v865 = vadd.f32 %v801, %v833
        %v866 = vadd.f32 %v802, %v834
        %v867 = vmax.f32 %v835, 0.0
        %v868 = vmax.f32 %v836, 0.0
        %v869 = vmax.f32 %v837, 0.0
        %v870 = vmax.f32 %v838, 0.0
        %v871 = vmax.f32 %v839, 0.0
        %v872 = vmax.f32 %v840, 0.0
        %v873 = vmax.f32 %v841, 0.0
        %v874 = vmax.f32 %v842, 0.0
        %v875 = vmax.f32 %v843, 0.0
        %v876 = vmax.f32 %v844, 0.0
        %v877 = vmax.f32 %v845, 0.0
        %v878 = vmax.f32 %v846, 0.0
        %v879 = vmax.f32 %v847, 0.0
        %v880 = vmax.f32 %v848, 0.0
        %v881 = vmax.f32 %v849, 0.0
        %v882 = vmax.f32 %v850, 0.0
        %v883 = vmax.f32 %v851, 0.0
        %v884 = vmax.f32 %v852, 0.0
        %v885 = vmax.f32 %v853, 0.0
        %v886 = vmax.f32 %v854, 0.0
        %v887 = vmax.f32 %v855, 0.0
        %v888 = vmax.f32 %v856, 0.0
        %v889 = vmax.f32 %v857, 0.0
        %v890 = vmax.f32 %v858, 0.0
        %v891 = vmax.f32 %v859, 0.0
        %v892 = vmax.f32 %v860, 0.0
        %v893 = vmax.f32 %v861, 0.0
        %v894 = vmax.f32 %v862, 0.0
        %v895 = vmax.f32 %v863, 0.0
        %v896 = vmax.f32 %v864, 0.0
        %v897 = vmax.f32 %v865, 0.0
        %v898 = vmax.f32 %v866, 0.0
        %899 = vst [vmem:[%s317] sm:$0xff] %v867
        %900 = vst [vmem:[%s317 + $0x8] sm:$0xff] %v868
        %901 = vst [vmem:[%s317 + $0x10] sm:$0xff] %v869
        %902 = vst [vmem:[%s317 + $0x18] sm:$0xff] %v870
        %903 = vst [vmem:[%s317 + $0x20] sm:$0xff] %v871
        %904 = vst [vmem:[%s317 + $0x28] sm:$0xff] %v872
        %905 = vst [vmem:[%s317 + $0x30] sm:$0xff] %v873
        %906 = vst [vmem:[%s317 + $0x38] sm:$0xff] %v874
        %907 = vst [vmem:[%s317 + $0x40] sm:$0xff] %v875
        %908 = vst [vmem:[%s317 + $0x48] sm:$0xff] %v876
        %909 = vst [vmem:[%s317 + $0x50] sm:$0xff] %v877
        %910 = vst [vmem:[%s317 + $0x58] sm:$0xff] %v878
        %911 = vst [vmem:[%s317 + $0x60] sm:$0xff] %v879
        %912 = vst [vmem:[%s317 + $0x68] sm:$0xff] %v880
        %913 = vst [vmem:[%s317 + $0x70] sm:$0xff] %v881
        %914 = vst [vmem:[%s317 + $0x78] sm:$0xff] %v882
        %915 = vst [vmem:[%s317 + $0x80] sm:$0xff] %v883
        %916 = vst [vmem:[%s317 + $0x88] sm:$0xff] %v884
        %917 = vst [vmem:[%s317 + $0x90] sm:$0xff] %v885
        %918 = vst [vmem:[%s317 + $0x98] sm:$0xff] %v886
        %919 = vst [vmem:[%s317 + $0xa0] sm:$0xff] %v887
        %920 = vst [vmem:[%s317 + $0xa8] sm:$0xff] %v888
        %921 = vst [vmem:[%s317 + $0xb0] sm:$0xff] %v889
        %922 = vst [vmem:[%s317 + $0xb8] sm:$0xff] %v890
        %923 = vst [vmem:[%s317 + $0xc0] sm:$0xff] %v891
        %924 = vst [vmem:[%s317 + $0xc8] sm:$0xff] %v892
        %925 = vst [vmem:[%s317 + $0xd0] sm:$0xff] %v893
        %926 = vst [vmem:[%s317 + $0xd8] sm:$0xff] %v894
        %927 = vst [vmem:[%s317 + $0xe0] sm:$0xff] %v895
        %928 = vst [vmem:[%s317 + $0xe8] sm:$0xff] %v896
        %929 = vst [vmem:[%s317 + $0xf0] sm:$0xff] %v897
        %930 = vst [vmem:[%s317 + $0xf8] sm:$0xff] %v898
      $region44: #{_lambda_.5} parent=35 // pred_fallthru
        _
      %s931 = smul.u32 32, %s20
      %p932 = scmp.lt.s32.totalorder %s931, 63
      %s933 = scalar_select %p932, %s931, 63
      %p934 = scmp.lt.s32.totalorder %s21, 0
      %s935 = scalar_select %p934, %s21, 0
      %s936 = sadd.s32 %s935, %s933
      %s937 = smul.addr %s936, 8
      %s938 = scalar_lea.vmem %s4, %s937
      // Predicated region
      $region45: #{_lambda_.5} parent=35 // pred_check
        %p939 = pneg %p164
      $region46: #{_lambda_.5} parent=35 // pred_check_branch
        %941 = sbr.rel (%p939) target = $region48
      $region47: #{_lambda_.5} parent=35 // pred_region
        %s942 = smul.u32 32, %s20
      $region48: #{_lambda_.5} parent=35 // pred_fallthru
        _
    $region36: #{_lambda_.5} parent=5 // pred_fallthru
      _
    %p943 = scmp.le.s32.totalorder 2, %s10
    // Predicated region
    $region49: #{_lambda_.5} parent=5 // pred_check
      %p944 = pneg %p943
    $region50: #{_lambda_.5} parent=5 // pred_check_branch
      %946 = sbr.rel (%p944) target = $region52
    $region51: #{_lambda_.5} parent=5 // pred_region
      %s947 = ssub.s32 %s10, 2
      // Predicated region
      $region53: #{_lambda_.5} parent=51 // pred_check
        %p948 = pneg %p170
      $region54: #{_lambda_.5} parent=51 // pred_check_branch
        %950 = sbr.rel (%p948) target = $region56
      $region55: #{_lambda_.5} parent=51 // pred_region
        %s951 = smul.u32 32, %s23
        %p952 = scmp.lt.s32.totalorder %s951, 63
        %s953 = scalar_select %p952, %s951, 63
        %p954 = scmp.lt.s32.totalorder %s24, 0
        %s955 = scalar_select %p954, %s24, 0
        %s956 = sadd.s32 %s955, %s953
        %s957 = smul.addr %s956, 8
        %s958 = scalar_lea.vmem %s4, %s957
      $region56: #{_lambda_.5} parent=51 // pred_fallthru
        _
    $region52: #{_lambda_.5} parent=5 // pred_fallthru
      _
  $region6: #{_lambda_.5} parent=0 // loop_footer
    %s14 = sadd.s32 1, %s10
  $region7: #{_lambda_.5} parent=0 // loop_footer_branch
    %9 = sbr.rel target = $region3
  $region8: #{_lambda_.5} parent=0 // loop_exit
    _

// kernel: _lambda_.4
$region0: #{_lambda_.4}
  #allocation0 [shape = 'u32[]', space=smem, size = 0x4, offset = 0x4, fixed_abs, tag = 'smem constant byte address 0x4 - core index']
  #allocation1 [shape = 'u32[72,128]{1,0:T(1,128)}', space=vmem, size = 0x9000, scoped, tag = 'internal scratch']
  #allocation2 [shape = 'f32[128,128]{1,0:T(8,128)}', space=vmem, size = 0x10000, scoped, tag = 'scratch operand']
  %s0 = inlined_call_operand.vmem [shape: f32[2,18,18,128], index: 0, kind: input, shape index: {}]
  %s1 = inlined_call_operand.vmem [shape: bf16[9,128,128], index: 1, kind: input, shape index: {}]
  %s2 = inlined_call_operand.vmem [shape: f32[1,128], index: 2, kind: input, shape index: {}]
  %s3 = inlined_call_operand.vmem [shape: bf16[512,128], index: 3, kind: output, shape index: {}]
  %s4 = sld [smem:[#allocation0]]
  $region45: #{_lambda_.4} parent=0
    _
  %s6 = ssub.s32 1, %s4
  %s7 = scalar_select 0, %s6, %s4
  loop: start=0, step=1, limit=6
  $region2: #{_lambda_.4} parent=0 // loop_pre_header
    _
  $region3: #{_lambda_.4} parent=0 // loop_header
    %s9 = sphi 0, %s13
    %p10 = scmp.ge.s32.totalorder %s9, 6
    %s16 = sphi 0, %s28
    %s17 = sphi 0, %s24
    %s18 = sphi 0, %s16
    %s19 = sphi 0, %s17
    %s20 = sphi 0, %s18
    %s21 = sphi 0, %s19
    %s29 = sphi 0, %s29
    %s31 = sphi 0, %s29
    %s32 = sphi 0, %s31
    %s46 = sphi 0, %s32
    %s50 = sphi 0, %s50
    %s52 = sphi 0, %s50
    %s53 = sphi 0, %s52
    %s67 = sphi 0, %s53
    %s71 = sphi 0, %s71
    %s73 = sphi 0, %s71
    %s74 = sphi 0, %s73
    %s88 = sphi 0, %s74
    %s98 = sphi 0, %s100
    %s101 = sphi 0, %s98
    %s102 = sphi 0, %s101
    %s118 = sphi 0, %s102
  $region4: #{_lambda_.4} parent=0 // loop_header_branch
    %12 = sbr.rel (%p10) target = $region8
  $region5: #{_lambda_.4} parent=0 // loop_body
    %s14 = ssub.s32 %s9, 1
    %s15 = ssub.s32 %s9, 2
    %s22 = sadd.s32 1, %s17
    %p23 = scmp.ge.s32.totalorder %s22, 2
    %s24 = scalar_select %p23, 0, %s22
    %s25 = sadd.s32 1, %s16
    %s26 = scalar_select %p23, %s25, %s16
    %p27 = scmp.ge.s32.totalorder %s26, 2
    %s28 = scalar_select %p27, 0, %s26
    %s30 = sadd.s32 %s29, 1
    %p33 = scmp.eq.s32.totalorder %s9, 3
    %p34 = scmp.ne.s32.totalorder %s29, %s31
    %p35 = scmp.eq.s32.totalorder %s9, 0
    %p36 = por %p34, %p35
    %p37 = scmp.ne.s32.totalorder %s29, %s31
    %p38 = scmp.eq.s32.totalorder %s14, 3
    %p39 = por %p37, %p38
    %p40 = scmp.ne.s32.totalorder %s31, %s32
    %p41 = scmp.eq.s32.totalorder %s14, 0
    %p42 = por %p40, %p41
    %p43 = scmp.ne.s32.totalorder %s31, %s32
    %p44 = scmp.eq.s32.totalorder %s15, 3
    %p45 = por %p43, %p44
    %p47 = scmp.ne.s32.totalorder %s32, %s46
    %p48 = scmp.eq.s32.totalorder %s15, 0
    %p49 = por %p47, %p48
    %s51 = sadd.s32 %s50, 1
    %p54 = scmp.eq.s32.totalorder %s9, 3
    %p55 = scmp.ne.s32.totalorder %s50, %s52
    %p56 = scmp.eq.s32.totalorder %s9, 0
    %p57 = por %p55, %p56
    %p58 = scmp.ne.s32.totalorder %s50, %s52
    %p59 = scmp.eq.s32.totalorder %s14, 3
    %p60 = por %p58, %p59
    %p61 = scmp.ne.s32.totalorder %s52, %s53
    %p62 = scmp.eq.s32.totalorder %s14, 0
    %p63 = por %p61, %p62
    %p64 = scmp.ne.s32.totalorder %s52, %s53
    %p65 = scmp.eq.s32.totalorder %s15, 3
    %p66 = por %p64, %p65
    %p68 = scmp.ne.s32.totalorder %s53, %s67
    %p69 = scmp.eq.s32.totalorder %s15, 0
    %p70 = por %p68, %p69
    %s72 = sadd.s32 %s71, 1
    %p75 = scmp.eq.s32.totalorder %s9, 3
    %p76 = scmp.ne.s32.totalorder %s71, %s73
    %p77 = scmp.eq.s32.totalorder %s9, 0
    %p78 = por %p76, %p77
    %p79 = scmp.ne.s32.totalorder %s71, %s73
    %p80 = scmp.eq.s32.totalorder %s14, 3
    %p81 = por %p79, %p80
    %p82 = scmp.ne.s32.totalorder %s73, %s74
    %p83 = scmp.eq.s32.totalorder %s14, 0
    %p84 = por %p82, %p83
    %p85 = scmp.ne.s32.totalorder %s73, %s74
    %p86 = scmp.eq.s32.totalorder %s15, 3
    %p87 = por %p85, %p86
    %p89 = scmp.ne.s32.totalorder %s74, %s88
    %p90 = scmp.eq.s32.totalorder %s15, 0
    %p91 = por %p89, %p90
    %s92 = smul.u32 %s16, 2
    %s93 = sadd.s32 %s92, %s17
    %s94 = smul.u32 %s28, 2
    %s95 = sadd.s32 %s94, %s24
    %s96 = ssub.s32 %s93, %s95
    %p97 = scmp.eq.s32.totalorder %s96, 0
    %s99 = sadd.s32 %s98, 1
    %s100 = scalar_select %p97, %s98, %s99
    %p103 = pneg %p97
    %p104 = scmp.eq.s32.totalorder %s9, 3
    %p105 = por %p103, %p104
    %p106 = scmp.ne.s32.totalorder %s98, %s101
    %p107 = scmp.eq.s32.totalorder %s9, 0
    %p108 = por %p106, %p107
    %p109 = scmp.ne.s32.totalorder %s98, %s101
    %p110 = scmp.eq.s32.totalorder %s14, 3
    %p111 = por %p109, %p110
    %p112 = scmp.ne.s32.totalorder %s101, %s102
    %p113 = scmp.eq.s32.totalorder %s14, 0
    %p114 = por %p112, %p113
    %p115 = scmp.ne.s32.totalorder %s101, %s102
    %p116 = scmp.eq.s32.totalorder %s15, 3
    %p117 = por %p115, %p116
    %p119 = scmp.ne.s32.totalorder %s102, %s118
    %p120 = scmp.eq.s32.totalorder %s15, 0
    %p121 = por %p119, %p120
    %p122 = scmp.le.s32.totalorder 1, %s9
    %p123 = scmp.lt.s32.totalorder %s9, 5
    %p124 = pnand %p122, %p123
    %p125 = pneg %p124
    // Predicated region
    $region9: #{_lambda_.4} parent=5 // pred_check
      _
    $region10: #{_lambda_.4} parent=5 // pred_check_branch
      %127 = sbr.rel (%p124) target = $region12
    $region11: #{_lambda_.4} parent=5 // pred_region
      %s128 = ssub.s32 %s9, 1
      // Predicated region
      $region13: #{_lambda_.4} parent=11 // pred_check
        %p129 = pneg %p42
      $region14: #{_lambda_.4} parent=11 // pred_check_branch
        %131 = sbr.rel (%p129) target = $region16
      $region15: #{_lambda_.4} parent=11 // pred_region
        _
      $region16: #{_lambda_.4} parent=11 // pred_fallthru
        _
      // Predicated region
      $region17: #{_lambda_.4} parent=11 // pred_check
        %p132 = pneg %p63
      $region18: #{_lambda_.4} parent=11 // pred_check_branch
        %134 = sbr.rel (%p132) target = $region20
      $region19: #{_lambda_.4} parent=11 // pred_region
        _
      $region20: #{_lambda_.4} parent=11 // pred_fallthru
        _
      // Predicated region
      $region21: #{_lambda_.4} parent=11 // pred_check
        %p135 = pneg %p84
      $region22: #{_lambda_.4} parent=11 // pred_check_branch
        %137 = sbr.rel (%p135) target = $region24
      $region23: #{_lambda_.4} parent=11 // pred_region
        _
      $region24: #{_lambda_.4} parent=11 // pred_fallthru
        _
    $region12: #{_lambda_.4} parent=5 // pred_fallthru
      _
    %p138 = scmp.lt.s32.totalorder %s9, 4
    // Predicated region
    $region25: #{_lambda_.4} parent=5 // pred_check
      %p139 = pneg %p138
    $region26: #{_lambda_.4} parent=5 // pred_check_branch
      %141 = sbr.rel (%p139) target = $region28
    $region27: #{_lambda_.4} parent=5 // pred_region
      _
    $region28: #{_lambda_.4} parent=5 // pred_fallthru
      _
    %p142 = scmp.le.s32.totalorder 1, %s9
    %p143 = scmp.lt.s32.totalorder %s9, 5
    %p144 = pnand %p142, %p143
    %p145 = pneg %p144
    // Predicated region
    $region29: #{_lambda_.4} parent=5 // pred_check
      _
    $region30: #{_lambda_.4} parent=5 // pred_check_branch
      %147 = sbr.rel (%p144) target = $region32
    $region31: #{_lambda_.4} parent=5 // pred_region
      %s148 = ssub.s32 %s9, 1
      %p149 = pneg %p42
      %p150 = pneg %p39
      %p151 = pneg %p63
      %p152 = pneg %p60
      %p153 = pneg %p84
      %p154 = pneg %p81
      %p155 = pneg %p114
      %p156 = pneg %p111
      %s157 = smul.u32 %s18, 2
      %s158 = sadd.s32 %s157, %s19
      %s159 = smul.u32 16, %s158
      %p160 = scmp.lt.s32.totalorder %s159, 63
      %s161 = scalar_select %p160, %s159, 63
      %s162 = smul.addr %s161, 4
      %s163 = scalar_lea.vmem %s3, %s162
      %s164 = smul.u32 %s18, 2
      %s165 = sadd.s32 %s164, %s19
      %s166 = smul.u32 16, %s165
      %p167 = scmp.lt.s32.totalorder %s166, 63
      %s168 = scalar_select %p167, %s166, 63
      %s169 = smul.addr %s168, 4
      %s170 = scalar_lea.vmem %s3, %s169
      %s171 = smul.u32 %s18, 2
      %s172 = sadd.s32 %s171, %s19
      %s173 = smul.u32 16, %s172
      %s174 = smul.u32 %s19, 8
      %175 = vst [vmem:[#allocation2] sm:$0xff] 0.0
      %176 = vst [vmem:[#allocation2 + $0x8] sm:$0xff] 0.0
      %177 = vst [vmem:[#allocation2 + $0x10] sm:$0xff] 0.0
      %178 = vst [vmem:[#allocation2 + $0x18] sm:$0xff] 0.0
      %179 = vst [vmem:[#allocation2 + $0x20] sm:$0xff] 0.0
      %180 = vst [vmem:[#allocation2 + $0x28] sm:$0xff] 0.0
      %181 = vst [vmem:[#allocation2 + $0x30] sm:$0xff] 0.0
      %182 = vst [vmem:[#allocation2 + $0x38] sm:$0xff] 0.0
      %183 = vst [vmem:[#allocation2 + $0x40] sm:$0xff] 0.0
      %184 = vst [vmem:[#allocation2 + $0x48] sm:$0xff] 0.0
      %185 = vst [vmem:[#allocation2 + $0x50] sm:$0xff] 0.0
      %186 = vst [vmem:[#allocation2 + $0x58] sm:$0xff] 0.0
      %187 = vst [vmem:[#allocation2 + $0x60] sm:$0xff] 0.0
      %188 = vst [vmem:[#allocation2 + $0x68] sm:$0xff] 0.0
      %189 = vst [vmem:[#allocation2 + $0x70] sm:$0xff] 0.0
      %190 = vst [vmem:[#allocation2 + $0x78] sm:$0xff] 0.0
      %s191 = smul.u32 %s174, 24
      %s192 = smul.u32 %s18, 432
      %s193 = sadd.s32 %s191, %s192
      %s194 = scalar_lea.vmem %s0, %s193
      %v195 = vld [vmem:[%s194] sm:$0xff]
      %v196 = vld [vmem:[%s194 + $0x8] sm:$0xff]
      %v197 = vld [vmem:[%s194 + $0x18] sm:$0xff]
      %v198 = vld [vmem:[%s194 + $0x20] sm:$0xff]
      %v199 = vld [vmem:[%s194 + $0x30] sm:$0xff]
      %v200 = vld [vmem:[%s194 + $0x38] sm:$0xff]
      %v201 = vld [vmem:[%s194 + $0x48] sm:$0xff]
      %v202 = vld [vmem:[%s194 + $0x50] sm:$0xff]
      %v203 = vld [vmem:[%s194 + $0x60] sm:$0xff]
      %v204 = vld [vmem:[%s194 + $0x68] sm:$0xff]
      %v205 = vld [vmem:[%s194 + $0x78] sm:$0xff]
      %v206 = vld [vmem:[%s194 + $0x80] sm:$0xff]
      %v207 = vld [vmem:[%s194 + $0x90] sm:$0xff]
      %v208 = vld [vmem:[%s194 + $0x98] sm:$0xff]
      %v209 = vld [vmem:[%s194 + $0xa8] sm:$0xff]
      %v210 = vld [vmem:[%s194 + $0xb0] sm:$0xff]
      %v211 = vpack.c.bf16 %v196, %v195
      %v212 = vpack.c.bf16 %v198, %v197
      %v213 = vpack.c.bf16 %v200, %v199
      %v214 = vpack.c.bf16 %v202, %v201
      %v215 = vpack.c.bf16 %v204, %v203
      %v216 = vpack.c.bf16 %v206, %v205
      %v217 = vpack.c.bf16 %v208, %v207
      %v218 = vpack.c.bf16 %v210, %v209
      %v219 = vld [vmem:[#allocation2] sm:$0xff]
      %v220 = vld [vmem:[#allocation2 + $0x8] sm:$0xff]
      %v221 = vld [vmem:[#allocation2 + $0x10] sm:$0xff]
      %v222 = vld [vmem:[#allocation2 + $0x18] sm:$0xff]
      %v223 = vld [vmem:[#allocation2 + $0x20] sm:$0xff]
      %v224 = vld [vmem:[#allocation2 + $0x28] sm:$0xff]
      %v225 = vld [vmem:[#allocation2 + $0x30] sm:$0xff]
      %v226 = vld [vmem:[#allocation2 + $0x38] sm:$0xff]
      %v227 = vld [vmem:[#allocation2 + $0x40] sm:$0xff]
      %v228 = vld [vmem:[#allocation2 + $0x48] sm:$0xff]
      %v229 = vld [vmem:[#allocation2 + $0x50] sm:$0xff]
      %v230 = vld [vmem:[#allocation2 + $0x58] sm:$0xff]
      %v231 = vld [vmem:[#allocation2 + $0x60] sm:$0xff]
      %v232 = vld [vmem:[#allocation2 + $0x68] sm:$0xff]
      %v233 = vld [vmem:[#allocation2 + $0x70] sm:$0xff]
      %v234 = vld [vmem:[#allocation2 + $0x78] sm:$0xff]
      %v235 = vld [vmem:[%s1] sm:$0xf]
      %v236 = vld [vmem:[%s1 + $0x4] sm:$0xf]
      %v237 = vld [vmem:[%s1 + $0x8] sm:$0xf]
      %v238 = vld [vmem:[%s1 + $0xc] sm:$0xf]
      %v239 = vld [vmem:[%s1 + $0x10] sm:$0xf]
      %v240 = vld [vmem:[%s1 + $0x14] sm:$0xf]
      %v241 = vld [vmem:[%s1 + $0x18] sm:$0xf]
      %v242 = vld [vmem:[%s1 + $0x1c] sm:$0xf]
      %v243 = vld [vmem:[%s1 + $0x20] sm:$0xf]
      %v244 = vld [vmem:[%s1 + $0x24] sm:$0xf]
      %v245 = vld [vmem:[%s1 + $0x28] sm:$0xf]
      %v246 = vld [vmem:[%s1 + $0x2c] sm:$0xf]
      %v247 = vld [vmem:[%s1 + $0x30] sm:$0xf]
      %v248 = vld [vmem:[%s1 + $0x34] sm:$0xf]
      %v249 = vld [vmem:[%s1 + $0x38] sm:$0xf]
      %v250 = vld [vmem:[%s1 + $0x3c] sm:$0xf]
      %v267 = vunpack.c.l.b16 %v235
      %v268 = vunpack.c.l.b16 %v236
      %v269 = vunpack.c.l.b16 %v237
      %v270 = vunpack.c.l.b16 %v238
      %v271 = vunpack.c.l.b16 %v239
      %v272 = vunpack.c.l.b16 %v240
      %v273 = vunpack.c.l.b16 %v241
      %v274 = vunpack.c.l.b16 %v242
      %v275 = vunpack.c.l.b16 %v243
      %v276 = vunpack.c.l.b16 %v244
      %v277 = vunpack.c.l.b16 %v245
      %v278 = vunpack.c.l.b16 %v246
      %v279 = vunpack.c.l.b16 %v247
      %v280 = vunpack.c.l.b16 %v248
      %v281 = vunpack.c.l.b16 %v249
      %v282 = vunpack.c.l.b16 %v250
      %v283 = vpack.c.b16 %v268, %v267
      %v284 = vpack.c.b16 %v270, %v269
      %v285 = vpack.c.b16 %v272, %v271
      %v286 = vpack.c.b16 %v274, %v273
      %v287 = vpack.c.b16 %v276, %v275
      %v288 = vpack.c.b16 %v278, %v277
      %v289 = vpack.c.b16 %v280, %v279
      %v290 = vpack.c.b16 %v282, %v281
      %299 = vmatpush.bf16.msra.mxu0 %v290
      %300 = vmatpush.bf16.msra.mxu0 %v289
      %301 = vmatpush.bf16.msra.mxu0 %v288
      %302 = vmatpush.bf16.msra.mxu0 %v287
      %303 = vmatpush.bf16.msra.mxu0 %v286
      %304 = vmatpush.bf16.msra.mxu0 %v285
      %305 = vmatpush.bf16.msra.mxu0 %v284
      %306 = vmatpush.bf16.msra.mxu0 %v283
      %307 = vmatmul.bf16.gmra.mxu0 %v211
      %v308 = vpop.f32.mrf.mxu0
      %v309 = vadd.f32 0.0, %v308
      %v310 = vpop.f32.mrf.mxu0
      %v311 = vadd.f32 0.0, %v310
      %312 = vmatmul.bf16.gmra.mxu0 %v212
      %v313 = vpop.f32.mrf.mxu0
      %v314 = vadd.f32 0.0, %v313
      %v315 = vpop.f32.mrf.mxu0
      %v316 = vadd.f32 0.0, %v315
      %317 = vmatmul.bf16.gmra.mxu0 %v213
      %v318 = vpop.f32.mrf.mxu0
      %v319 = vadd.f32 0.0, %v318
      %v320 = vpop.f32.mrf.mxu0
      %v321 = vadd.f32 0.0, %v320
      %322 = vmatmul.bf16.gmra.mxu0 %v214
      %v323 = vpop.f32.mrf.mxu0
      %v324 = vadd.f32 0.0, %v323
      %v325 = vpop.f32.mrf.mxu0
      %v326 = vadd.f32 0.0, %v325
      %327 = vmatmul.bf16.gmra.mxu0 %v215
      %v328 = vpop.f32.mrf.mxu0
      %v329 = vadd.f32 0.0, %v328
      %v330 = vpop.f32.mrf.mxu0
      %v331 = vadd.f32 0.0, %v330
      %332 = vmatmul.bf16.gmra.mxu0 %v216
      %v333 = vpop.f32.mrf.mxu0
      %v334 = vadd.f32 0.0, %v333
      %v335 = vpop.f32.mrf.mxu0
      %v336 = vadd.f32 0.0, %v335
      %337 = vmatmul.bf16.gmra.mxu0 %v217
      %v338 = vpop.f32.mrf.mxu0
      %v339 = vadd.f32 0.0, %v338
      %v340 = vpop.f32.mrf.mxu0
      %v341 = vadd.f32 0.0, %v340
      %342 = vmatmul.bf16.gmra.mxu0 %v218
      %v343 = vpop.f32.mrf.mxu0
      %v344 = vadd.f32 0.0, %v343
      %v345 = vpop.f32.mrf.mxu0
      %v346 = vadd.f32 0.0, %v345
      %347 = vdwg.mxu0
      %v348 = vadd.f32 %v219, %v309
      %v349 = vadd.f32 %v220, %v311
      %v350 = vadd.f32 %v221, %v314
      %v351 = vadd.f32 %v222, %v316
      %v352 = vadd.f32 %v223, %v319
      %v353 = vadd.f32 %v224, %v321
      %v354 = vadd.f32 %v225, %v324
      %v355 = vadd.f32 %v226, %v326
      %v356 = vadd.f32 %v227, %v329
      %v357 = vadd.f32 %v228, %v331
      %v358 = vadd.f32 %v229, %v334
      %v359 = vadd.f32 %v230, %v336
      %v360 = vadd.f32 %v231, %v339
      %v361 = vadd.f32 %v232, %v341
      %v362 = vadd.f32 %v233, %v344
      %v363 = vadd.f32 %v234, %v346
      %364 = vst [vmem:[#allocation2] sm:$0xff] %v348
      %365 = vst [vmem:[#allocation2 + $0x8] sm:$0xff] %v349
      %366 = vst [vmem:[#allocation2 + $0x10] sm:$0xff] %v350
      %367 = vst [vmem:[#allocation2 + $0x18] sm:$0xff] %v351
      %368 = vst [vmem:[#allocation2 + $0x20] sm:$0xff] %v352
      %369 = vst [vmem:[#allocation2 + $0x28] sm:$0xff] %v353
      %370 = vst [vmem:[#allocation2 + $0x30] sm:$0xff] %v354
      %371 = vst [vmem:[#allocation2 + $0x38] sm:$0xff] %v355
      %372 = vst [vmem:[#allocation2 + $0x40] sm:$0xff] %v356
      %373 = vst [vmem:[#allocation2 + $0x48] sm:$0xff] %v357
      %374 = vst [vmem:[#allocation2 + $0x50] sm:$0xff] %v358
      %375 = vst [vmem:[#allocation2 + $0x58] sm:$0xff] %v359
      %376 = vst [vmem:[#allocation2 + $0x60] sm:$0xff] %v360
      %377 = vst [vmem:[#allocation2 + $0x68] sm:$0xff] %v361
      %378 = vst [vmem:[#allocation2 + $0x70] sm:$0xff] %v362
      %379 = vst [vmem:[#allocation2 + $0x78] sm:$0xff] %v363
      %v380 = vld [vmem:[%s194 + $0x1] sm:$0xff]
      %v381 = vld [vmem:[%s194 + $0x9] sm:$0xff]
      %v382 = vld [vmem:[%s194 + $0x19] sm:$0xff]
      %v383 = vld [vmem:[%s194 + $0x21] sm:$0xff]
      %v384 = vld [vmem:[%s194 + $0x31] sm:$0xff]
      %v385 = vld [vmem:[%s194 + $0x39] sm:$0xff]
      %v386 = vld [vmem:[%s194 + $0x49] sm:$0xff]
      %v387 = vld [vmem:[%s194 + $0x51] sm:$0xff]
      %v388 = vld [vmem:[%s194 + $0x61] sm:$0xff]
      %v389 = vld [vmem:[%s194 + $0x69] sm:$0xff]
      %v390 = vld [vmem:[%s194 + $0x79] sm:$0xff]
      %v391 = vld [vmem:[%s194 + $0x81] sm:$0xff]
      %v392 = vld [vmem:[%s194 + $0x91] sm:$0xff]
      %v393 = vld [vmem:[%s194 + $0x99] sm:$0xff]
      %v394 = vld [vmem:[%s194 + $0xa9] sm:$0xff]
      %v395 = vld [vmem:[%s194 + $0xb1] sm:$0xff]
      %v396 = vpack.c.bf16 %v381, %v380
      %v397 = vpack.c.bf16 %v383, %v382
      %v398 = vpack.c.bf16 %v385, %v384
      %v399 = vpack.c.bf16 %v387, %v386
      %v400 = vpack.c.bf16 %v389, %v388
      %v401 = vpack.c.bf16 %v391, %v390
      %v402 = vpack.c.bf16 %v393, %v392
      %v403 = vpack.c.bf16 %v395, %v394
      %v404 = vld [vmem:[#allocation2] sm:$0xff]
      %v405 = vld [vmem:[#allocation2 + $0x8] sm:$0xff]
      %v406 = vld [vmem:[#allocation2 + $0x10] sm:$0xff]
      %v407 = vld [vmem:[#allocation2 + $0x18] sm:$0xff]
      %v408 = vld [vmem:[#allocation2 + $0x20] sm:$0xff]
      %v409 = vld [vmem:[#allocation2 + $0x28] sm:$0xff]
      %v410 = vld [vmem:[#allocation2 + $0x30] sm:$0xff]
      %v411 = vld [vmem:[#allocation2 + $0x38] sm:$0xff]
      %v412 = vld [vmem:[#allocation2 + $0x40] sm:$0xff]
      %v413 = vld [vmem:[#allocation2 + $0x48] sm:$0xff]
      %v414 = vld [vmem:[#allocation2 + $0x50] sm:$0xff]
      %v415 = vld [vmem:[#allocation2 + $0x58] sm:$0xff]
      %v416 = vld [vmem:[#allocation2 + $0x60] sm:$0xff]
      %v417 = vld [vmem:[#allocation2 + $0x68] sm:$0xff]
      %v418 = vld [vmem:[#allocation2 + $0x70] sm:$0xff]
      %v419 = vld [vmem:[#allocation2 + $0x78] sm:$0xff]
      %s420 = scalar_lea.vmem %s1, 64
      %v421 = vld [vmem:[%s420] sm:$0xf]
      %v422 = vld [vmem:[%s420 + $0x4] sm:$0xf]
      %v423 = vld [vmem:[%s420 + $0x8] sm:$0xf]
      %v424 = vld [vmem:[%s420 + $0xc] sm:$0xf]
      %v425 = vld [vmem:[%s420 + $0x10] sm:$0xf]
      %v426 = vld [vmem:[%s420 + $0x14] sm:$0xf]
      %v427 = vld [vmem:[%s420 + $0x18] sm:$0xf]
      %v428 = vld [vmem:[%s420 + $0x1c] sm:$0xf]
      %v429 = vld [vmem:[%s420 + $0x20] sm:$0xf]
      %v430 = vld [vmem:[%s420 + $0x24] sm:$0xf]
      %v431 = vld [vmem:[%s420 + $0x28] sm:$0xf]
      %v432 = vld [vmem:[%s420 + $0x2c] sm:$0xf]
      %v433 = vld [vmem:[%s420 + $0x30] sm:$0xf]
      %v434 = vld [vmem:[%s420 + $0x34] sm:$0xf]
      %v435 = vld [vmem:[%s420 + $0x38] sm:$0xf]
      %v436 = vld [vmem:[%s420 + $0x3c] sm:$0xf]
      %v453 = vunpack.c.l.b16 %v421
      %v454 = vunpack.c.l.b16 %v422
      %v455 = vunpack.c.l.b16 %v423
      %v456 = vunpack.c.l.b16 %v424
      %v457 = vunpack.c.l.b16 %v425
      %v458 = vunpack.c.l.b16 %v426
      %v459 = vunpack.c.l.b16 %v427
      %v460 = vunpack.c.l.b16 %v428
      %v461 = vunpack.c.l.b16 %v429
      %v462 = vunpack.c.l.b16 %v430
      %v463 = vunpack.c.l.b16 %v431
      %v464 = vunpack.c.l.b16 %v432
      %v465 = vunpack.c.l.b16 %v433
      %v466 = vunpack.c.l.b16 %v434
      %v467 = vunpack.c.l.b16 %v435
      %v468 = vunpack.c.l.b16 %v436
      %v469 = vpack.c.b16 %v454, %v453
      %v470 = vpack.c.b16 %v456, %v455
      %v471 = vpack.c.b16 %v458, %v457
      %v472 = vpack.c.b16 %v460, %v459
      %v473 = vpack.c.b16 %v462, %v461
      %v474 = vpack.c.b16 %v464, %v463
      %v475 = vpack.c.b16 %v466, %v465
      %v476 = vpack.c.b16 %v468, %v467
      %485 = vmatpush.bf16.msra.mxu0 %v476
      %486 = vmatpush.bf16.msra.mxu0 %v475
      %487 = vmatpush.bf16.msra.mxu0 %v474
      %488 = vmatpush.bf16.msra.mxu0 %v473
      %489 = vmatpush.bf16.msra.mxu0 %v472
      %490 = vmatpush.bf16.msra.mxu0 %v471
      %491 = vmatpush.bf16.msra.mxu0 %v470
      %492 = vmatpush.bf16.msra.mxu0 %v469
      %493 = vmatmul.bf16.gmra.mxu0 %v396
      %v494 = vpop.f32.mrf.mxu0
      %v495 = vadd.f32 0.0, %v494
      %v496 = vpop.f32.mrf.mxu0
      %v497 = vadd.f32 0.0, %v496
      %498 = vmatmul.bf16.gmra.mxu0 %v397
      %v499 = vpop.f32.mrf.mxu0
      %v500 = vadd.f32 0.0, %v499
      %v501 = vpop.f32.mrf.mxu0
      %v502 = vadd.f32 0.0, %v501
      %503 = vmatmul.bf16.gmra.mxu0 %v398
      %v504 = vpop.f32.mrf.mxu0
      %v505 = vadd.f32 0.0, %v504
      %v506 = vpop.f32.mrf.mxu0
      %v507 = vadd.f32 0.0, %v506
      %508 = vmatmul.bf16.gmra.mxu0 %v399
      %v509 = vpop.f32.mrf.mxu0
      %v510 = vadd.f32 0.0, %v509
      %v511 = vpop.f32.mrf.mxu0
      %v512 = vadd.f32 0.0, %v511
      %513 = vmatmul.bf16.gmra.mxu0 %v400
      %v514 = vpop.f32.mrf.mxu0
      %v515 = vadd.f32 0.0, %v514
      %v516 = vpop.f32.mrf.mxu0
      %v517 = vadd.f32 0.0, %v516
      %518 = vmatmul.bf16.gmra.mxu0 %v401
      %v519 = vpop.f32.mrf.mxu0
      %v520 = vadd.f32 0.0, %v519
      %v521 = vpop.f32.mrf.mxu0
      %v522 = vadd.f32 0.0, %v521
      %523 = vmatmul.bf16.gmra.mxu0 %v402
      %v524 = vpop.f32.mrf.mxu0
      %v525 = vadd.f32 0.0, %v524
      %v526 = vpop.f32.mrf.mxu0
      %v527 = vadd.f32 0.0, %v526
      %528 = vmatmul.bf16.gmra.mxu0 %v403
      %v529 = vpop.f32.mrf.mxu0
      %v530 = vadd.f32 0.0, %v529
      %v531 = vpop.f32.mrf.mxu0
      %v532 = vadd.f32 0.0, %v531
      %533 = vdwg.mxu0
      %v534 = vadd.f32 %v404, %v495
      %v535 = vadd.f32 %v405, %v497
      %v536 = vadd.f32 %v406, %v500
      %v537 = vadd.f32 %v407, %v502
      %v538 = vadd.f32 %v408, %v505
      %v539 = vadd.f32 %v409, %v507
      %v540 = vadd.f32 %v410, %v510
      %v541 = vadd.f32 %v411, %v512
      %v542 = vadd.f32 %v412, %v515
      %v543 = vadd.f32 %v413, %v517
      %v544 = vadd.f32 %v414, %v520
      %v545 = vadd.f32 %v415, %v522
      %v546 = vadd.f32 %v416, %v525
      %v547 = vadd.f32 %v417, %v527
      %v548 = vadd.f32 %v418, %v530
      %v549 = vadd.f32 %v419, %v532
      %550 = vst [vmem:[#allocation2] sm:$0xff] %v534
      %551 = vst [vmem:[#allocation2 + $0x8] sm:$0xff] %v535
      %552 = vst [vmem:[#allocation2 + $0x10] sm:$0xff] %v536
      %553 = vst [vmem:[#allocation2 + $0x18] sm:$0xff] %v537
      %554 = vst [vmem:[#allocation2 + $0x20] sm:$0xff] %v538
      %555 = vst [vmem:[#allocation2 + $0x28] sm:$0xff] %v539
      %556 = vst [vmem:[#allocation2 + $0x30] sm:$0xff] %v540
      %557 = vst [vmem:[#allocation2 + $0x38] sm:$0xff] %v541
      %558 = vst [vmem:[#allocation2 + $0x40] sm:$0xff] %v542
      %559 = vst [vmem:[#allocation2 + $0x48] sm:$0xff] %v543
      %560 = vst [vmem:[#allocation2 + $0x50] sm:$0xff] %v544
      %561 = vst [vmem:[#allocation2 + $0x58] sm:$0xff] %v545
      %562 = vst [vmem:[#allocation2 + $0x60] sm:$0xff] %v546
      %563 = vst [vmem:[#allocation2 + $0x68] sm:$0xff] %v547
      %564 = vst [vmem:[#allocation2 + $0x70] sm:$0xff] %v548
      %565 = vst [vmem:[#allocation2 + $0x78] sm:$0xff] %v549
      %v566 = vld [vmem:[%s194 + $0x2] sm:$0xff]
      %v567 = vld [vmem:[%s194 + $0xa] sm:$0xff]
      %v568 = vld [vmem:[%s194 + $0x1a] sm:$0xff]
      %v569 = vld [vmem:[%s194 + $0x22] sm:$0xff]
      %v570 = vld [vmem:[%s194 + $0x32] sm:$0xff]
      %v571 = vld [vmem:[%s194 + $0x3a] sm:$0xff]
      %v572 = vld [vmem:[%s194 + $0x4a] sm:$0xff]
      %v573 = vld [vmem:[%s194 + $0x52] sm:$0xff]
      %v574 = vld [vmem:[%s194 + $0x62] sm:$0xff]
      %v575 = vld [vmem:[%s194 + $0x6a] sm:$0xff]
      %v576 = vld [vmem:[%s194 + $0x7a] sm:$0xff]
      %v577 = vld [vmem:[%s194 + $0x82] sm:$0xff]
      %v578 = vld [vmem:[%s194 + $0x92] sm:$0xff]
      %v579 = vld [vmem:[%s194 + $0x9a] sm:$0xff]
      %v580 = vld [vmem:[%s194 + $0xaa] sm:$0xff]
      %v581 = vld [vmem:[%s194 + $0xb2] sm:$0xff]
      %v582 = vpack.c.bf16 %v567, %v566
      %v583 = vpack.c.bf16 %v569, %v568
      %v584 = vpack.c.bf16 %v571, %v570
      %v585 = vpack.c.bf16 %v573, %v572
      %v586 = vpack.c.bf16 %v575, %v574
      %v587 = vpack.c.bf16 %v577, %v576
      %v588 = vpack.c.bf16 %v579, %v578
      %v589 = vpack.c.bf16 %v581, %v580
      %v590 = vld [vmem:[#allocation2] sm:$0xff]
      %v591 = vld [vmem:[#allocation2 + $0x8] sm:$0xff]
      %v592 = vld [vmem:[#allocation2 + $0x10] sm:$0xff]
      %v593 = vld [vmem:[#allocation2 + $0x18] sm:$0xff]
      %v594 = vld [vmem:[#allocation2 + $0x20] sm:$0xff]
      %v595 = vld [vmem:[#allocation2 + $0x28] sm:$0xff]
      %v596 = vld [vmem:[#allocation2 + $0x30] sm:$0xff]
      %v597 = vld [vmem:[#allocation2 + $0x38] sm:$0xff]
      %v598 = vld [vmem:[#allocation2 + $0x40] sm:$0xff]
      %v599 = vld [vmem:[#allocation2 + $0x48] sm:$0xff]
      %v600 = vld [vmem:[#allocation2 + $0x50] sm:$0xff]
      %v601 = vld [vmem:[#allocation2 + $0x58] sm:$0xff]
      %v602 = vld [vmem:[#allocation2 + $0x60] sm:$0xff]
      %v603 = vld [vmem:[#allocation2 + $0x68] sm:$0xff]
      %v604 = vld [vmem:[#allocation2 + $0x70] sm:$0xff]
      %v605 = vld [vmem:[#allocation2 + $0x78] sm:$0xff]
      %s606 = scalar_lea.vmem %s1, 128
      %v607 = vld [vmem:[%s606] sm:$0xf]
      %v608 = vld [vmem:[%s606 + $0x4] sm:$0xf]
      %v609 = vld [vmem:[%s606 + $0x8] sm:$0xf]
      %v610 = vld [vmem:[%s606 + $0xc] sm:$0xf]
      %v611 = vld [vmem:[%s606 + $0x10] sm:$0xf]
      %v612 = vld [vmem:[%s606 + $0x14] sm:$0xf]
      %v613 = vld [vmem:[%s606 + $0x18] sm:$0xf]
      %v614 = vld [vmem:[%s606 + $0x1c] sm:$0xf]
      %v615 = vld [vmem:[%s606 + $0x20] sm:$0xf]
      %v616 = vld [vmem:[%s606 + $0x24] sm:$0xf]
      %v617 = vld [vmem:[%s606 + $0x28] sm:$0xf]
      %v618 = vld [vmem:[%s606 + $0x2c] sm:$0xf]
      %v619 = vld [vmem:[%s606 + $0x30] sm:$0xf]
      %v620 = vld [vmem:[%s606 + $0x34] sm:$0xf]
      %v621 = vld [vmem:[%s606 + $0x38] sm:$0xf]
      %v622 = vld [vmem:[%s606 + $0x3c] sm:$0xf]
      %v639 = vunpack.c.l.b16 %v607
      %v640 = vunpack.c.l.b16 %v608
      %v641 = vunpack.c.l.b16 %v609
      %v642 = vunpack.c.l.b16 %v610
      %v643 = vunpack.c.l.b16 %v611
      %v644 = vunpack.c.l.b16 %v612
      %v645 = vunpack.c.l.b16 %v613
      %v646 = vunpack.c.l.b16 %v614
      %v647 = vunpack.c.l.b16 %v615
      %v648 = vunpack.c.l.b16 %v616
      %v649 = vunpack.c.l.b16 %v617
      %v650 = vunpack.c.l.b16 %v618
      %v651 = vunpack.c.l.b16 %v619
      %v652 = vunpack.c.l.b16 %v620
      %v653 = vunpack.c.l.b16 %v621
      %v654 = vunpack.c.l.b16 %v622
      %v655 = vpack.c.b16 %v640, %v639
      %v656 = vpack.c.b16 %v642, %v641
      %v657 = vpack.c.b16 %v644, %v643
      %v658 = vpack.c.b16 %v646, %v645
      %v659 = vpack.c.b16 %v648, %v647
      %v660 = vpack.c.b16 %v650, %v649
      %v661 = vpack.c.b16 %v652, %v651
      %v662 = vpack.c.b16 %v654, %v653
      %671 = vmatpush.bf16.msra.mxu0 %v662
      %672 = vmatpush.bf16.msra.mxu0 %v661
      %673 = vmatpush.bf16.msra.mxu0 %v660
      %674 = vmatpush.bf16.msra.mxu0 %v659
      %675 = vmatpush.bf16.msra.mxu0 %v658
      %676 = vmatpush.bf16.msra.mxu0 %v657
      %677 = vmatpush.bf16.msra.mxu0 %v656
      %678 = vmatpush.bf16.msra.mxu0 %v655
      %679 = vmatmul.bf16.gmra.mxu0 %v582
      %v680 = vpop.f32.mrf.mxu0
      %v681 = vadd.f32 0.0, %v680
      %v682 = vpop.f32.mrf.mxu0
      %v683 = vadd.f32 0.0, %v682
      %684 = vmatmul.bf16.gmra.mxu0 %v583
      %v685 = vpop.f32.mrf.mxu0
      %v686 = vadd.f32 0.0, %v685
      %v687 = vpop.f32.mrf.mxu0
      %v688 = vadd.f32 0.0, %v687
      %689 = vmatmul.bf16.gmra.mxu0 %v584
      %v690 = vpop.f32.mrf.mxu0
      %v691 = vadd.f32 0.0, %v690
      %v692 = vpop.f32.mrf.mxu0
      %v693 = vadd.f32 0.0, %v692
      %694 = vmatmul.bf16.gmra.mxu0 %v585
      %v695 = vpop.f32.mrf.mxu0
      %v696 = vadd.f32 0.0, %v695
      %v697 = vpop.f32.mrf.mxu0
      %v698 = vadd.f32 0.0, %v697
      %699 = vmatmul.bf16.gmra.mxu0 %v586
      %v700 = vpop.f32.mrf.mxu0
      %v701 = vadd.f32 0.0, %v700
      %v702 = vpop.f32.mrf.mxu0
      %v703 = vadd.f32 0.0, %v702
      %704 = vmatmul.bf16.gmra.mxu0 %v587
      %v705 = vpop.f32.mrf.mxu0
      %v706 = vadd.f32 0.0, %v705
      %v707 = vpop.f32.mrf.mxu0
      %v708 = vadd.f32 0.0, %v707
      %709 = vmatmul.bf16.gmra.mxu0 %v588
      %v710 = vpop.f32.mrf.mxu0
      %v711 = vadd.f32 0.0, %v710
      %v712 = vpop.f32.mrf.mxu0
      %v713 = vadd.f32 0.0, %v712
      %714 = vmatmul.bf16.gmra.mxu0 %v589
      %v715 = vpop.f32.mrf.mxu0
      %v716 = vadd.f32 0.0, %v715
      %v717 = vpop.f32.mrf.mxu0
      %v718 = vadd.f32 0.0, %v717
      %719 = vdwg.mxu0
      %v720 = vadd.f32 %v590, %v681
      %v721 = vadd.f32 %v591, %v683
      %v722 = vadd.f32 %v592, %v686
      %v723 = vadd.f32 %v593, %v688
      %v724 = vadd.f32 %v594, %v691
      %v725 = vadd.f32 %v595, %v693
      %v726 = vadd.f32 %v596, %v696
      %v727 = vadd.f32 %v597, %v698
      %v728 = vadd.f32 %v598, %v701
      %v729 = vadd.f32 %v599, %v703
      %v730 = vadd.f32 %v600, %v706
      %v731 = vadd.f32 %v601, %v708
      %v732 = vadd.f32 %v602, %v711
      %v733 = vadd.f32 %v603, %v713
      %v734 = vadd.f32 %v604, %v716
      %v735 = vadd.f32 %v605, %v718
      %736 = vst [vmem:[#allocation2] sm:$0xff] %v720
      %737 = vst [vmem:[#allocation2 + $0x8] sm:$0xff] %v721
      %738 = vst [vmem:[#allocation2 + $0x10] sm:$0xff] %v722
      %739 = vst [vmem:[#allocation2 + $0x18] sm:$0xff] %v723
      %740 = vst [vmem:[#allocation2 + $0x20] sm:$0xff] %v724
      %741 = vst [vmem:[#allocation2 + $0x28] sm:$0xff] %v725
      %742 = vst [vmem:[#allocation2 + $0x30] sm:$0xff] %v726
      %743 = vst [vmem:[#allocation2 + $0x38] sm:$0xff] %v727
      %744 = vst [vmem:[#allocation2 + $0x40] sm:$0xff] %v728
      %745 = vst [vmem:[#allocation2 + $0x48] sm:$0xff] %v729
      %746 = vst [vmem:[#allocation2 + $0x50] sm:$0xff] %v730
      %747 = vst [vmem:[#allocation2 + $0x58] sm:$0xff] %v731
      %748 = vst [vmem:[#allocation2 + $0x60] sm:$0xff] %v732
      %749 = vst [vmem:[#allocation2 + $0x68] sm:$0xff] %v733
      %750 = vst [vmem:[#allocation2 + $0x70] sm:$0xff] %v734
      %751 = vst [vmem:[#allocation2 + $0x78] sm:$0xff] %v735
      %s752 = sadd.s32 %s174, 1
      %s753 = smul.u32 %s752, 24
      %s754 = sadd.s32 %s753, %s192
      %s755 = scalar_lea.vmem %s0, %s754
      %v756 = vld [vmem:[%s755] sm:$0xff]
      %v757 = vld [vmem:[%s755 + $0x8] sm:$0xff]
      %v758 = vld [vmem:[%s755 + $0x18] sm:$0xff]
      %v759 = vld [vmem:[%s755 + $0x20] sm:$0xff]
      %v760 = vld [vmem:[%s755 + $0x30] sm:$0xff]
      %v761 = vld [vmem:[%s755 + $0x38] sm:$0xff]
      %v762 = vld [vmem:[%s755 + $0x48] sm:$0xff]
      %v763 = vld [vmem:[%s755 + $0x50] sm:$0xff]
      %v764 = vld [vmem:[%s755 + $0x60] sm:$0xff]
      %v765 = vld [vmem:[%s755 + $0x68] sm:$0xff]
      %v766 = vld [vmem:[%s755 + $0x78] sm:$0xff]
      %v767 = vld [vmem:[%s755 + $0x80] sm:$0xff]
      %v768 = vld [vmem:[%s755 + $0x90] sm:$0xff]
      %v769 = vld [vmem:[%s755 + $0x98] sm:$0xff]
      %v770 = vld [vmem:[%s755 + $0xa8] sm:$0xff]
      %v771 = vld [vmem:[%s755 + $0xb0] sm:$0xff]
      %v772 = vpack.c.bf16 %v757, %v756
      %v773 = vpack.c.bf16 %v759, %v758
      %v774 = vpack.c.bf16 %v761, %v760
      %v775 = vpack.c.bf16 %v763, %v762
      %v776 = vpack.c.bf16 %v765, %v764
      %v777 = vpack.c.bf16 %v767, %v766
      %v778 = vpack.c.bf16 %v769, %v768
      %v779 = vpack.c.bf16 %v771, %v770
      %v780 = vld [vmem:[#allocation2] sm:$0xff]
      %v781 = vld [vmem:[#allocation2 + $0x8] sm:$0xff]
      %v782 = vld [vmem:[#allocation2 + $0x10] sm:$0xff]
      %v783 = vld [vmem:[#allocation2 + $0x18] sm:$0xff]
      %v784 = vld [vmem:[#allocation2 + $0x20] sm:$0xff]
      %v785 = vld [vmem:[#allocation2 + $0x28] sm:$0xff]
      %v786 = vld [vmem:[#allocation2 + $0x30] sm:$0xff]
      %v787 = vld [vmem:[#allocation2 + $0x38] sm:$0xff]
      %v788 = vld [vmem:[#allocation2 + $0x40] sm:$0xff]
      %v789 = vld [vmem:[#allocation2 + $0x48] sm:$0xff]
      %v790 = vld [vmem:[#allocation2 + $0x50] sm:$0xff]
      %v791 = vld [vmem:[#allocation2 + $0x58] sm:$0xff]
      %v792 = vld [vmem:[#allocation2 + $0x60] sm:$0xff]
      %v793 = vld [vmem:[#allocation2 + $0x68] sm:$0xff]
      %v794 = vld [vmem:[#allocation2 + $0x70] sm:$0xff]
      %v795 = vld [vmem:[#allocation2 + $0x78] sm:$0xff]
      %s796 = scalar_lea.vmem %s1, 192
      %v797 = vld [vmem:[%s796] sm:$0xf]
      %v798 = vld [vmem:[%s796 + $0x4] sm:$0xf]
      %v799 = vld [vmem:[%s796 + $0x8] sm:$0xf]
      %v800 = vld [vmem:[%s796 + $0xc] sm:$0xf]
      %v801 = vld [vmem:[%s796 + $0x10] sm:$0xf]
      %v802 = vld [vmem:[%s796 + $0x14] sm:$0xf]
      %v803 = vld [vmem:[%s796 + $0x18] sm:$0xf]
      %v804 = vld [vmem:[%s796 + $0x1c] sm:$0xf]
      %v805 = vld [vmem:[%s796 + $0x20] sm:$0xf]
      %v806 = vld [vmem:[%s796 + $0x24] sm:$0xf]
      %v807 = vld [vmem:[%s796 + $0x28] sm:$0xf]
      %v808 = vld [vmem:[%s796 + $0x2c] sm:$0xf]
      %v809 = vld [vmem:[%s796 + $0x30] sm:$0xf]
      %v810 = vld [vmem:[%s796 + $0x34] sm:$0xf]
      %v811 = vld [vmem:[%s796 + $0x38] sm:$0xf]
      %v812 = vld [vmem:[%s796 + $0x3c] sm:$0xf]
      %v829 = vunpack.c.l.b16 %v797
      %v830 = vunpack.c.l.b16 %v798
      %v831 = vunpack.c.l.b16 %v799
      %v832 = vunpack.c.l.b16 %v800
      %v833 = vunpack.c.l.b16 %v801
      %v834 = vunpack.c.l.b16 %v802
      %v835 = vunpack.c.l.b16 %v803
      %v836 = vunpack.c.l.b16 %v804
      %v837 = vunpack.c.l.b16 %v805
      %v838 = vunpack.c.l.b16 %v806
      %v839 = vunpack.c.l.b16 %v807
      %v840 = vunpack.c.l.b16 %v808
      %v841 = vunpack.c.l.b16 %v809
      %v842 = vunpack.c.l.b16 %v810
      %v843 = vunpack.c.l.b16 %v811
      %v844 = vunpack.c.l.b16 %v812
      %v845 = vpack.c.b16 %v830, %v829
      %v846 = vpack.c.b16 %v832, %v831
      %v847 = vpack.c.b16 %v834, %v833
      %v848 = vpack.c.b16 %v836, %v835
      %v849 = vpack.c.b16 %v838, %v837
      %v850 = vpack.c.b16 %v840, %v839
      %v851 = vpack.c.b16 %v842, %v841
      %v852 = vpack.c.b16 %v844, %v843
      %861 = vmatpush.bf16.msra.mxu0 %v852
      %862 = vmatpush.bf16.msra.mxu0 %v851
      %863 = vmatpush.bf16.msra.mxu0 %v850
      %864 = vmatpush.bf16.msra.mxu0 %v849
      %865 = vmatpush.bf16.msra.mxu0 %v848
      %866 = vmatpush.bf16.msra.mxu0 %v847
      %867 = vmatpush.bf16.msra.mxu0 %v846
      %868 = vmatpush.bf16.msra.mxu0 %v845
      %869 = vmatmul.bf16.gmra.mxu0 %v772
      %v870 = vpop.f32.mrf.mxu0
      %v871 = vadd.f32 0.0, %v870
      %v872 = vpop.f32.mrf.mxu0
      %v873 = vadd.f32 0.0, %v872
      %874 = vmatmul.bf16.gmra.mxu0 %v773
      %v875 = vpop.f32.mrf.mxu0
      %v876 = vadd.f32 0.0, %v875
      %v877 = vpop.f32.mrf.mxu0
      %v878 = vadd.f32 0.0, %v877
      %879 = vmatmul.bf16.gmra.mxu0 %v774
      %v880 = vpop.f32.mrf.mxu0
      %v881 = vadd.f32 0.0, %v880
      %v882 = vpop.f32.mrf.mxu0
      %v883 = vadd.f32 0.0, %v882
      %884 = vmatmul.bf16.gmra.mxu0 %v775
      %v885 = vpop.f32.mrf.mxu0
      %v886 = vadd.f32 0.0, %v885
      %v887 = vpop.f32.mrf.mxu0
      %v888 = vadd.f32 0.0, %v887
      %889 = vmatmul.bf16.gmra.mxu0 %v776
      %v890 = vpop.f32.mrf.mxu0
      %v891 = vadd.f32 0.0, %v890
      %v892 = vpop.f32.mrf.mxu0
      %v893 = vadd.f32 0.0, %v892
      %894 = vmatmul.bf16.gmra.mxu0 %v777
      %v895 = vpop.f32.mrf.mxu0
      %v896 = vadd.f32 0.0, %v895
      %v897 = vpop.f32.mrf.mxu0
      %v898 = vadd.f32 0.0, %v897
      %899 = vmatmul.bf16.gmra.mxu0 %v778
      %v900 = vpop.f32.mrf.mxu0
      %v901 = vadd.f32 0.0, %v900
      %v902 = vpop.f32.mrf.mxu0
      %v903 = vadd.f32 0.0, %v902
      %904 = vmatmul.bf16.gmra.mxu0 %v779
      %v905 = vpop.f32.mrf.mxu0
      %v906 = vadd.f32 0.0, %v905
      %v907 = vpop.f32.mrf.mxu0
      %v908 = vadd.f32 0.0, %v907
      %909 = vdwg.mxu0
      %v910 = vadd.f32 %v780, %v871
      %v911 = vadd.f32 %v781, %v873
      %v912 = vadd.f32 %v782, %v876
      %v913 = vadd.f32 %v783, %v878
      %v914 = vadd.f32 %v784, %v881
      %v915 = vadd.f32 %v785, %v883
      %v916 = vadd.f32 %v786, %v886
      %v917 = vadd.f32 %v787, %v888
      %v918 = vadd.f32 %v788, %v891
      %v919 = vadd.f32 %v789, %v893
      %v920 = vadd.f32 %v790, %v896
      %v921 = vadd.f32 %v791, %v898
      %v922 = vadd.f32 %v792, %v901
      %v923 = vadd.f32 %v793, %v903
      %v924 = vadd.f32 %v794, %v906
      %v925 = vadd.f32 %v795, %v908
      %926 = vst [vmem:[#allocation2] sm:$0xff] %v910
      %927 = vst [vmem:[#allocation2 + $0x8] sm:$0xff] %v911
      %928 = vst [vmem:[#allocation2 + $0x10] sm:$0xff] %v912
      %929 = vst [vmem:[#allocation2 + $0x18] sm:$0xff] %v913
      %930 = vst [vmem:[#allocation2 + $0x20] sm:$0xff] %v914
      %931 = vst [vmem:[#allocation2 + $0x28] sm:$0xff] %v915
      %932 = vst [vmem:[#allocation2 + $0x30] sm:$0xff] %v916
      %933 = vst [vmem:[#allocation2 + $0x38] sm:$0xff] %v917
      %934 = vst [vmem:[#allocation2 + $0x40] sm:$0xff] %v918
      %935 = vst [vmem:[#allocation2 + $0x48] sm:$0xff] %v919
      %936 = vst [vmem:[#allocation2 + $0x50] sm:$0xff] %v920
      %937 = vst [vmem:[#allocation2 + $0x58] sm:$0xff] %v921
      %938 = vst [vmem:[#allocation2 + $0x60] sm:$0xff] %v922
      %939 = vst [vmem:[#allocation2 + $0x68] sm:$0xff] %v923
      %940 = vst [vmem:[#allocation2 + $0x70] sm:$0xff] %v924
      %941 = vst [vmem:[#allocation2 + $0x78] sm:$0xff] %v925
      %v942 = vld [vmem:[%s755 + $0x1] sm:$0xff]
      %v943 = vld [vmem:[%s755 + $0x9] sm:$0xff]
      %v944 = vld [vmem:[%s755 + $0x19] sm:$0xff]
      %v945 = vld [vmem:[%s755 + $0x21] sm:$0xff]
      %v946 = vld [vmem:[%s755 + $0x31] sm:$0xff]
      %v947 = vld [vmem:[%s755 + $0x39] sm:$0xff]
      %v948 = vld [vmem:[%s755 + $0x49] sm:$0xff]
      %v949 = vld [vmem:[%s755 + $0x51] sm:$0xff]
      %v950 = vld [vmem:[%s755 + $0x61] sm:$0xff]
      %v951 = vld [vmem:[%s755 + $0x69] sm:$0xff]
      %v952 = vld [vmem:[%s755 + $0x79] sm:$0xff]
      %v953 = vld [vmem:[%s755 + $0x81] sm:$0xff]
      %v954 = vld [vmem:[%s755 + $0x91] sm:$0xff]
      %v955 = vld [vmem:[%s755 + $0x99] sm:$0xff]
      %v956 = vld [vmem:[%s755 + $0xa9] sm:$0xff]
      %v957 = vld [vmem:[%s755 + $0xb1] sm:$0xff]
      %v958 = vpack.c.bf16 %v943, %v942
      %v959 = vpack.c.bf16 %v945, %v944
      %v960 = vpack.c.bf16 %v947, %v946
      %v961 = vpack.c.bf16 %v949, %v948
      %v962 = vpack.c.bf16 %v951, %v950
      %v963 = vpack.c.bf16 %v953, %v952
      %v964 = vpack.c.bf16 %v955, %v954
      %v965 = vpack.c.bf16 %v957, %v956
      %v966 = vld [vmem:[#allocation2] sm:$0xff]
      %v967 = vld [vmem:[#allocation2 + $0x8] sm:$0xff]
      %v968 = vld [vmem:[#allocation2 + $0x10] sm:$0xff]
      %v969 = vld [vmem:[#allocation2 + $0x18] sm:$0xff]
      %v970 = vld [vmem:[#allocation2 + $0x20] sm:$0xff]
      %v971 = vld [vmem:[#allocation2 + $0x28] sm:$0xff]
      %v972 = vld [vmem:[#allocation2 + $0x30] sm:$0xff]
      %v973 = vld [vmem:[#allocation2 + $0x38] sm:$0xff]
      %v974 = vld [vmem:[#allocation2 + $0x40] sm:$0xff]
      %v975 = vld [vmem:[#allocation2 + $0x48] sm:$0xff]
      %v976 = vld [vmem:[#allocation2 + $0x50] sm:$0xff]
      %v977 = vld [vmem:[#allocation2 + $0x58] sm:$0xff]
      %v978 = vld [vmem:[#allocation2 + $0x60] sm:$0xff]
      %v979 = vld [vmem:[#allocation2 + $0x68] sm:$0xff]
      %v980 = vld [vmem:[#allocation2 + $0x70] sm:$0xff]
      %v981 = vld [vmem:[#allocation2 + $0x78] sm:$0xff]
      %s982 = scalar_lea.vmem %s1, 256
      %v983 = vld [vmem:[%s982] sm:$0xf]
      %v984 = vld [vmem:[%s982 + $0x4] sm:$0xf]
      %v985 = vld [vmem:[%s982 + $0x8] sm:$0xf]
      %v986 = vld [vmem:[%s982 + $0xc] sm:$0xf]
      %v987 = vld [vmem:[%s982 + $0x10] sm:$0xf]
      %v988 = vld [vmem:[%s982 + $0x14] sm:$0xf]
      %v989 = vld [vmem:[%s982 + $0x18] sm:$0xf]
      %v990 = vld [vmem:[%s982 + $0x1c] sm:$0xf]
      %v991 = vld [vmem:[%s982 + $0x20] sm:$0xf]
      %v992 = vld [vmem:[%s982 + $0x24] sm:$0xf]
      %v993 = vld [vmem:[%s982 + $0x28] sm:$0xf]
      %v994 = vld [vmem:[%s982 + $0x2c] sm:$0xf]
      %v995 = vld [vmem:[%s982 + $0x30] sm:$0xf]
      %v996 = vld [vmem:[%s982 + $0x34] sm:$0xf]
      %v997 = vld [vmem:[%s982 + $0x38] sm:$0xf]
      %v998 = vld [vmem:[%s982 + $0x3c] sm:$0xf]
      %v1015 = vunpack.c.l.b16 %v983
      %v1016 = vunpack.c.l.b16 %v984
      %v1017 = vunpack.c.l.b16 %v985
      %v1018 = vunpack.c.l.b16 %v986
      %v1019 = vunpack.c.l.b16 %v987
      %v1020 = vunpack.c.l.b16 %v988
      %v1021 = vunpack.c.l.b16 %v989
      %v1022 = vunpack.c.l.b16 %v990
      %v1023 = vunpack.c.l.b16 %v991
      %v1024 = vunpack.c.l.b16 %v992
      %v1025 = vunpack.c.l.b16 %v993
      %v1026 = vunpack.c.l.b16 %v994
      %v1027 = vunpack.c.l.b16 %v995
      %v1028 = vunpack.c.l.b16 %v996
      %v1029 = vunpack.c.l.b16 %v997
      %v1030 = vunpack.c.l.b16 %v998
      %v1031 = vpack.c.b16 %v1016, %v1015
      %v1032 = vpack.c.b16 %v1018, %v1017
      %v1033 = vpack.c.b16 %v1020, %v1019
      %v1034 = vpack.c.b16 %v1022, %v1021
      %v1035 = vpack.c.b16 %v1024, %v1023
      %v1036 = vpack.c.b16 %v1026, %v1025
      %v1037 = vpack.c.b16 %v1028, %v1027
      %v1038 = vpack.c.b16 %v1030, %v1029
      %1047 = vmatpush.bf16.msra.mxu0 %v1038
      %1048 = vmatpush.bf16.msra.mxu0 %v1037
      %1049 = vmatpush.bf16.msra.mxu0 %v1036
      %1050 = vmatpush.bf16.msra.mxu0 %v1035
      %1051 = vmatpush.bf16.msra.mxu0 %v1034
      %1052 = vmatpush.bf16.msra.mxu0 %v1033
      %1053 = vmatpush.bf16.msra.mxu0 %v1032
      %1054 = vmatpush.bf16.msra.mxu0 %v1031
      %1055 = vmatmul.bf16.gmra.mxu0 %v958
      %v1056 = vpop.f32.mrf.mxu0
      %v1057 = vadd.f32 0.0, %v1056
      %v1058 = vpop.f32.mrf.mxu0
      %v1059 = vadd.f32 0.0, %v1058
      %1060 = vmatmul.bf16.gmra.mxu0 %v959
      %v1061 = vpop.f32.mrf.mxu0
      %v1062 = vadd.f32 0.0, %v1061
      %v1063 = vpop.f32.mrf.mxu0
      %v1064 = vadd.f32 0.0, %v1063
      %1065 = vmatmul.bf16.gmra.mxu0 %v960
      %v1066 = vpop.f32.mrf.mxu0
      %v1067 = vadd.f32 0.0, %v1066
      %v1068 = vpop.f32.mrf.mxu0
      %v1069 = vadd.f32 0.0, %v1068
      %1070 = vmatmul.bf16.gmra.mxu0 %v961
      %v1071 = vpop.f32.mrf.mxu0
      %v1072 = vadd.f32 0.0, %v1071
      %v1073 = vpop.f32.mrf.mxu0
      %v1074 = vadd.f32 0.0, %v1073
      %1075 = vmatmul.bf16.gmra.mxu0 %v962
      %v1076 = vpop.f32.mrf.mxu0
      %v1077 = vadd.f32 0.0, %v1076
      %v1078 = vpop.f32.mrf.mxu0
      %v1079 = vadd.f32 0.0, %v1078
      %1080 = vmatmul.bf16.gmra.mxu0 %v963
      %v1081 = vpop.f32.mrf.mxu0
      %v1082 = vadd.f32 0.0, %v1081
      %v1083 = vpop.f32.mrf.mxu0
      %v1084 = vadd.f32 0.0, %v1083
      %1085 = vmatmul.bf16.gmra.mxu0 %v964
      %v1086 = vpop.f32.mrf.mxu0
      %v1087 = vadd.f32 0.0, %v1086
      %v1088 = vpop.f32.mrf.mxu0
      %v1089 = vadd.f32 0.0, %v1088
      %1090 = vmatmul.bf16.gmra.mxu0 %v965
      %v1091 = vpop.f32.mrf.mxu0
      %v1092 = vadd.f32 0.0, %v1091
      %v1093 = vpop.f32.mrf.mxu0
      %v1094 = vadd.f32 0.0, %v1093
      %1095 = vdwg.mxu0
      %v1096 = vadd.f32 %v966, %v1057
      %v1097 = vadd.f32 %v967, %v1059
      %v1098 = vadd.f32 %v968, %v1062
      %v1099 = vadd.f32 %v969, %v1064
      %v1100 = vadd.f32 %v970, %v1067
      %v1101 = vadd.f32 %v971, %v1069
      %v1102 = vadd.f32 %v972, %v1072
      %v1103 = vadd.f32 %v973, %v1074
      %v1104 = vadd.f32 %v974, %v1077
      %v1105 = vadd.f32 %v975, %v1079
      %v1106 = vadd.f32 %v976, %v1082
      %v1107 = vadd.f32 %v977, %v1084
      %v1108 = vadd.f32 %v978, %v1087
      %v1109 = vadd.f32 %v979, %v1089
      %v1110 = vadd.f32 %v980, %v1092
      %v1111 = vadd.f32 %v981, %v1094
      %1112 = vst [vmem:[#allocation2] sm:$0xff] %v1096
      %1113 = vst [vmem:[#allocation2 + $0x8] sm:$0xff] %v1097
      %1114 = vst [vmem:[#allocation2 + $0x10] sm:$0xff] %v1098
      %1115 = vst [vmem:[#allocation2 + $0x18] sm:$0xff] %v1099
      %1116 = vst [vmem:[#allocation2 + $0x20] sm:$0xff] %v1100
      %1117 = vst [vmem:[#allocation2 + $0x28] sm:$0xff] %v1101
      %1118 = vst [vmem:[#allocation2 + $0x30] sm:$0xff] %v1102
      %1119 = vst [vmem:[#allocation2 + $0x38] sm:$0xff] %v1103
      %1120 = vst [vmem:[#allocation2 + $0x40] sm:$0xff] %v1104
      %1121 = vst [vmem:[#allocation2 + $0x48] sm:$0xff] %v1105
      %1122 = vst [vmem:[#allocation2 + $0x50] sm:$0xff] %v1106
      %1123 = vst [vmem:[#allocation2 + $0x58] sm:$0xff] %v1107
      %1124 = vst [vmem:[#allocation2 + $0x60] sm:$0xff] %v1108
      %1125 = vst [vmem:[#allocation2 + $0x68] sm:$0xff] %v1109
      %1126 = vst [vmem:[#allocation2 + $0x70] sm:$0xff] %v1110
      %1127 = vst [vmem:[#allocation2 + $0x78] sm:$0xff] %v1111
      %v1128 = vld [vmem:[%s755 + $0x2] sm:$0xff]
      %v1129 = vld [vmem:[%s755 + $0xa] sm:$0xff]
      %v1130 = vld [vmem:[%s755 + $0x1a] sm:$0xff]
      %v1131 = vld [vmem:[%s755 + $0x22] sm:$0xff]
      %v1132 = vld [vmem:[%s755 + $0x32] sm:$0xff]
      %v1133 = vld [vmem:[%s755 + $0x3a] sm:$0xff]
      %v1134 = vld [vmem:[%s755 + $0x4a] sm:$0xff]
      %v1135 = vld [vmem:[%s755 + $0x52] sm:$0xff]
      %v1136 = vld [vmem:[%s755 + $0x62] sm:$0xff]
      %v1137 = vld [vmem:[%s755 + $0x6a] sm:$0xff]
      %v1138 = vld [vmem:[%s755 + $0x7a] sm:$0xff]
      %v1139 = vld [vmem:[%s755 + $0x82] sm:$0xff]
      %v1140 = vld [vmem:[%s755 + $0x92] sm:$0xff]
      %v1141 = vld [vmem:[%s755 + $0x9a] sm:$0xff]
      %v1142 = vld [vmem:[%s755 + $0xaa] sm:$0xff]
      %v1143 = vld [vmem:[%s755 + $0xb2] sm:$0xff]
      %v1144 = vpack.c.bf16 %v1129, %v1128
      %v1145 = vpack.c.bf16 %v1131, %v1130
      %v1146 = vpack.c.bf16 %v1133, %v1132
      %v1147 = vpack.c.bf16 %v1135, %v1134
      %v1148 = vpack.c.bf16 %v1137, %v1136
      %v1149 = vpack.c.bf16 %v1139, %v1138
      %v1150 = vpack.c.bf16 %v1141, %v1140
      %v1151 = vpack.c.bf16 %v1143, %v1142
      %v1152 = vld [vmem:[#allocation2] sm:$0xff]
      %v1153 = vld [vmem:[#allocation2 + $0x8] sm:$0xff]
      %v1154 = vld [vmem:[#allocation2 + $0x10] sm:$0xff]
      %v1155 = vld [vmem:[#allocation2 + $0x18] sm:$0xff]
      %v1156 = vld [vmem:[#allocation2 + $0x20] sm:$0xff]
      %v1157 = vld [vmem:[#allocation2 + $0x28] sm:$0xff]
      %v1158 = vld [vmem:[#allocation2 + $0x30] sm:$0xff]
      %v1159 = vld [vmem:[#allocation2 + $0x38] sm:$0xff]
      %v1160 = vld [vmem:[#allocation2 + $0x40] sm:$0xff]
      %v1161 = vld [vmem:[#allocation2 + $0x48] sm:$0xff]
      %v1162 = vld [vmem:[#allocation2 + $0x50] sm:$0xff]
      %v1163 = vld [vmem:[#allocation2 + $0x58] sm:$0xff]
      %v1164 = vld [vmem:[#allocation2 + $0x60] sm:$0xff]
      %v1165 = vld [vmem:[#allocation2 + $0x68] sm:$0xff]
      %v1166 = vld [vmem:[#allocation2 + $0x70] sm:$0xff]
      %v1167 = vld [vmem:[#allocation2 + $0x78] sm:$0xff]
      %s1168 = scalar_lea.vmem %s1, 320
      %v1169 = vld [vmem:[%s1168] sm:$0xf]
      %v1170 = vld [vmem:[%s1168 + $0x4] sm:$0xf]
      %v1171 = vld [vmem:[%s1168 + $0x8] sm:$0xf]
      %v1172 = vld [vmem:[%s1168 + $0xc] sm:$0xf]
      %v1173 = vld [vmem:[%s1168 + $0x10] sm:$0xf]
      %v1174 = vld [vmem:[%s1168 + $0x14] sm:$0xf]
      %v1175 = vld [vmem:[%s1168 + $0x18] sm:$0xf]
      %v1176 = vld [vmem:[%s1168 + $0x1c] sm:$0xf]
      %v1177 = vld [vmem:[%s1168 + $0x20] sm:$0xf]
      %v1178 = vld [vmem:[%s1168 + $0x24] sm:$0xf]
      %v1179 = vld [vmem:[%s1168 + $0x28] sm:$0xf]
      %v1180 = vld [vmem:[%s1168 + $0x2c] sm:$0xf]
      %v1181 = vld [vmem:[%s1168 + $0x30] sm:$0xf]
      %v1182 = vld [vmem:[%s1168 + $0x34] sm:$0xf]
      %v1183 = vld [vmem:[%s1168 + $0x38] sm:$0xf]
      %v1184 = vld [vmem:[%s1168 + $0x3c] sm:$0xf]
      %v1201 = vunpack.c.l.b16 %v1169
      %v1202 = vunpack.c.l.b16 %v1170
      %v1203 = vunpack.c.l.b16 %v1171
      %v1204 = vunpack.c.l.b16 %v1172
      %v1205 = vunpack.c.l.b16 %v1173
      %v1206 = vunpack.c.l.b16 %v1174
      %v1207 = vunpack.c.l.b16 %v1175
      %v1208 = vunpack.c.l.b16 %v1176
      %v1209 = vunpack.c.l.b16 %v1177
      %v1210 = vunpack.c.l.b16 %v1178
      %v1211 = vunpack.c.l.b16 %v1179
      %v1212 = vunpack.c.l.b16 %v1180
      %v1213 = vunpack.c.l.b16 %v1181
      %v1214 = vunpack.c.l.b16 %v1182
      %v1215 = vunpack.c.l.b16 %v1183
      %v1216 = vunpack.c.l.b16 %v1184
      %v1217 = vpack.c.b16 %v1202, %v1201
      %v1218 = vpack.c.b16 %v1204, %v1203
      %v1219 = vpack.c.b16 %v1206, %v1205
      %v1220 = vpack.c.b16 %v1208, %v1207
      %v1221 = vpack.c.b16 %v1210, %v1209
      %v1222 = vpack.c.b16 %v1212, %v1211
      %v1223 = vpack.c.b16 %v1214, %v1213
      %v1224 = vpack.c.b16 %v1216, %v1215
      %1233 = vmatpush.bf16.msra.mxu0 %v1224
      %1234 = vmatpush.bf16.msra.mxu0 %v1223
      %1235 = vmatpush.bf16.msra.mxu0 %v1222
      %1236 = vmatpush.bf16.msra.mxu0 %v1221
      %1237 = vmatpush.bf16.msra.mxu0 %v1220
      %1238 = vmatpush.bf16.msra.mxu0 %v1219
      %1239 = vmatpush.bf16.msra.mxu0 %v1218
      %1240 = vmatpush.bf16.msra.mxu0 %v1217
      %1241 = vmatmul.bf16.gmra.mxu0 %v1144
      %v1242 = vpop.f32.mrf.mxu0
      %v1243 = vadd.f32 0.0, %v1242
      %v1244 = vpop.f32.mrf.mxu0
      %v1245 = vadd.f32 0.0, %v1244
      %1246 = vmatmul.bf16.gmra.mxu0 %v1145
      %v1247 = vpop.f32.mrf.mxu0
      %v1248 = vadd.f32 0.0, %v1247
      %v1249 = vpop.f32.mrf.mxu0
      %v1250 = vadd.f32 0.0, %v1249
      %1251 = vmatmul.bf16.gmra.mxu0 %v1146
      %v1252 = vpop.f32.mrf.mxu0
      %v1253 = vadd.f32 0.0, %v1252
      %v1254 = vpop.f32.mrf.mxu0
      %v1255 = vadd.f32 0.0, %v1254
      %1256 = vmatmul.bf16.gmra.mxu0 %v1147
      %v1257 = vpop.f32.mrf.mxu0
      %v1258 = vadd.f32 0.0, %v1257
      %v1259 = vpop.f32.mrf.mxu0
      %v1260 = vadd.f32 0.0, %v1259
      %1261 = vmatmul.bf16.gmra.mxu0 %v1148
      %v1262 = vpop.f32.mrf.mxu0
      %v1263 = vadd.f32 0.0, %v1262
      %v1264 = vpop.f32.mrf.mxu0
      %v1265 = vadd.f32 0.0, %v1264
      %1266 = vmatmul.bf16.gmra.mxu0 %v1149
      %v1267 = vpop.f32.mrf.mxu0
      %v1268 = vadd.f32 0.0, %v1267
      %v1269 = vpop.f32.mrf.mxu0
      %v1270 = vadd.f32 0.0, %v1269
      %1271 = vmatmul.bf16.gmra.mxu0 %v1150
      %v1272 = vpop.f32.mrf.mxu0
      %v1273 = vadd.f32 0.0, %v1272
      %v1274 = vpop.f32.mrf.mxu0
      %v1275 = vadd.f32 0.0, %v1274
      %1276 = vmatmul.bf16.gmra.mxu0 %v1151
      %v1277 = vpop.f32.mrf.mxu0
      %v1278 = vadd.f32 0.0, %v1277
      %v1279 = vpop.f32.mrf.mxu0
      %v1280 = vadd.f32 0.0, %v1279
      %1281 = vdwg.mxu0
      %v1282 = vadd.f32 %v1152, %v1243
      %v1283 = vadd.f32 %v1153, %v1245
      %v1284 = vadd.f32 %v1154, %v1248
      %v1285 = vadd.f32 %v1155, %v1250
      %v1286 = vadd.f32 %v1156, %v1253
      %v1287 = vadd.f32 %v1157, %v1255
      %v1288 = vadd.f32 %v1158, %v1258
      %v1289 = vadd.f32 %v1159, %v1260
      %v1290 = vadd.f32 %v1160, %v1263
      %v1291 = vadd.f32 %v1161, %v1265
      %v1292 = vadd.f32 %v1162, %v1268
      %v1293 = vadd.f32 %v1163, %v1270
      %v1294 = vadd.f32 %v1164, %v1273
      %v1295 = vadd.f32 %v1165, %v1275
      %v1296 = vadd.f32 %v1166, %v1278
      %v1297 = vadd.f32 %v1167, %v1280
      %1298 = vst [vmem:[#allocation2] sm:$0xff] %v1282
      %1299 = vst [vmem:[#allocation2 + $0x8] sm:$0xff] %v1283
      %1300 = vst [vmem:[#allocation2 + $0x10] sm:$0xff] %v1284
      %1301 = vst [vmem:[#allocation2 + $0x18] sm:$0xff] %v1285
      %1302 = vst [vmem:[#allocation2 + $0x20] sm:$0xff] %v1286
      %1303 = vst [vmem:[#allocation2 + $0x28] sm:$0xff] %v1287
      %1304 = vst [vmem:[#allocation2 + $0x30] sm:$0xff] %v1288
      %1305 = vst [vmem:[#allocation2 + $0x38] sm:$0xff] %v1289
      %1306 = vst [vmem:[#allocation2 + $0x40] sm:$0xff] %v1290
      %1307 = vst [vmem:[#allocation2 + $0x48] sm:$0xff] %v1291
      %1308 = vst [vmem:[#allocation2 + $0x50] sm:$0xff] %v1292
      %1309 = vst [vmem:[#allocation2 + $0x58] sm:$0xff] %v1293
      %1310 = vst [vmem:[#allocation2 + $0x60] sm:$0xff] %v1294
      %1311 = vst [vmem:[#allocation2 + $0x68] sm:$0xff] %v1295
      %1312 = vst [vmem:[#allocation2 + $0x70] sm:$0xff] %v1296
      %1313 = vst [vmem:[#allocation2 + $0x78] sm:$0xff] %v1297
      %s1314 = sadd.s32 %s174, 2
      %s1315 = smul.u32 %s1314, 24
      %s1316 = sadd.s32 %s1315, %s192
      %s1317 = scalar_lea.vmem %s0, %s1316
      %v1318 = vld [vmem:[%s1317] sm:$0xff]
      %v1319 = vld [vmem:[%s1317 + $0x8] sm:$0xff]
      %v1320 = vld [vmem:[%s1317 + $0x18] sm:$0xff]
      %v1321 = vld [vmem:[%s1317 + $0x20] sm:$0xff]
      %v1322 = vld [vmem:[%s1317 + $0x30] sm:$0xff]
      %v1323 = vld [vmem:[%s1317 + $0x38] sm:$0xff]
      %v1324 = vld [vmem:[%s1317 + $0x48] sm:$0xff]
      %v1325 = vld [vmem:[%s1317 + $0x50] sm:$0xff]
      %v1326 = vld [vmem:[%s1317 + $0x60] sm:$0xff]
      %v1327 = vld [vmem:[%s1317 + $0x68] sm:$0xff]
      %v1328 = vld [vmem:[%s1317 + $0x78] sm:$0xff]
      %v1329 = vld [vmem:[%s1317 + $0x80] sm:$0xff]
      %v1330 = vld [vmem:[%s1317 + $0x90] sm:$0xff]
      %v1331 = vld [vmem:[%s1317 + $0x98] sm:$0xff]
      %v1332 = vld [vmem:[%s1317 + $0xa8] sm:$0xff]
      %v1333 = vld [vmem:[%s1317 + $0xb0] sm:$0xff]
      %v1334 = vpack.c.bf16 %v1319, %v1318
      %v1335 = vpack.c.bf16 %v1321, %v1320
      %v1336 = vpack.c.bf16 %v1323, %v1322
      %v1337 = vpack.c.bf16 %v1325, %v1324
      %v1338 = vpack.c.bf16 %v1327, %v1326
      %v1339 = vpack.c.bf16 %v1329, %v1328
      %v1340 = vpack.c.bf16 %v1331, %v1330
      %v1341 = vpack.c.bf16 %v1333, %v1332
      %v1342 = vld [vmem:[#allocation2] sm:$0xff]
      %v1343 = vld [vmem:[#allocation2 + $0x8] sm:$0xff]
      %v1344 = vld [vmem:[#allocation2 + $0x10] sm:$0xff]
      %v1345 = vld [vmem:[#allocation2 + $0x18] sm:$0xff]
      %v1346 = vld [vmem:[#allocation2 + $0x20] sm:$0xff]
      %v1347 = vld [vmem:[#allocation2 + $0x28] sm:$0xff]
      %v1348 = vld [vmem:[#allocation2 + $0x30] sm:$0xff]
      %v1349 = vld [vmem:[#allocation2 + $0x38] sm:$0xff]
      %v1350 = vld [vmem:[#allocation2 + $0x40] sm:$0xff]
      %v1351 = vld [vmem:[#allocation2 + $0x48] sm:$0xff]
      %v1352 = vld [vmem:[#allocation2 + $0x50] sm:$0xff]
      %v1353 = vld [vmem:[#allocation2 + $0x58] sm:$0xff]
      %v1354 = vld [vmem:[#allocation2 + $0x60] sm:$0xff]
      %v1355 = vld [vmem:[#allocation2 + $0x68] sm:$0xff]
      %v1356 = vld [vmem:[#allocation2 + $0x70] sm:$0xff]
      %v1357 = vld [vmem:[#allocation2 + $0x78] sm:$0xff]
      %s1358 = scalar_lea.vmem %s1, 384
      %v1359 = vld [vmem:[%s1358] sm:$0xf]
      %v1360 = vld [vmem:[%s1358 + $0x4] sm:$0xf]
      %v1361 = vld [vmem:[%s1358 + $0x8] sm:$0xf]
      %v1362 = vld [vmem:[%s1358 + $0xc] sm:$0xf]
      %v1363 = vld [vmem:[%s1358 + $0x10] sm:$0xf]
      %v1364 = vld [vmem:[%s1358 + $0x14] sm:$0xf]
      %v1365 = vld [vmem:[%s1358 + $0x18] sm:$0xf]
      %v1366 = vld [vmem:[%s1358 + $0x1c] sm:$0xf]
      %v1367 = vld [vmem:[%s1358 + $0x20] sm:$0xf]
      %v1368 = vld [vmem:[%s1358 + $0x24] sm:$0xf]
      %v1369 = vld [vmem:[%s1358 + $0x28] sm:$0xf]
      %v1370 = vld [vmem:[%s1358 + $0x2c] sm:$0xf]
      %v1371 = vld [vmem:[%s1358 + $0x30] sm:$0xf]
      %v1372 = vld [vmem:[%s1358 + $0x34] sm:$0xf]
      %v1373 = vld [vmem:[%s1358 + $0x38] sm:$0xf]
      %v1374 = vld [vmem:[%s1358 + $0x3c] sm:$0xf]
      %v1391 = vunpack.c.l.b16 %v1359
      %v1392 = vunpack.c.l.b16 %v1360
      %v1393 = vunpack.c.l.b16 %v1361
      %v1394 = vunpack.c.l.b16 %v1362
      %v1395 = vunpack.c.l.b16 %v1363
      %v1396 = vunpack.c.l.b16 %v1364
      %v1397 = vunpack.c.l.b16 %v1365
      %v1398 = vunpack.c.l.b16 %v1366
      %v1399 = vunpack.c.l.b16 %v1367
      %v1400 = vunpack.c.l.b16 %v1368
      %v1401 = vunpack.c.l.b16 %v1369
      %v1402 = vunpack.c.l.b16 %v1370
      %v1403 = vunpack.c.l.b16 %v1371
      %v1404 = vunpack.c.l.b16 %v1372
      %v1405 = vunpack.c.l.b16 %v1373
      %v1406 = vunpack.c.l.b16 %v1374
      %v1407 = vpack.c.b16 %v1392, %v1391
      %v1408 = vpack.c.b16 %v1394, %v1393
      %v1409 = vpack.c.b16 %v1396, %v1395
      %v1410 = vpack.c.b16 %v1398, %v1397
      %v1411 = vpack.c.b16 %v1400, %v1399
      %v1412 = vpack.c.b16 %v1402, %v1401
      %v1413 = vpack.c.b16 %v1404, %v1403
      %v1414 = vpack.c.b16 %v1406, %v1405
      %1423 = vmatpush.bf16.msra.mxu0 %v1414
      %1424 = vmatpush.bf16.msra.mxu0 %v1413
      %1425 = vmatpush.bf16.msra.mxu0 %v1412
      %1426 = vmatpush.bf16.msra.mxu0 %v1411
      %1427 = vmatpush.bf16.msra.mxu0 %v1410
      %1428 = vmatpush.bf16.msra.mxu0 %v1409
      %1429 = vmatpush.bf16.msra.mxu0 %v1408
      %1430 = vmatpush.bf16.msra.mxu0 %v1407
      %1431 = vmatmul.bf16.gmra.mxu0 %v1334
      %v1432 = vpop.f32.mrf.mxu0
      %v1433 = vadd.f32 0.0, %v1432
      %v1434 = vpop.f32.mrf.mxu0
      %v1435 = vadd.f32 0.0, %v1434
      %1436 = vmatmul.bf16.gmra.mxu0 %v1335
      %v1437 = vpop.f32.mrf.mxu0
      %v1438 = vadd.f32 0.0, %v1437
      %v1439 = vpop.f32.mrf.mxu0
      %v1440 = vadd.f32 0.0, %v1439
      %1441 = vmatmul.bf16.gmra.mxu0 %v1336
      %v1442 = vpop.f32.mrf.mxu0
      %v1443 = vadd.f32 0.0, %v1442
      %v1444 = vpop.f32.mrf.mxu0
      %v1445 = vadd.f32 0.0, %v1444
      %1446 = vmatmul.bf16.gmra.mxu0 %v1337
      %v1447 = vpop.f32.mrf.mxu0
      %v1448 = vadd.f32 0.0, %v1447
      %v1449 = vpop.f32.mrf.mxu0
      %v1450 = vadd.f32 0.0, %v1449
      %1451 = vmatmul.bf16.gmra.mxu0 %v1338
      %v1452 = vpop.f32.mrf.mxu0
      %v1453 = vadd.f32 0.0, %v1452
      %v1454 = vpop.f32.mrf.mxu0
      %v1455 = vadd.f32 0.0, %v1454
      %1456 = vmatmul.bf16.gmra.mxu0 %v1339
      %v1457 = vpop.f32.mrf.mxu0
      %v1458 = vadd.f32 0.0, %v1457
      %v1459 = vpop.f32.mrf.mxu0
      %v1460 = vadd.f32 0.0, %v1459
      %1461 = vmatmul.bf16.gmra.mxu0 %v1340
      %v1462 = vpop.f32.mrf.mxu0
      %v1463 = vadd.f32 0.0, %v1462
      %v1464 = vpop.f32.mrf.mxu0
      %v1465 = vadd.f32 0.0, %v1464
      %1466 = vmatmul.bf16.gmra.mxu0 %v1341
      %v1467 = vpop.f32.mrf.mxu0
      %v1468 = vadd.f32 0.0, %v1467
      %v1469 = vpop.f32.mrf.mxu0
      %v1470 = vadd.f32 0.0, %v1469
      %1471 = vdwg.mxu0
      %v1472 = vadd.f32 %v1342, %v1433
      %v1473 = vadd.f32 %v1343, %v1435
      %v1474 = vadd.f32 %v1344, %v1438
      %v1475 = vadd.f32 %v1345, %v1440
      %v1476 = vadd.f32 %v1346, %v1443
      %v1477 = vadd.f32 %v1347, %v1445
      %v1478 = vadd.f32 %v1348, %v1448
      %v1479 = vadd.f32 %v1349, %v1450
      %v1480 = vadd.f32 %v1350, %v1453
      %v1481 = vadd.f32 %v1351, %v1455
      %v1482 = vadd.f32 %v1352, %v1458
      %v1483 = vadd.f32 %v1353, %v1460
      %v1484 = vadd.f32 %v1354, %v1463
      %v1485 = vadd.f32 %v1355, %v1465
      %v1486 = vadd.f32 %v1356, %v1468
      %v1487 = vadd.f32 %v1357, %v1470
      %1488 = vst [vmem:[#allocation2] sm:$0xff] %v1472
      %1489 = vst [vmem:[#allocation2 + $0x8] sm:$0xff] %v1473
      %1490 = vst [vmem:[#allocation2 + $0x10] sm:$0xff] %v1474
      %1491 = vst [vmem:[#allocation2 + $0x18] sm:$0xff] %v1475
      %1492 = vst [vmem:[#allocation2 + $0x20] sm:$0xff] %v1476
      %1493 = vst [vmem:[#allocation2 + $0x28] sm:$0xff] %v1477
      %1494 = vst [vmem:[#allocation2 + $0x30] sm:$0xff] %v1478
      %1495 = vst [vmem:[#allocation2 + $0x38] sm:$0xff] %v1479
      %1496 = vst [vmem:[#allocation2 + $0x40] sm:$0xff] %v1480
      %1497 = vst [vmem:[#allocation2 + $0x48] sm:$0xff] %v1481
      %1498 = vst [vmem:[#allocation2 + $0x50] sm:$0xff] %v1482
      %1499 = vst [vmem:[#allocation2 + $0x58] sm:$0xff] %v1483
      %1500 = vst [vmem:[#allocation2 + $0x60] sm:$0xff] %v1484
      %1501 = vst [vmem:[#allocation2 + $0x68] sm:$0xff] %v1485
      %1502 = vst [vmem:[#allocation2 + $0x70] sm:$0xff] %v1486
      %1503 = vst [vmem:[#allocation2 + $0x78] sm:$0xff] %v1487
      %v1504 = vld [vmem:[%s1317 + $0x1] sm:$0xff]
      %v1505 = vld [vmem:[%s1317 + $0x9] sm:$0xff]
      %v1506 = vld [vmem:[%s1317 + $0x19] sm:$0xff]
      %v1507 = vld [vmem:[%s1317 + $0x21] sm:$0xff]
      %v1508 = vld [vmem:[%s1317 + $0x31] sm:$0xff]
      %v1509 = vld [vmem:[%s1317 + $0x39] sm:$0xff]
      %v1510 = vld [vmem:[%s1317 + $0x49] sm:$0xff]
      %v1511 = vld [vmem:[%s1317 + $0x51] sm:$0xff]
      %v1512 = vld [vmem:[%s1317 + $0x61] sm:$0xff]
      %v1513 = vld [vmem:[%s1317 + $0x69] sm:$0xff]
      %v1514 = vld [vmem:[%s1317 + $0x79] sm:$0xff]
      %v1515 = vld [vmem:[%s1317 + $0x81] sm:$0xff]
      %v1516 = vld [vmem:[%s1317 + $0x91] sm:$0xff]
      %v1517 = vld [vmem:[%s1317 + $0x99] sm:$0xff]
      %v1518 = vld [vmem:[%s1317 + $0xa9] sm:$0xff]
      %v1519 = vld [vmem:[%s1317 + $0xb1] sm:$0xff]
      %v1520 = vpack.c.bf16 %v1505, %v1504
      %v1521 = vpack.c.bf16 %v1507, %v1506
      %v1522 = vpack.c.bf16 %v1509, %v1508
      %v1523 = vpack.c.bf16 %v1511, %v1510
      %v1524 = vpack.c.bf16 %v1513, %v1512
      %v1525 = vpack.c.bf16 %v1515, %v1514
      %v1526 = vpack.c.bf16 %v1517, %v1516
      %v1527 = vpack.c.bf16 %v1519, %v1518
      %v1528 = vld [vmem:[#allocation2] sm:$0xff]
      %v1529 = vld [vmem:[#allocation2 + $0x8] sm:$0xff]
      %v1530 = vld [vmem:[#allocation2 + $0x10] sm:$0xff]
      %v1531 = vld [vmem:[#allocation2 + $0x18] sm:$0xff]
      %v1532 = vld [vmem:[#allocation2 + $0x20] sm:$0xff]
      %v1533 = vld [vmem:[#allocation2 + $0x28] sm:$0xff]
      %v1534 = vld [vmem:[#allocation2 + $0x30] sm:$0xff]
      %v1535 = vld [vmem:[#allocation2 + $0x38] sm:$0xff]
      %v1536 = vld [vmem:[#allocation2 + $0x40] sm:$0xff]
      %v1537 = vld [vmem:[#allocation2 + $0x48] sm:$0xff]
      %v1538 = vld [vmem:[#allocation2 + $0x50] sm:$0xff]
      %v1539 = vld [vmem:[#allocation2 + $0x58] sm:$0xff]
      %v1540 = vld [vmem:[#allocation2 + $0x60] sm:$0xff]
      %v1541 = vld [vmem:[#allocation2 + $0x68] sm:$0xff]
      %v1542 = vld [vmem:[#allocation2 + $0x70] sm:$0xff]
      %v1543 = vld [vmem:[#allocation2 + $0x78] sm:$0xff]
      %s1544 = scalar_lea.vmem %s1, 448
      %v1545 = vld [vmem:[%s1544] sm:$0xf]
      %v1546 = vld [vmem:[%s1544 + $0x4] sm:$0xf]
      %v1547 = vld [vmem:[%s1544 + $0x8] sm:$0xf]
      %v1548 = vld [vmem:[%s1544 + $0xc] sm:$0xf]
      %v1549 = vld [vmem:[%s1544 + $0x10] sm:$0xf]
      %v1550 = vld [vmem:[%s1544 + $0x14] sm:$0xf]
      %v1551 = vld [vmem:[%s1544 + $0x18] sm:$0xf]
      %v1552 = vld [vmem:[%s1544 + $0x1c] sm:$0xf]
      %v1553 = vld [vmem:[%s1544 + $0x20] sm:$0xf]
      %v1554 = vld [vmem:[%s1544 + $0x24] sm:$0xf]
      %v1555 = vld [vmem:[%s1544 + $0x28] sm:$0xf]
      %v1556 = vld [vmem:[%s1544 + $0x2c] sm:$0xf]
      %v1557 = vld [vmem:[%s1544 + $0x30] sm:$0xf]
      %v1558 = vld [vmem:[%s1544 + $0x34] sm:$0xf]
      %v1559 = vld [vmem:[%s1544 + $0x38] sm:$0xf]
      %v1560 = vld [vmem:[%s1544 + $0x3c] sm:$0xf]
      %v1577 = vunpack.c.l.b16 %v1545
      %v1578 = vunpack.c.l.b16 %v1546
      %v1579 = vunpack.c.l.b16 %v1547
      %v1580 = vunpack.c.l.b16 %v1548
      %v1581 = vunpack.c.l.b16 %v1549
      %v1582 = vunpack.c.l.b16 %v1550
      %v1583 = vunpack.c.l.b16 %v1551
      %v1584 = vunpack.c.l.b16 %v1552
      %v1585 = vunpack.c.l.b16 %v1553
      %v1586 = vunpack.c.l.b16 %v1554
      %v1587 = vunpack.c.l.b16 %v1555
      %v1588 = vunpack.c.l.b16 %v1556
      %v1589 = vunpack.c.l.b16 %v1557
      %v1590 = vunpack.c.l.b16 %v1558
      %v1591 = vunpack.c.l.b16 %v1559
      %v1592 = vunpack.c.l.b16 %v1560
      %v1593 = vpack.c.b16 %v1578, %v1577
      %v1594 = vpack.c.b16 %v1580, %v1579
      %v1595 = vpack.c.b16 %v1582, %v1581
      %v1596 = vpack.c.b16 %v1584, %v1583
      %v1597 = vpack.c.b16 %v1586, %v1585
      %v1598 = vpack.c.b16 %v1588, %v1587
      %v1599 = vpack.c.b16 %v1590, %v1589
      %v1600 = vpack.c.b16 %v1592, %v1591
      %1609 = vmatpush.bf16.msra.mxu0 %v1600
      %1610 = vmatpush.bf16.msra.mxu0 %v1599
      %1611 = vmatpush.bf16.msra.mxu0 %v1598
      %1612 = vmatpush.bf16.msra.mxu0 %v1597
      %1613 = vmatpush.bf16.msra.mxu0 %v1596
      %1614 = vmatpush.bf16.msra.mxu0 %v1595
      %1615 = vmatpush.bf16.msra.mxu0 %v1594
      %1616 = vmatpush.bf16.msra.mxu0 %v1593
      %1617 = vmatmul.bf16.gmra.mxu0 %v1520
      %v1618 = vpop.f32.mrf.mxu0
      %v1619 = vadd.f32 0.0, %v1618
      %v1620 = vpop.f32.mrf.mxu0
      %v1621 = vadd.f32 0.0, %v1620
      %1622 = vmatmul.bf16.gmra.mxu0 %v1521
      %v1623 = vpop.f32.mrf.mxu0
      %v1624 = vadd.f32 0.0, %v1623
      %v1625 = vpop.f32.mrf.mxu0
      %v1626 = vadd.f32 0.0, %v1625
      %1627 = vmatmul.bf16.gmra.mxu0 %v1522
      %v1628 = vpop.f32.mrf.mxu0
      %v1629 = vadd.f32 0.0, %v1628
      %v1630 = vpop.f32.mrf.mxu0
      %v1631 = vadd.f32 0.0, %v1630
      %1632 = vmatmul.bf16.gmra.mxu0 %v1523
      %v1633 = vpop.f32.mrf.mxu0
      %v1634 = vadd.f32 0.0, %v1633
      %v1635 = vpop.f32.mrf.mxu0
      %v1636 = vadd.f32 0.0, %v1635
      %1637 = vmatmul.bf16.gmra.mxu0 %v1524
      %v1638 = vpop.f32.mrf.mxu0
      %v1639 = vadd.f32 0.0, %v1638
      %v1640 = vpop.f32.mrf.mxu0
      %v1641 = vadd.f32 0.0, %v1640
      %1642 = vmatmul.bf16.gmra.mxu0 %v1525
      %v1643 = vpop.f32.mrf.mxu0
      %v1644 = vadd.f32 0.0, %v1643
      %v1645 = vpop.f32.mrf.mxu0
      %v1646 = vadd.f32 0.0, %v1645
      %1647 = vmatmul.bf16.gmra.mxu0 %v1526
      %v1648 = vpop.f32.mrf.mxu0
      %v1649 = vadd.f32 0.0, %v1648
      %v1650 = vpop.f32.mrf.mxu0
      %v1651 = vadd.f32 0.0, %v1650
      %1652 = vmatmul.bf16.gmra.mxu0 %v1527
      %v1653 = vpop.f32.mrf.mxu0
      %v1654 = vadd.f32 0.0, %v1653
      %v1655 = vpop.f32.mrf.mxu0
      %v1656 = vadd.f32 0.0, %v1655
      %1657 = vdwg.mxu0
      %v1658 = vadd.f32 %v1528, %v1619
      %v1659 = vadd.f32 %v1529, %v1621
      %v1660 = vadd.f32 %v1530, %v1624
      %v1661 = vadd.f32 %v1531, %v1626
      %v1662 = vadd.f32 %v1532, %v1629
      %v1663 = vadd.f32 %v1533, %v1631
      %v1664 = vadd.f32 %v1534, %v1634
      %v1665 = vadd.f32 %v1535, %v1636
      %v1666 = vadd.f32 %v1536, %v1639
      %v1667 = vadd.f32 %v1537, %v1641
      %v1668 = vadd.f32 %v1538, %v1644
      %v1669 = vadd.f32 %v1539, %v1646
      %v1670 = vadd.f32 %v1540, %v1649
      %v1671 = vadd.f32 %v1541, %v1651
      %v1672 = vadd.f32 %v1542, %v1654
      %v1673 = vadd.f32 %v1543, %v1656
      %1674 = vst [vmem:[#allocation2] sm:$0xff] %v1658
      %1675 = vst [vmem:[#allocation2 + $0x8] sm:$0xff] %v1659
      %1676 = vst [vmem:[#allocation2 + $0x10] sm:$0xff] %v1660
      %1677 = vst [vmem:[#allocation2 + $0x18] sm:$0xff] %v1661
      %1678 = vst [vmem:[#allocation2 + $0x20] sm:$0xff] %v1662
      %1679 = vst [vmem:[#allocation2 + $0x28] sm:$0xff] %v1663
      %1680 = vst [vmem:[#allocation2 + $0x30] sm:$0xff] %v1664
      %1681 = vst [vmem:[#allocation2 + $0x38] sm:$0xff] %v1665
      %1682 = vst [vmem:[#allocation2 + $0x40] sm:$0xff] %v1666
      %1683 = vst [vmem:[#allocation2 + $0x48] sm:$0xff] %v1667
      %1684 = vst [vmem:[#allocation2 + $0x50] sm:$0xff] %v1668
      %1685 = vst [vmem:[#allocation2 + $0x58] sm:$0xff] %v1669
      %1686 = vst [vmem:[#allocation2 + $0x60] sm:$0xff] %v1670
      %1687 = vst [vmem:[#allocation2 + $0x68] sm:$0xff] %v1671
      %1688 = vst [vmem:[#allocation2 + $0x70] sm:$0xff] %v1672
      %1689 = vst [vmem:[#allocation2 + $0x78] sm:$0xff] %v1673
      %v1690 = vld [vmem:[%s1317 + $0x2] sm:$0xff]
      %v1691 = vld [vmem:[%s1317 + $0xa] sm:$0xff]
      %v1692 = vld [vmem:[%s1317 + $0x1a] sm:$0xff]
      %v1693 = vld [vmem:[%s1317 + $0x22] sm:$0xff]
      %v1694 = vld [vmem:[%s1317 + $0x32] sm:$0xff]
      %v1695 = vld [vmem:[%s1317 + $0x3a] sm:$0xff]
      %v1696 = vld [vmem:[%s1317 + $0x4a] sm:$0xff]
      %v1697 = vld [vmem:[%s1317 + $0x52] sm:$0xff]
      %v1698 = vld [vmem:[%s1317 + $0x62] sm:$0xff]
      %v1699 = vld [vmem:[%s1317 + $0x6a] sm:$0xff]
      %v1700 = vld [vmem:[%s1317 + $0x7a] sm:$0xff]
      %v1701 = vld [vmem:[%s1317 + $0x82] sm:$0xff]
      %v1702 = vld [vmem:[%s1317 + $0x92] sm:$0xff]
      %v1703 = vld [vmem:[%s1317 + $0x9a] sm:$0xff]
      %v1704 = vld [vmem:[%s1317 + $0xaa] sm:$0xff]
      %v1705 = vld [vmem:[%s1317 + $0xb2] sm:$0xff]
      %v1706 = vpack.c.bf16 %v1691, %v1690
      %v1707 = vpack.c.bf16 %v1693, %v1692
      %v1708 = vpack.c.bf16 %v1695, %v1694
      %v1709 = vpack.c.bf16 %v1697, %v1696
      %v1710 = vpack.c.bf16 %v1699, %v1698
      %v1711 = vpack.c.bf16 %v1701, %v1700
      %v1712 = vpack.c.bf16 %v1703, %v1702
      %v1713 = vpack.c.bf16 %v1705, %v1704
      %v1714 = vld [vmem:[#allocation2] sm:$0xff]
      %v1715 = vld [vmem:[#allocation2 + $0x8] sm:$0xff]
      %v1716 = vld [vmem:[#allocation2 + $0x10] sm:$0xff]
      %v1717 = vld [vmem:[#allocation2 + $0x18] sm:$0xff]
      %v1718 = vld [vmem:[#allocation2 + $0x20] sm:$0xff]
      %v1719 = vld [vmem:[#allocation2 + $0x28] sm:$0xff]
      %v1720 = vld [vmem:[#allocation2 + $0x30] sm:$0xff]
      %v1721 = vld [vmem:[#allocation2 + $0x38] sm:$0xff]
      %v1722 = vld [vmem:[#allocation2 + $0x40] sm:$0xff]
      %v1723 = vld [vmem:[#allocation2 + $0x48] sm:$0xff]
      %v1724 = vld [vmem:[#allocation2 + $0x50] sm:$0xff]
      %v1725 = vld [vmem:[#allocation2 + $0x58] sm:$0xff]
      %v1726 = vld [vmem:[#allocation2 + $0x60] sm:$0xff]
      %v1727 = vld [vmem:[#allocation2 + $0x68] sm:$0xff]
      %v1728 = vld [vmem:[#allocation2 + $0x70] sm:$0xff]
      %v1729 = vld [vmem:[#allocation2 + $0x78] sm:$0xff]
      %s1730 = scalar_lea.vmem %s1, 512
      %v1731 = vld [vmem:[%s1730] sm:$0xf]
      %v1732 = vld [vmem:[%s1730 + $0x4] sm:$0xf]
      %v1733 = vld [vmem:[%s1730 + $0x8] sm:$0xf]
      %v1734 = vld [vmem:[%s1730 + $0xc] sm:$0xf]
      %v1735 = vld [vmem:[%s1730 + $0x10] sm:$0xf]
      %v1736 = vld [vmem:[%s1730 + $0x14] sm:$0xf]
      %v1737 = vld [vmem:[%s1730 + $0x18] sm:$0xf]
      %v1738 = vld [vmem:[%s1730 + $0x1c] sm:$0xf]
      %v1739 = vld [vmem:[%s1730 + $0x20] sm:$0xf]
      %v1740 = vld [vmem:[%s1730 + $0x24] sm:$0xf]
      %v1741 = vld [vmem:[%s1730 + $0x28] sm:$0xf]
      %v1742 = vld [vmem:[%s1730 + $0x2c] sm:$0xf]
      %v1743 = vld [vmem:[%s1730 + $0x30] sm:$0xf]
      %v1744 = vld [vmem:[%s1730 + $0x34] sm:$0xf]
      %v1745 = vld [vmem:[%s1730 + $0x38] sm:$0xf]
      %v1746 = vld [vmem:[%s1730 + $0x3c] sm:$0xf]
      %v1763 = vunpack.c.l.b16 %v1731
      %v1764 = vunpack.c.l.b16 %v1732
      %v1765 = vunpack.c.l.b16 %v1733
      %v1766 = vunpack.c.l.b16 %v1734
      %v1767 = vunpack.c.l.b16 %v1735
      %v1768 = vunpack.c.l.b16 %v1736
      %v1769 = vunpack.c.l.b16 %v1737
      %v1770 = vunpack.c.l.b16 %v1738
      %v1771 = vunpack.c.l.b16 %v1739
      %v1772 = vunpack.c.l.b16 %v1740
      %v1773 = vunpack.c.l.b16 %v1741
      %v1774 = vunpack.c.l.b16 %v1742
      %v1775 = vunpack.c.l.b16 %v1743
      %v1776 = vunpack.c.l.b16 %v1744
      %v1777 = vunpack.c.l.b16 %v1745
      %v1778 = vunpack.c.l.b16 %v1746
      %v1779 = vpack.c.b16 %v1764, %v1763
      %v1780 = vpack.c.b16 %v1766, %v1765
      %v1781 = vpack.c.b16 %v1768, %v1767
      %v1782 = vpack.c.b16 %v1770, %v1769
      %v1783 = vpack.c.b16 %v1772, %v1771
      %v1784 = vpack.c.b16 %v1774, %v1773
      %v1785 = vpack.c.b16 %v1776, %v1775
      %v1786 = vpack.c.b16 %v1778, %v1777
      %1795 = vmatpush.bf16.msra.mxu0 %v1786
      %1796 = vmatpush.bf16.msra.mxu0 %v1785
      %1797 = vmatpush.bf16.msra.mxu0 %v1784
      %1798 = vmatpush.bf16.msra.mxu0 %v1783
      %1799 = vmatpush.bf16.msra.mxu0 %v1782
      %1800 = vmatpush.bf16.msra.mxu0 %v1781
      %1801 = vmatpush.bf16.msra.mxu0 %v1780
      %1802 = vmatpush.bf16.msra.mxu0 %v1779
      %1803 = vmatmul.bf16.gmra.mxu0 %v1706
      %v1804 = vpop.f32.mrf.mxu0
      %v1805 = vadd.f32 0.0, %v1804
      %v1806 = vpop.f32.mrf.mxu0
      %v1807 = vadd.f32 0.0, %v1806
      %1808 = vmatmul.bf16.gmra.mxu0 %v1707
      %v1809 = vpop.f32.mrf.mxu0
      %v1810 = vadd.f32 0.0, %v1809
      %v1811 = vpop.f32.mrf.mxu0
      %v1812 = vadd.f32 0.0, %v1811
      %1813 = vmatmul.bf16.gmra.mxu0 %v1708
      %v1814 = vpop.f32.mrf.mxu0
      %v1815 = vadd.f32 0.0, %v1814
      %v1816 = vpop.f32.mrf.mxu0
      %v1817 = vadd.f32 0.0, %v1816
      %1818 = vmatmul.bf16.gmra.mxu0 %v1709
      %v1819 = vpop.f32.mrf.mxu0
      %v1820 = vadd.f32 0.0, %v1819
      %v1821 = vpop.f32.mrf.mxu0
      %v1822 = vadd.f32 0.0, %v1821
      %1823 = vmatmul.bf16.gmra.mxu0 %v1710
      %v1824 = vpop.f32.mrf.mxu0
      %v1825 = vadd.f32 0.0, %v1824
      %v1826 = vpop.f32.mrf.mxu0
      %v1827 = vadd.f32 0.0, %v1826
      %1828 = vmatmul.bf16.gmra.mxu0 %v1711
      %v1829 = vpop.f32.mrf.mxu0
      %v1830 = vadd.f32 0.0, %v1829
      %v1831 = vpop.f32.mrf.mxu0
      %v1832 = vadd.f32 0.0, %v1831
      %1833 = vmatmul.bf16.gmra.mxu0 %v1712
      %v1834 = vpop.f32.mrf.mxu0
      %v1835 = vadd.f32 0.0, %v1834
      %v1836 = vpop.f32.mrf.mxu0
      %v1837 = vadd.f32 0.0, %v1836
      %1838 = vmatmul.bf16.gmra.mxu0 %v1713
      %v1839 = vpop.f32.mrf.mxu0
      %v1840 = vadd.f32 0.0, %v1839
      %v1841 = vpop.f32.mrf.mxu0
      %v1842 = vadd.f32 0.0, %v1841
      %1843 = vdwg.mxu0
      %v1844 = vadd.f32 %v1714, %v1805
      %v1845 = vadd.f32 %v1715, %v1807
      %v1846 = vadd.f32 %v1716, %v1810
      %v1847 = vadd.f32 %v1717, %v1812
      %v1848 = vadd.f32 %v1718, %v1815
      %v1849 = vadd.f32 %v1719, %v1817
      %v1850 = vadd.f32 %v1720, %v1820
      %v1851 = vadd.f32 %v1721, %v1822
      %v1852 = vadd.f32 %v1722, %v1825
      %v1853 = vadd.f32 %v1723, %v1827
      %v1854 = vadd.f32 %v1724, %v1830
      %v1855 = vadd.f32 %v1725, %v1832
      %v1856 = vadd.f32 %v1726, %v1835
      %v1857 = vadd.f32 %v1727, %v1837
      %v1858 = vadd.f32 %v1728, %v1840
      %v1859 = vadd.f32 %v1729, %v1842
      %1860 = vst [vmem:[#allocation2] sm:$0xff] %v1844
      %1861 = vst [vmem:[#allocation2 + $0x8] sm:$0xff] %v1845
      %1862 = vst [vmem:[#allocation2 + $0x10] sm:$0xff] %v1846
      %1863 = vst [vmem:[#allocation2 + $0x18] sm:$0xff] %v1847
      %1864 = vst [vmem:[#allocation2 + $0x20] sm:$0xff] %v1848
      %1865 = vst [vmem:[#allocation2 + $0x28] sm:$0xff] %v1849
      %1866 = vst [vmem:[#allocation2 + $0x30] sm:$0xff] %v1850
      %1867 = vst [vmem:[#allocation2 + $0x38] sm:$0xff] %v1851
      %1868 = vst [vmem:[#allocation2 + $0x40] sm:$0xff] %v1852
      %1869 = vst [vmem:[#allocation2 + $0x48] sm:$0xff] %v1853
      %1870 = vst [vmem:[#allocation2 + $0x50] sm:$0xff] %v1854
      %1871 = vst [vmem:[#allocation2 + $0x58] sm:$0xff] %v1855
      %1872 = vst [vmem:[#allocation2 + $0x60] sm:$0xff] %v1856
      %1873 = vst [vmem:[#allocation2 + $0x68] sm:$0xff] %v1857
      %1874 = vst [vmem:[#allocation2 + $0x70] sm:$0xff] %v1858
      %1875 = vst [vmem:[#allocation2 + $0x78] sm:$0xff] %v1859
      %v1876 = vld [vmem:[#allocation2] sm:$0xff]
      %v1877 = vld [vmem:[#allocation2 + $0x8] sm:$0xff]
      %v1878 = vld [vmem:[#allocation2 + $0x10] sm:$0xff]
      %v1879 = vld [vmem:[#allocation2 + $0x18] sm:$0xff]
      %v1880 = vld [vmem:[#allocation2 + $0x20] sm:$0xff]
      %v1881 = vld [vmem:[#allocation2 + $0x28] sm:$0xff]
      %v1882 = vld [vmem:[#allocation2 + $0x30] sm:$0xff]
      %v1883 = vld [vmem:[#allocation2 + $0x38] sm:$0xff]
      %v1884 = vld [vmem:[#allocation2 + $0x40] sm:$0xff]
      %v1885 = vld [vmem:[#allocation2 + $0x48] sm:$0xff]
      %v1886 = vld [vmem:[#allocation2 + $0x50] sm:$0xff]
      %v1887 = vld [vmem:[#allocation2 + $0x58] sm:$0xff]
      %v1888 = vld [vmem:[#allocation2 + $0x60] sm:$0xff]
      %v1889 = vld [vmem:[#allocation2 + $0x68] sm:$0xff]
      %v1890 = vld [vmem:[#allocation2 + $0x70] sm:$0xff]
      %v1891 = vld [vmem:[#allocation2 + $0x78] sm:$0xff]
      %v1892 = vld [vmem:[%s2] sm:$0x1]
      %v1894 = vperm.slane %v1892, 0
      %v1896 = vadd.f32 %v1876, %v1894
      %v1897 = vadd.f32 %v1877, %v1894
      %v1898 = vadd.f32 %v1878, %v1894
      %v1899 = vadd.f32 %v1879, %v1894
      %v1900 = vadd.f32 %v1880, %v1894
      %v1901 = vadd.f32 %v1881, %v1894
      %v1902 = vadd.f32 %v1882, %v1894
      %v1903 = vadd.f32 %v1883, %v1894
      %v1904 = vadd.f32 %v1884, %v1894
      %v1905 = vadd.f32 %v1885, %v1894
      %v1906 = vadd.f32 %v1886, %v1894
      %v1907 = vadd.f32 %v1887, %v1894
      %v1908 = vadd.f32 %v1888, %v1894
      %v1909 = vadd.f32 %v1889, %v1894
      %v1910 = vadd.f32 %v1890, %v1894
      %v1911 = vadd.f32 %v1891, %v1894
      %v1912 = vmax.f32 %v1896, 0.0
      %v1913 = vmax.f32 %v1897, 0.0
      %v1914 = vmax.f32 %v1898, 0.0
      %v1915 = vmax.f32 %v1899, 0.0
      %v1916 = vmax.f32 %v1900, 0.0
      %v1917 = vmax.f32 %v1901, 0.0
      %v1918 = vmax.f32 %v1902, 0.0
      %v1919 = vmax.f32 %v1903, 0.0
      %v1920 = vmax.f32 %v1904, 0.0
      %v1921 = vmax.f32 %v1905, 0.0
      %v1922 = vmax.f32 %v1906, 0.0
      %v1923 = vmax.f32 %v1907, 0.0
      %v1924 = vmax.f32 %v1908, 0.0
      %v1925 = vmax.f32 %v1909, 0.0
      %v1926 = vmax.f32 %v1910, 0.0
      %v1927 = vmax.f32 %v1911, 0.0
      %v1928 = vpack.c.bf16 %v1912, %v1912
      %v1929 = vpack.c.bf16 %v1913, %v1913
      %v1930 = vpack.c.bf16 %v1914, %v1914
      %v1931 = vpack.c.bf16 %v1915, %v1915
      %v1932 = vpack.c.bf16 %v1916, %v1916
      %v1933 = vpack.c.bf16 %v1917, %v1917
      %v1934 = vpack.c.bf16 %v1918, %v1918
      %v1935 = vpack.c.bf16 %v1919, %v1919
      %v1936 = vpack.c.bf16 %v1920, %v1920
      %v1937 = vpack.c.bf16 %v1921, %v1921
      %v1938 = vpack.c.bf16 %v1922, %v1922
      %v1939 = vpack.c.bf16 %v1923, %v1923
      %v1940 = vpack.c.bf16 %v1924, %v1924
      %v1941 = vpack.c.bf16 %v1925, %v1925
      %v1942 = vpack.c.bf16 %v1926, %v1926
      %v1943 = vpack.c.bf16 %v1927, %v1927
      %1944 = vst [vmem:[%s170] sm:$0xf] %v1928
      %1945 = vst [vmem:[%s170 + $0x4] sm:$0xf] %v1929
      %1946 = vst [vmem:[%s170 + $0x8] sm:$0xf] %v1930
      %1947 = vst [vmem:[%s170 + $0xc] sm:$0xf] %v1931
      %1948 = vst [vmem:[%s170 + $0x10] sm:$0xf] %v1932
      %1949 = vst [vmem:[%s170 + $0x14] sm:$0xf] %v1933
      %1950 = vst [vmem:[%s170 + $0x18] sm:$0xf] %v1934
      %1951 = vst [vmem:[%s170 + $0x1c] sm:$0xf] %v1935
      %1952 = vst [vmem:[%s170 + $0x20] sm:$0xf] %v1936
      %1953 = vst [vmem:[%s170 + $0x24] sm:$0xf] %v1937
      %1954 = vst [vmem:[%s170 + $0x28] sm:$0xf] %v1938
      %1955 = vst [vmem:[%s170 + $0x2c] sm:$0xf] %v1939
      %1956 = vst [vmem:[%s170 + $0x30] sm:$0xf] %v1940
      %1957 = vst [vmem:[%s170 + $0x34] sm:$0xf] %v1941
      %1958 = vst [vmem:[%s170 + $0x38] sm:$0xf] %v1942
      %1959 = vst [vmem:[%s170 + $0x3c] sm:$0xf] %v1943
      %s1960 = smul.u32 %s18, 2
      %s1961 = sadd.s32 %s1960, %s19
      %s1962 = smul.u32 16, %s1961
      %p1963 = scmp.lt.s32.totalorder %s1962, 63
      %s1964 = scalar_select %p1963, %s1962, 63
      %s1965 = smul.addr %s1964, 4
      %s1966 = scalar_lea.vmem %s3, %s1965
      // Predicated region
      $region33: #{_lambda_.4} parent=31 // pred_check
        %p1967 = pneg %p111
      $region34: #{_lambda_.4} parent=31 // pred_check_branch
        %1969 = sbr.rel (%p1967) target = $region36
      $region35: #{_lambda_.4} parent=31 // pred_region
        %s1970 = smul.u32 %s18, 2
        %s1971 = sadd.s32 %s1970, %s19
        %s1972 = smul.u32 16, %s1971
      $region36: #{_lambda_.4} parent=31 // pred_fallthru
        _
    $region32: #{_lambda_.4} parent=5 // pred_fallthru
      _
    %p1973 = scmp.le.s32.totalorder 2, %s9
    // Predicated region
    $region37: #{_lambda_.4} parent=5 // pred_check
      %p1974 = pneg %p1973
    $region38: #{_lambda_.4} parent=5 // pred_check_branch
      %1976 = sbr.rel (%p1974) target = $region40
    $region39: #{_lambda_.4} parent=5 // pred_region
      %s1977 = ssub.s32 %s9, 2
      // Predicated region
      $region41: #{_lambda_.4} parent=39 // pred_check
        %p1978 = pneg %p117
      $region42: #{_lambda_.4} parent=39 // pred_check_branch
        %1980 = sbr.rel (%p1978) target = $region44
      $region43: #{_lambda_.4} parent=39 // pred_region
        %s1981 = smul.u32 %s20, 2
        %s1982 = sadd.s32 %s1981, %s21
        %s1983 = smul.u32 16, %s1982
        %p1984 = scmp.lt.s32.totalorder %s1983, 63
        %s1985 = scalar_select %p1984, %s1983, 63
        %s1986 = smul.addr %s1985, 4
        %s1987 = scalar_lea.vmem %s3, %s1986
      $region44: #{_lambda_.4} parent=39 // pred_fallthru
        _
    $region40: #{_lambda_.4} parent=5 // pred_fallthru
      _
  $region6: #{_lambda_.4} parent=0 // loop_footer
    %s13 = sadd.s32 1, %s9
  $region7: #{_lambda_.4} parent=0 // loop_footer_branch
    %8 = sbr.rel target = $region3
  $region8: #{_lambda_.4} parent=0 // loop_exit
    _

</llo_original>
